<compile_context>
chip_gen: v7x
topology: tpu7x:2x2x1
jax: 0.10.0
libtpu: 0.0.40
codegen_flags: <defaults>
</compile_context>

<pallas_src>
import functools
import math

import jax
import jax.numpy as jnp
from jax.experimental import pallas as pl
from jax.experimental.pallas import tpu as pltpu


def _round_up(x, m):
    return ((x + m - 1) // m) * m


def _cdiv(a, b):
    return -(-a // b)


# ----------------------------------------------------------------------------
# Pallas kernels
# ----------------------------------------------------------------------------
def _matmul_bias_act_kernel(a_ref, w_ref, b_ref, o_ref, *, slope):
    """out = leaky_relu(a @ w + b), f32 accumulation, f32 epilogue."""
    acc = jnp.dot(a_ref[...], w_ref[...], preferred_element_type=jnp.float32)
    acc = acc + b_ref[...]                     # (tm, N) + (1, N)
    if slope is not None:
        acc = jnp.where(acc >= 0, acc, slope * acc)
    o_ref[...] = acc.astype(o_ref.dtype)


def _fc_fused_kernel(x_ref, w1_ref, b1_ref, w2_ref, b2_ref, o_ref, *, slope):
    """fc1 + fc2 fused: out = leaky(leaky(x@w1+b1) @ w2 + b2)."""
    h = jnp.dot(x_ref[...], w1_ref[...], preferred_element_type=jnp.float32)
    h = h + b1_ref[...]
    h = jnp.where(h >= 0, h, slope * h)
    y = jnp.dot(h.astype(w2_ref.dtype), w2_ref[...],
                preferred_element_type=jnp.float32)
    y = y + b2_ref[...]
    y = jnp.where(y >= 0, y, slope * y)
    o_ref[...] = y.astype(o_ref.dtype)


# ----------------------------------------------------------------------------
# pallas_call wrappers
# ----------------------------------------------------------------------------
def _pick_tile(m, max_tm=512):
    """Split M rows into <=max_tm row tiles, each a multiple of 8."""
    n = max(1, _cdiv(m, max_tm))
    tm = _round_up(_cdiv(m, n), 8)
    return tm, _round_up(m, tm)


def linear_pallas(a, w, b2, slope=None, max_tm=512):
    """a:(M,K) @ w:(K,N) + b2:(1,N) with fused leaky_relu. Returns (M,N) f32."""
    M, K = a.shape
    N = w.shape[1]
    tm, M_pad = _pick_tile(M, max_tm)
    a = a.astype(w.dtype)
    if M_pad != M:
        a = jnp.pad(a, ((0, M_pad - M), (0, 0)))
    out = pl.pallas_call(
        functools.partial(_matmul_bias_act_kernel, slope=slope),
        out_shape=jax.ShapeDtypeStruct((M_pad, N), jnp.float32),
        grid=(M_pad // tm,),
        in_specs=[
            pl.BlockSpec((tm, K), lambda i: (i, 0)),
            pl.BlockSpec((K, N), lambda i: (0, 0)),
            pl.BlockSpec((1, N), lambda i: (0, 0)),
        ],
        out_specs=pl.BlockSpec((tm, N), lambda i: (i, 0)),
        compiler_params=pltpu.CompilerParams(
            dimension_semantics=("parallel",)),
    )(a, w, b2)
    return out[:M]


def fc_fused_pallas(x, w1, b1, w2, b2, slope, max_tm=256):
    """Both FC layers in one pallas_call; intermediate (tm,128) never leaves VMEM."""
    M, K1 = x.shape
    N1 = w1.shape[1]
    N2 = w2.shape[1]
    tm, M_pad = _pick_tile(M, max_tm)
    x = x.astype(w1.dtype)
    if M_pad != M:
        x = jnp.pad(x, ((0, M_pad - M), (0, 0)))
    out = pl.pallas_call(
        functools.partial(_fc_fused_kernel, slope=slope),
        out_shape=jax.ShapeDtypeStruct((M_pad, N2), jnp.float32),
        grid=(M_pad // tm,),
        in_specs=[
            pl.BlockSpec((tm, K1), lambda i: (i, 0)),
            pl.BlockSpec((K1, N1), lambda i: (0, 0)),
            pl.BlockSpec((1, N1), lambda i: (0, 0)),
            pl.BlockSpec((N1, N2), lambda i: (0, 0)),
            pl.BlockSpec((1, N2), lambda i: (0, 0)),
        ],
        out_specs=pl.BlockSpec((tm, N2), lambda i: (i, 0)),
        compiler_params=pltpu.CompilerParams(
            dimension_semantics=("parallel",)),
    )(x, w1, b1, w2, b2)
    return out[:M]


# ----------------------------------------------------------------------------
# NHWC im2col + conv / phase-decomposed transposed conv (pure-JAX glue)
# ----------------------------------------------------------------------------
def _im2col_nhwc(x, kh, kw):
    """x:(B,H,W,C) (already padded/cropped) -> (B*OH*OW, kh*kw*C), OH, OW.
    Feature order (tap_h, tap_w, C) with C fastest -> lane-dense, matches
    the pre-packed weight matrices."""
    B, H, W, C = x.shape
    OH, OW = H - kh + 1, W - kw + 1
    cols = [x[:, i:i + OH, j:j + OW, :] for i in range(kh) for j in range(kw)]
    cols = cols[0] if len(cols) == 1 else jnp.concatenate(cols, axis=-1)
    return cols.reshape(B * OH * OW, kh * kw * C), OH, OW


def conv2d_nhwc(x, wm, b2, K, padding, slope, out_channels):
    """Stride-1 conv, NHWC, weight pre-packed as (K*K*C, Npad)."""
    B = x.shape[0]
    xp = jnp.pad(x, ((0, 0), (padding, padding), (padding, padding), (0, 0)))
    cols, OH, OW = _im2col_nhwc(xp, K, K)
    y = linear_pallas(cols, wm, b2, slope)
    return y[:, :out_channels].reshape(B, OH, OW, out_channels)


def _phase_plans(H, K, s, p):
    """For each output phase r = (oh + p) mod s: which output rows it owns and
    which slice of the UNDILATED input feeds its stride-1 sub-conv."""
    OH = (H - 1) * s - 2 * p + K
    plans = []
    for r in range(s):
        J = len(range(r, K, s))            # kernel taps kh == r (mod s)
        oh0 = (r - p) % s                  # first output row of this phase
        m0 = (oh0 + p) // s
        N = _cdiv(OH - oh0, s)             # rows produced by this phase
        plans.append(dict(J=J, oh0=oh0, N=N, offset=m0 - (J - 1)))
    return OH, plans


def _phase_input(x, ph, pw):
    """Zero-padded / cropped input slab feeding one (rh, rw) phase."""
    B, H, W, C = x.shape
    Lh = ph["N"] + ph["J"] - 1
    Lw = pw["N"] + pw["J"] - 1
    pbh = max(0, -ph["offset"]); pah = max(0, ph["offset"] + Lh - H)
    pbw = max(0, -pw["offset"]); paw = max(0, pw["offset"] + Lw - W)
    xp = jnp.pad(x, ((0, 0), (pbh, pah), (pbw, paw), (0, 0)))
    sh = ph["offset"] + pbh
    sw = pw["offset"] + pbw
    return xp[:, sh:sh + Lh, sw:sw + Lw, :]


def conv_transpose2d_nhwc(x, phase_w, b2, K, stride, padding, slope):
    """PyTorch ConvTranspose2d via sub-pixel phase decomposition: stride^2
    exact stride-1 convs on the undilated input (no zero MACs, no scatter)."""
    B, H, W, _ = x.shape
    Cout = phase_w[0].shape[1]
    OH, plans_h = _phase_plans(H, K, stride, padding)
    OW, plans_w = _phase_plans(W, K, stride, padding)
    out = jnp.zeros((B, OH, OW, Cout), jnp.float32)
    for rh, ph in enumerate(plans_h):
        for rw, pw in enumerate(plans_w):
            xs = _phase_input(x, ph, pw)
            cols, _, _ = _im2col_nhwc(xs, ph["J"], pw["J"])
            y = linear_pallas(cols, phase_w[rh * stride + rw], b2, slope)
            y = y.reshape(B, ph["N"], pw["N"], Cout)
            out = out.at[:, ph["oh0"]::stride, pw["oh0"]::stride, :].set(y)
    return out


# ----------------------------------------------------------------------------
# Parameters: PyTorch layout -> one-time kernel-ready repack
# ----------------------------------------------------------------------------
def init_pt_params(key):
    """PyTorch-layout params with torch's default uniform(+-1/sqrt(fan_in))."""
    def u(k, shape, fan_in):
        b = 1.0 / math.sqrt(fan_in)
        return jax.random.uniform(k, shape, jnp.float32, -b, b)
    ks = jax.random.split(key, 12)
    return {
        "fc1_w": u(ks[0], (128, 11), 11),         "fc1_b": u(ks[1], (128,), 11),
        "fc2_w": u(ks[2], (576, 128), 128),       "fc2_b": u(ks[3], (576,), 128),
        "rc1_w": u(ks[4], (64, 64, 3, 3), 64 * 9), "rc1_b": u(ks[5], (64,), 64 * 9),
        "rc2_w": u(ks[6], (64, 64, 3, 3), 64 * 9), "rc2_b": u(ks[7], (64,), 64 * 9),
        "rc3_w": u(ks[8], (64, 32, 4, 4), 32 * 16), "rc3_b": u(ks[9], (32,), 32 * 16),
        "c3_w": u(ks[10], (1, 32, 3, 3), 32 * 9),  "c3_b": u(ks[11], (1,), 32 * 9),
    }


def _deconv_phase_weights(w_pt, stride):
    """(Cin,Cout,K,K) ConvTranspose weight -> stride^2 flipped, tap-gathered
    matmul matrices (Jh*Jw*Cin, Cout), ordered rh*stride+rw; feature order
    (tap_h, tap_w, Cin) to match _im2col_nhwc."""
    Cin, Cout, K, _ = w_pt.shape
    mats = []
    for rh in range(stride):
        th = jnp.array(list(range(rh, K, stride))[::-1])
        for rw in range(stride):
            tw = jnp.array(list(range(rw, K, stride))[::-1])
            sub = w_pt[:, :, th[:, None], tw[None, :]]       # (Cin,Cout,Jh,Jw)
            mats.append(sub.transpose(2, 3, 0, 1)
                        .reshape(th.size * tw.size * Cin, Cout))
    return mats


def prepare_params(pt, compute_dtype=jnp.float32):
    """One-time repack into lane-dense matmul form (never per-forward).
    compute_dtype=jnp.bfloat16 halves weight/activation DMA bytes on v6e/v7x;
    biases and accumulation stay f32."""
    cd = compute_dtype
    p = {}
    p["fc1_w"] = pt["fc1_w"].T.astype(cd)                          # (11,128)
    p["fc1_b"] = pt["fc1_b"].reshape(1, -1)
    # Permute fc2 output columns (c,h,w)->(h,w,c) so the FC output reshapes
    # straight into NHWC (no transpose in the forward).
    perm = jnp.arange(64 * 3 * 3).reshape(64, 3, 3).transpose(1, 2, 0).reshape(-1)
    p["fc2_w"] = pt["fc2_w"].T[:, perm].astype(cd)                 # (128,576)
    p["fc2_b"] = pt["fc2_b"][perm].reshape(1, -1)
    for name in ("rc1", "rc2", "rc3"):
        p[name + "_w"] = [m.astype(cd)
                          for m in _deconv_phase_weights(pt[name + "_w"], 2)]
        p[name + "_b"] = pt[name + "_b"].reshape(1, -1)
    # Final conv: (1,32,3,3) -> (3*3*32, 1), zero-padded to 128 output lanes
    # so the Pallas store is lane-dense (no masked vst); slice channel 0 outside.
    wm = pt["c3_w"].transpose(2, 3, 1, 0).reshape(3 * 3 * 32, 1)
    p["c3_w"] = jnp.pad(wm, ((0, 0), (0, 127))).astype(cd)         # (288,128)
    p["c3_b"] = jnp.pad(pt["c3_b"], (0, 127)).reshape(1, -1)
    return p


# ----------------------------------------------------------------------------
# Forward pass (mirrors ganNet.forward)
# ----------------------------------------------------------------------------
@jax.jit
def gan_net_forward(x, params):
    slope = 0.1
    B = x.shape[0]
    h = fc_fused_pallas(x, params["fc1_w"], params["fc1_b"],
                        params["fc2_w"], params["fc2_b"], slope)       # (B,576)
    h = h.reshape(B, 3, 3, 64)                                          # NHWC
    h = conv_transpose2d_nhwc(h, params["rc1_w"], params["rc1_b"], 3, 2, 0, slope)  # (B,7,7,64)
    h = conv_transpose2d_nhwc(h, params["rc2_w"], params["rc2_b"], 3, 2, 1, slope)  # (B,13,13,64)
    h = conv_transpose2d_nhwc(h, params["rc3_w"], params["rc3_b"], 4, 2, 0, slope)  # (B,28,28,32)
    h = conv2d_nhwc(h, params["c3_w"], params["c3_b"], 3, 1, None, 1)               # (B,28,28,1)
    return jnp.transpose(h, (0, 3, 1, 2))        # NCHW; size-1 dim move is free


# ----------------------------------------------------------------------------
# Pure-XLA reference of the PyTorch module (for in-script validation)
# ----------------------------------------------------------------------------
def reference_forward(x, pt):
    hp = jax.lax.Precision.HIGHEST
    leaky = lambda v: jnp.where(v >= 0, v, 0.1 * v)
    h = leaky(jnp.dot(x, pt["fc1_w"].T, precision=hp) + pt["fc1_b"])
    h = leaky(jnp.dot(h, pt["fc2_w"].T, precision=hp) + pt["fc2_b"])
    h = h.reshape(-1, 64, 3, 3)

    def deconv(v, w, b, s, p):
        K = w.shape[2]
        wc = jnp.flip(w, (2, 3)).transpose(1, 0, 2, 3)       # (Cout,Cin,K,K)
        y = jax.lax.conv_general_dilated(
            v, wc, window_strides=(1, 1),
            padding=[(K - 1 - p,) * 2, (K - 1 - p,) * 2],
            lhs_dilation=(s, s),
            dimension_numbers=("NCHW", "OIHW", "NCHW"), precision=hp)
        return y + b.reshape(1, -1, 1, 1)

    h = leaky(deconv(h, pt["rc1_w"], pt["rc1_b"], 2, 0))
    h = leaky(deconv(h, pt["rc2_w"], pt["rc2_b"], 2, 1))
    h = leaky(deconv(h, pt["rc3_w"], pt["rc3_b"], 2, 0))
    y = jax.lax.conv_general_dilated(
        h, pt["c3_w"], (1, 1), [(1, 1), (1, 1)],
        dimension_numbers=("NCHW", "OIHW", "NCHW"), precision=hp)
    return y + pt["c3_b"].reshape(1, -1, 1, 1)


if __name__ == "__main__":
    B = 2
    kx, kp = jax.random.split(jax.random.PRNGKey(0))
    x = jax.random.normal(kx, (B, 11), jnp.float32)

    pt_params = init_pt_params(kp)            # PyTorch-layout parameters
    params = prepare_params(pt_params)        # one-time lane-dense repack

    y = jax.block_until_ready(gan_net_forward(x, params))
    assert y.shape == (B, 1, 28, 28), y.shape
    assert y.dtype == jnp.float32
    assert bool(jnp.all(jnp.isfinite(y)))

    # Validate against a pure-XLA reference of the original module.
    ref = jax.block_until_ready(reference_forward(x, pt_params))
    rel = float(jnp.max(jnp.abs(y - ref)) / (jnp.max(jnp.abs(ref)) + 1e-8))
    assert rel < 2e-2, f"mismatch vs reference: rel={rel}"

    print("KERNEL_OK")
</pallas_src>

<mosaic_0001>
module attributes {stable_mosaic.version = 11 : i64} {
  func.func @_fc_fused_kernel(%arg0: i32, %arg1: memref<8x11xf32, #tpu.memory_space<vmem>>, %arg2: memref<11x128xf32, #tpu.memory_space<vmem>>, %arg3: memref<1x128xf32, #tpu.memory_space<vmem>>, %arg4: memref<128x576xf32, #tpu.memory_space<vmem>>, %arg5: memref<1x576xf32, #tpu.memory_space<vmem>>, %arg6: memref<8x576xf32, #tpu.memory_space<vmem>>) attributes {dimension_semantics = [#tpu.dimension_semantics<parallel>], iteration_bounds = array<i64: 1>, scalar_prefetch = 0 : i64, scratch_operands = 0 : i64, tpu.core_type = #tpu.core_type<tc>, window_params = [{transform_indices = @transform_0, window_bounds = array<i64: 8, 11>}, {pipeline_mode = #tpu.pipeline_mode<synchronous>, transform_indices = @transform_1, window_bounds = array<i64: 11, 128>}, {pipeline_mode = #tpu.pipeline_mode<synchronous>, transform_indices = @transform_2, window_bounds = array<i64: 1, 128>}, {pipeline_mode = #tpu.pipeline_mode<synchronous>, transform_indices = @transform_3, window_bounds = array<i64: 128, 576>}, {pipeline_mode = #tpu.pipeline_mode<synchronous>, transform_indices = @transform_4, window_bounds = array<i64: 1, 576>}, {transform_indices = @transform_5, window_bounds = array<i64: 8, 576>}]} {
    %c0 = arith.constant 0 : index
    %c0_0 = arith.constant 0 : index
    %0 = vector.load %arg1[%c0, %c0_0] : memref<8x11xf32, #tpu.memory_space<vmem>>, vector<8x11xf32>
    %c0_1 = arith.constant 0 : index
    %c0_2 = arith.constant 0 : index
    %1 = vector.load %arg2[%c0_1, %c0_2] : memref<11x128xf32, #tpu.memory_space<vmem>>, vector<11x128xf32>
    %cst = arith.constant dense<0.000000e+00> : vector<8x128xf32>
    %2 = tpu.matmul %0, %1, %cst {dimension_numbers = #tpu.dot_dimension_numbers<[1], [0], [0], [1], [0, 0, 1, 1], [], []>} : vector<8x11xf32>, vector<11x128xf32>, vector<8x128xf32> -> vector<8x128xf32>
    %c0_3 = arith.constant 0 : index
    %c0_4 = arith.constant 0 : index
    %3 = vector.load %arg3[%c0_3, %c0_4] : memref<1x128xf32, #tpu.memory_space<vmem>>, vector<1x128xf32>
    %4 = vector.broadcast %3 : vector<1x128xf32> to vector<8x128xf32>
    %5 = arith.addf %2, %4 : vector<8x128xf32>
    %cst_5 = arith.constant 0.000000e+00 : f32
    %6 = vector.broadcast %cst_5 : f32 to vector<8x128xf32>
    %7 = arith.cmpf oge, %5, %6 : vector<8x128xf32>
    %cst_6 = arith.constant 1.000000e-01 : f32
    %8 = vector.broadcast %cst_6 : f32 to vector<8x128xf32>
    %9 = arith.mulf %8, %5 : vector<8x128xf32>
    %10 = arith.select %7, %5, %9 : vector<8x128xi1>, vector<8x128xf32>
    %c0_7 = arith.constant 0 : index
    %c0_8 = arith.constant 0 : index
    %11 = vector.load %arg4[%c0_7, %c0_8] : memref<128x576xf32, #tpu.memory_space<vmem>>, vector<128x576xf32>
    %cst_9 = arith.constant dense<0.000000e+00> : vector<8x576xf32>
    %12 = tpu.matmul %10, %11, %cst_9 {dimension_numbers = #tpu.dot_dimension_numbers<[1], [0], [0], [1], [0, 0, 1, 1], [], []>} : vector<8x128xf32>, vector<128x576xf32>, vector<8x576xf32> -> vector<8x576xf32>
    %c0_10 = arith.constant 0 : index
    %c0_11 = arith.constant 0 : index
    %13 = vector.load %arg5[%c0_10, %c0_11] : memref<1x576xf32, #tpu.memory_space<vmem>>, vector<1x576xf32>
    %14 = vector.broadcast %13 : vector<1x576xf32> to vector<8x576xf32>
    %15 = arith.addf %12, %14 : vector<8x576xf32>
    %cst_12 = arith.constant 0.000000e+00 : f32
    %16 = vector.broadcast %cst_12 : f32 to vector<8x576xf32>
    %17 = arith.cmpf oge, %15, %16 : vector<8x576xf32>
    %cst_13 = arith.constant 1.000000e-01 : f32
    %18 = vector.broadcast %cst_13 : f32 to vector<8x576xf32>
    %19 = arith.mulf %18, %15 : vector<8x576xf32>
    %20 = arith.select %17, %15, %19 : vector<8x576xi1>, vector<8x576xf32>
    %c0_14 = arith.constant 0 : index
    %c0_15 = arith.constant 0 : index
    %21 = vector.load %arg6[%c0_14, %c0_15] : memref<8x576xf32, #tpu.memory_space<vmem>>, vector<8x576xf32>
    tpu.vector_store %arg6[%c0_14, %c0_15], %20 {strides = array<i32>} : memref<8x576xf32, #tpu.memory_space<vmem>>, vector<8x576xf32>,
    return
  }
  func.func @transform_0(%arg0: i32) -> (i32, i32) {
    %c0_i32 = arith.constant 0 : i32
    %c0_i32_0 = arith.constant 0 : i32
    return %arg0, %c0_i32 : i32, i32
  }
  func.func @transform_1(%arg0: i32) -> (i32, i32) {
    %c0_i32 = arith.constant 0 : i32
    %c0_i32_0 = arith.constant 0 : i32
    %c0_i32_1 = arith.constant 0 : i32
    return %c0_i32, %c0_i32_0 : i32, i32
  }
  func.func @transform_2(%arg0: i32) -> (i32, i32) {
    %c0_i32 = arith.constant 0 : i32
    %c0_i32_0 = arith.constant 0 : i32
    %c0_i32_1 = arith.constant 0 : i32
    return %c0_i32, %c0_i32_0 : i32, i32
  }
  func.func @transform_3(%arg0: i32) -> (i32, i32) {
    %c0_i32 = arith.constant 0 : i32
    %c0_i32_0 = arith.constant 0 : i32
    %c0_i32_1 = arith.constant 0 : i32
    return %c0_i32, %c0_i32_0 : i32, i32
  }
  func.func @transform_4(%arg0: i32) -> (i32, i32) {
    %c0_i32 = arith.constant 0 : i32
    %c0_i32_0 = arith.constant 0 : i32
    %c0_i32_1 = arith.constant 0 : i32
    return %c0_i32, %c0_i32_0 : i32, i32
  }
  func.func @transform_5(%arg0: i32) -> (i32, i32) {
    %c0_i32 = arith.constant 0 : i32
    %c0_i32_0 = arith.constant 0 : i32
    return %arg0, %c0_i32 : i32, i32
  }
}

module attributes {stable_mosaic.version = 11 : i64} {
  func.func @_matmul_bias_act_kernel(%arg0: i32, %arg1: memref<24x64xf32, #tpu.memory_space<vmem>>, %arg2: memref<64x64xf32, #tpu.memory_space<vmem>>, %arg3: memref<1x64xf32, #tpu.memory_space<vmem>>, %arg4: memref<24x64xf32, #tpu.memory_space<vmem>>) attributes {dimension_semantics = [#tpu.dimension_semantics<parallel>], iteration_bounds = array<i64: 1>, scalar_prefetch = 0 : i64, scratch_operands = 0 : i64, tpu.core_type = #tpu.core_type<tc>, window_params = [{transform_indices = @transform_0, window_bounds = array<i64: 24, 64>}, {pipeline_mode = #tpu.pipeline_mode<synchronous>, transform_indices = @transform_1, window_bounds = array<i64: 64, 64>}, {pipeline_mode = #tpu.pipeline_mode<synchronous>, transform_indices = @transform_2, window_bounds = array<i64: 1, 64>}, {transform_indices = @transform_3, window_bounds = array<i64: 24, 64>}]} {
    %c0 = arith.constant 0 : index
    %c0_0 = arith.constant 0 : index
    %0 = vector.load %arg1[%c0, %c0_0] : memref<24x64xf32, #tpu.memory_space<vmem>>, vector<24x64xf32>
    %c0_1 = arith.constant 0 : index
    %c0_2 = arith.constant 0 : index
    %1 = vector.load %arg2[%c0_1, %c0_2] : memref<64x64xf32, #tpu.memory_space<vmem>>, vector<64x64xf32>
    %cst = arith.constant dense<0.000000e+00> : vector<24x64xf32>
    %2 = tpu.matmul %0, %1, %cst {dimension_numbers = #tpu.dot_dimension_numbers<[1], [0], [0], [1], [0, 0, 1, 1], [], []>} : vector<24x64xf32>, vector<64x64xf32>, vector<24x64xf32> -> vector<24x64xf32>
    %c0_3 = arith.constant 0 : index
    %c0_4 = arith.constant 0 : index
    %3 = vector.load %arg3[%c0_3, %c0_4] : memref<1x64xf32, #tpu.memory_space<vmem>>, vector<1x64xf32>
    %4 = vector.broadcast %3 : vector<1x64xf32> to vector<24x64xf32>
    %5 = arith.addf %2, %4 : vector<24x64xf32>
    %cst_5 = arith.constant 0.000000e+00 : f32
    %6 = vector.broadcast %cst_5 : f32 to vector<24x64xf32>
    %7 = arith.cmpf oge, %5, %6 : vector<24x64xf32>
    %cst_6 = arith.constant 1.000000e-01 : f32
    %8 = vector.broadcast %cst_6 : f32 to vector<24x64xf32>
    %9 = arith.mulf %8, %5 : vector<24x64xf32>
    %10 = arith.select %7, %5, %9 : vector<24x64xi1>, vector<24x64xf32>
    %c0_7 = arith.constant 0 : index
    %c0_8 = arith.constant 0 : index
    %11 = vector.load %arg4[%c0_7, %c0_8] : memref<24x64xf32, #tpu.memory_space<vmem>>, vector<24x64xf32>
    tpu.vector_store %arg4[%c0_7, %c0_8], %10 {strides = array<i32>} : memref<24x64xf32, #tpu.memory_space<vmem>>, vector<24x64xf32>,
    return
  }
  func.func @transform_0(%arg0: i32) -> (i32, i32) {
    %c0_i32 = arith.constant 0 : i32
    %c0_i32_0 = arith.constant 0 : i32
    return %arg0, %c0_i32 : i32, i32
  }
  func.func @transform_1(%arg0: i32) -> (i32, i32) {
    %c0_i32 = arith.constant 0 : i32
    %c0_i32_0 = arith.constant 0 : i32
    %c0_i32_1 = arith.constant 0 : i32
    return %c0_i32, %c0_i32_0 : i32, i32
  }
  func.func @transform_2(%arg0: i32) -> (i32, i32) {
    %c0_i32 = arith.constant 0 : i32
    %c0_i32_0 = arith.constant 0 : i32
    %c0_i32_1 = arith.constant 0 : i32
    return %c0_i32, %c0_i32_0 : i32, i32
  }
  func.func @transform_3(%arg0: i32) -> (i32, i32) {
    %c0_i32 = arith.constant 0 : i32
    %c0_i32_0 = arith.constant 0 : i32
    return %arg0, %c0_i32 : i32, i32
  }
}

module attributes {stable_mosaic.version = 11 : i64} {
  func.func @_matmul_bias_act_kernel(%arg0: i32, %arg1: memref<24x128xf32, #tpu.memory_space<vmem>>, %arg2: memref<128x64xf32, #tpu.memory_space<vmem>>, %arg3: memref<1x64xf32, #tpu.memory_space<vmem>>, %arg4: memref<24x64xf32, #tpu.memory_space<vmem>>) attributes {dimension_semantics = [#tpu.dimension_semantics<parallel>], iteration_bounds = array<i64: 1>, scalar_prefetch = 0 : i64, scratch_operands = 0 : i64, tpu.core_type = #tpu.core_type<tc>, window_params = [{transform_indices = @transform_0, window_bounds = array<i64: 24, 128>}, {pipeline_mode = #tpu.pipeline_mode<synchronous>, transform_indices = @transform_1, window_bounds = array<i64: 128, 64>}, {pipeline_mode = #tpu.pipeline_mode<synchronous>, transform_indices = @transform_2, window_bounds = array<i64: 1, 64>}, {transform_indices = @transform_3, window_bounds = array<i64: 24, 64>}]} {
    %c0 = arith.constant 0 : index
    %c0_0 = arith.constant 0 : index
    %0 = vector.load %arg1[%c0, %c0_0] : memref<24x128xf32, #tpu.memory_space<vmem>>, vector<24x128xf32>
    %c0_1 = arith.constant 0 : index
    %c0_2 = arith.constant 0 : index
    %1 = vector.load %arg2[%c0_1, %c0_2] : memref<128x64xf32, #tpu.memory_space<vmem>>, vector<128x64xf32>
    %cst = arith.constant dense<0.000000e+00> : vector<24x64xf32>
    %2 = tpu.matmul %0, %1, %cst {dimension_numbers = #tpu.dot_dimension_numbers<[1], [0], [0], [1], [0, 0, 1, 1], [], []>} : vector<24x128xf32>, vector<128x64xf32>, vector<24x64xf32> -> vector<24x64xf32>
    %c0_3 = arith.constant 0 : index
    %c0_4 = arith.constant 0 : index
    %3 = vector.load %arg3[%c0_3, %c0_4] : memref<1x64xf32, #tpu.memory_space<vmem>>, vector<1x64xf32>
    %4 = vector.broadcast %3 : vector<1x64xf32> to vector<24x64xf32>
    %5 = arith.addf %2, %4 : vector<24x64xf32>
    %cst_5 = arith.constant 0.000000e+00 : f32
    %6 = vector.broadcast %cst_5 : f32 to vector<24x64xf32>
    %7 = arith.cmpf oge, %5, %6 : vector<24x64xf32>
    %cst_6 = arith.constant 1.000000e-01 : f32
    %8 = vector.broadcast %cst_6 : f32 to vector<24x64xf32>
    %9 = arith.mulf %8, %5 : vector<24x64xf32>
    %10 = arith.select %7, %5, %9 : vector<24x64xi1>, vector<24x64xf32>
    %c0_7 = arith.constant 0 : index
    %c0_8 = arith.constant 0 : index
    %11 = vector.load %arg4[%c0_7, %c0_8] : memref<24x64xf32, #tpu.memory_space<vmem>>, vector<24x64xf32>
    tpu.vector_store %arg4[%c0_7, %c0_8], %10 {strides = array<i32>} : memref<24x64xf32, #tpu.memory_space<vmem>>, vector<24x64xf32>,
    return
  }
  func.func @transform_0(%arg0: i32) -> (i32, i32) {
    %c0_i32 = arith.constant 0 : i32
    %c0_i32_0 = arith.constant 0 : i32
    return %arg0, %c0_i32 : i32, i32
  }
  func.func @transform_1(%arg0: i32) -> (i32, i32) {
    %c0_i32 = arith.constant 0 : i32
    %c0_i32_0 = arith.constant 0 : i32
    %c0_i32_1 = arith.constant 0 : i32
    return %c0_i32, %c0_i32_0 : i32, i32
  }
  func.func @transform_2(%arg0: i32) -> (i32, i32) {
    %c0_i32 = arith.constant 0 : i32
    %c0_i32_0 = arith.constant 0 : i32
    %c0_i32_1 = arith.constant 0 : i32
    return %c0_i32, %c0_i32_0 : i32, i32
  }
  func.func @transform_3(%arg0: i32) -> (i32, i32) {
    %c0_i32 = arith.constant 0 : i32
    %c0_i32_0 = arith.constant 0 : i32
    return %arg0, %c0_i32 : i32, i32
  }
}

module attributes {stable_mosaic.version = 11 : i64} {
  func.func @_matmul_bias_act_kernel(%arg0: i32, %arg1: memref<32x256xf32, #tpu.memory_space<vmem>>, %arg2: memref<256x64xf32, #tpu.memory_space<vmem>>, %arg3: memref<1x64xf32, #tpu.memory_space<vmem>>, %arg4: memref<32x64xf32, #tpu.memory_space<vmem>>) attributes {dimension_semantics = [#tpu.dimension_semantics<parallel>], iteration_bounds = array<i64: 1>, scalar_prefetch = 0 : i64, scratch_operands = 0 : i64, tpu.core_type = #tpu.core_type<tc>, window_params = [{transform_indices = @transform_0, window_bounds = array<i64: 32, 256>}, {pipeline_mode = #tpu.pipeline_mode<synchronous>, transform_indices = @transform_1, window_bounds = array<i64: 256, 64>}, {pipeline_mode = #tpu.pipeline_mode<synchronous>, transform_indices = @transform_2, window_bounds = array<i64: 1, 64>}, {transform_indices = @transform_3, window_bounds = array<i64: 32, 64>}]} {
    %c0 = arith.constant 0 : index
    %c0_0 = arith.constant 0 : index
    %0 = vector.load %arg1[%c0, %c0_0] : memref<32x256xf32, #tpu.memory_space<vmem>>, vector<32x256xf32>
    %c0_1 = arith.constant 0 : index
    %c0_2 = arith.constant 0 : index
    %1 = vector.load %arg2[%c0_1, %c0_2] : memref<256x64xf32, #tpu.memory_space<vmem>>, vector<256x64xf32>
    %cst = arith.constant dense<0.000000e+00> : vector<32x64xf32>
    %2 = tpu.matmul %0, %1, %cst {dimension_numbers = #tpu.dot_dimension_numbers<[1], [0], [0], [1], [0, 0, 1, 1], [], []>} : vector<32x256xf32>, vector<256x64xf32>, vector<32x64xf32> -> vector<32x64xf32>
    %c0_3 = arith.constant 0 : index
    %c0_4 = arith.constant 0 : index
    %3 = vector.load %arg3[%c0_3, %c0_4] : memref<1x64xf32, #tpu.memory_space<vmem>>, vector<1x64xf32>
    %4 = vector.broadcast %3 : vector<1x64xf32> to vector<32x64xf32>
    %5 = arith.addf %2, %4 : vector<32x64xf32>
    %cst_5 = arith.constant 0.000000e+00 : f32
    %6 = vector.broadcast %cst_5 : f32 to vector<32x64xf32>
    %7 = arith.cmpf oge, %5, %6 : vector<32x64xf32>
    %cst_6 = arith.constant 1.000000e-01 : f32
    %8 = vector.broadcast %cst_6 : f32 to vector<32x64xf32>
    %9 = arith.mulf %8, %5 : vector<32x64xf32>
    %10 = arith.select %7, %5, %9 : vector<32x64xi1>, vector<32x64xf32>
    %c0_7 = arith.constant 0 : index
    %c0_8 = arith.constant 0 : index
    %11 = vector.load %arg4[%c0_7, %c0_8] : memref<32x64xf32, #tpu.memory_space<vmem>>, vector<32x64xf32>
    tpu.vector_store %arg4[%c0_7, %c0_8], %10 {strides = array<i32>} : memref<32x64xf32, #tpu.memory_space<vmem>>, vector<32x64xf32>,
    return
  }
  func.func @transform_0(%arg0: i32) -> (i32, i32) {
    %c0_i32 = arith.constant 0 : i32
    %c0_i32_0 = arith.constant 0 : i32
    return %arg0, %c0_i32 : i32, i32
  }
  func.func @transform_1(%arg0: i32) -> (i32, i32) {
    %c0_i32 = arith.constant 0 : i32
    %c0_i32_0 = arith.constant 0 : i32
    %c0_i32_1 = arith.constant 0 : i32
    return %c0_i32, %c0_i32_0 : i32, i32
  }
  func.func @transform_2(%arg0: i32) -> (i32, i32) {
    %c0_i32 = arith.constant 0 : i32
    %c0_i32_0 = arith.constant 0 : i32
    %c0_i32_1 = arith.constant 0 : i32
    return %c0_i32, %c0_i32_0 : i32, i32
  }
  func.func @transform_3(%arg0: i32) -> (i32, i32) {
    %c0_i32 = arith.constant 0 : i32
    %c0_i32_0 = arith.constant 0 : i32
    return %arg0, %c0_i32 : i32, i32
  }
}

module attributes {stable_mosaic.version = 11 : i64} {
  func.func @_matmul_bias_act_kernel(%arg0: i32, %arg1: memref<104x64xf32, #tpu.memory_space<vmem>>, %arg2: memref<64x64xf32, #tpu.memory_space<vmem>>, %arg3: memref<1x64xf32, #tpu.memory_space<vmem>>, %arg4: memref<104x64xf32, #tpu.memory_space<vmem>>) attributes {dimension_semantics = [#tpu.dimension_semantics<parallel>], iteration_bounds = array<i64: 1>, scalar_prefetch = 0 : i64, scratch_operands = 0 : i64, tpu.core_type = #tpu.core_type<tc>, window_params = [{transform_indices = @transform_0, window_bounds = array<i64: 104, 64>}, {pipeline_mode = #tpu.pipeline_mode<synchronous>, transform_indices = @transform_1, window_bounds = array<i64: 64, 64>}, {pipeline_mode = #tpu.pipeline_mode<synchronous>, transform_indices = @transform_2, window_bounds = array<i64: 1, 64>}, {transform_indices = @transform_3, window_bounds = array<i64: 104, 64>}]} {
    %c0 = arith.constant 0 : index
    %c0_0 = arith.constant 0 : index
    %0 = vector.load %arg1[%c0, %c0_0] : memref<104x64xf32, #tpu.memory_space<vmem>>, vector<104x64xf32>
    %c0_1 = arith.constant 0 : index
    %c0_2 = arith.constant 0 : index
    %1 = vector.load %arg2[%c0_1, %c0_2] : memref<64x64xf32, #tpu.memory_space<vmem>>, vector<64x64xf32>
    %cst = arith.constant dense<0.000000e+00> : vector<104x64xf32>
    %2 = tpu.matmul %0, %1, %cst {dimension_numbers = #tpu.dot_dimension_numbers<[1], [0], [0], [1], [0, 0, 1, 1], [], []>} : vector<104x64xf32>, vector<64x64xf32>, vector<104x64xf32> -> vector<104x64xf32>
    %c0_3 = arith.constant 0 : index
    %c0_4 = arith.constant 0 : index
    %3 = vector.load %arg3[%c0_3, %c0_4] : memref<1x64xf32, #tpu.memory_space<vmem>>, vector<1x64xf32>
    %4 = vector.broadcast %3 : vector<1x64xf32> to vector<104x64xf32>
    %5 = arith.addf %2, %4 : vector<104x64xf32>
    %cst_5 = arith.constant 0.000000e+00 : f32
    %6 = vector.broadcast %cst_5 : f32 to vector<104x64xf32>
    %7 = arith.cmpf oge, %5, %6 : vector<104x64xf32>
    %cst_6 = arith.constant 1.000000e-01 : f32
    %8 = vector.broadcast %cst_6 : f32 to vector<104x64xf32>
    %9 = arith.mulf %8, %5 : vector<104x64xf32>
    %10 = arith.select %7, %5, %9 : vector<104x64xi1>, vector<104x64xf32>
    %c0_7 = arith.constant 0 : index
    %c0_8 = arith.constant 0 : index
    %11 = vector.load %arg4[%c0_7, %c0_8] : memref<104x64xf32, #tpu.memory_space<vmem>>, vector<104x64xf32>
    tpu.vector_store %arg4[%c0_7, %c0_8], %10 {strides = array<i32>} : memref<104x64xf32, #tpu.memory_space<vmem>>, vector<104x64xf32>,
    return
  }
  func.func @transform_0(%arg0: i32) -> (i32, i32) {
    %c0_i32 = arith.constant 0 : i32
    %c0_i32_0 = arith.constant 0 : i32
    return %arg0, %c0_i32 : i32, i32
  }
  func.func @transform_1(%arg0: i32) -> (i32, i32) {
    %c0_i32 = arith.constant 0 : i32
    %c0_i32_0 = arith.constant 0 : i32
    %c0_i32_1 = arith.constant 0 : i32
    return %c0_i32, %c0_i32_0 : i32, i32
  }
  func.func @transform_2(%arg0: i32) -> (i32, i32) {
    %c0_i32 = arith.constant 0 : i32
    %c0_i32_0 = arith.constant 0 : i32
    %c0_i32_1 = arith.constant 0 : i32
    return %c0_i32, %c0_i32_0 : i32, i32
  }
  func.func @transform_3(%arg0: i32) -> (i32, i32) {
    %c0_i32 = arith.constant 0 : i32
    %c0_i32_0 = arith.constant 0 : i32
    return %arg0, %c0_i32 : i32, i32
  }
}

module attributes {stable_mosaic.version = 11 : i64} {
  func.func @_matmul_bias_act_kernel(%arg0: i32, %arg1: memref<88x128xf32, #tpu.memory_space<vmem>>, %arg2: memref<128x64xf32, #tpu.memory_space<vmem>>, %arg3: memref<1x64xf32, #tpu.memory_space<vmem>>, %arg4: memref<88x64xf32, #tpu.memory_space<vmem>>) attributes {dimension_semantics = [#tpu.dimension_semantics<parallel>], iteration_bounds = array<i64: 1>, scalar_prefetch = 0 : i64, scratch_operands = 0 : i64, tpu.core_type = #tpu.core_type<tc>, window_params = [{transform_indices = @transform_0, window_bounds = array<i64: 88, 128>}, {pipeline_mode = #tpu.pipeline_mode<synchronous>, transform_indices = @transform_1, window_bounds = array<i64: 128, 64>}, {pipeline_mode = #tpu.pipeline_mode<synchronous>, transform_indices = @transform_2, window_bounds = array<i64: 1, 64>}, {transform_indices = @transform_3, window_bounds = array<i64: 88, 64>}]} {
    %c0 = arith.constant 0 : index
    %c0_0 = arith.constant 0 : index
    %0 = vector.load %arg1[%c0, %c0_0] : memref<88x128xf32, #tpu.memory_space<vmem>>, vector<88x128xf32>
    %c0_1 = arith.constant 0 : index
    %c0_2 = arith.constant 0 : index
    %1 = vector.load %arg2[%c0_1, %c0_2] : memref<128x64xf32, #tpu.memory_space<vmem>>, vector<128x64xf32>
    %cst = arith.constant dense<0.000000e+00> : vector<88x64xf32>
    %2 = tpu.matmul %0, %1, %cst {dimension_numbers = #tpu.dot_dimension_numbers<[1], [0], [0], [1], [0, 0, 1, 1], [], []>} : vector<88x128xf32>, vector<128x64xf32>, vector<88x64xf32> -> vector<88x64xf32>
    %c0_3 = arith.constant 0 : index
    %c0_4 = arith.constant 0 : index
    %3 = vector.load %arg3[%c0_3, %c0_4] : memref<1x64xf32, #tpu.memory_space<vmem>>, vector<1x64xf32>
    %4 = vector.broadcast %3 : vector<1x64xf32> to vector<88x64xf32>
    %5 = arith.addf %2, %4 : vector<88x64xf32>
    %cst_5 = arith.constant 0.000000e+00 : f32
    %6 = vector.broadcast %cst_5 : f32 to vector<88x64xf32>
    %7 = arith.cmpf oge, %5, %6 : vector<88x64xf32>
    %cst_6 = arith.constant 1.000000e-01 : f32
    %8 = vector.broadcast %cst_6 : f32 to vector<88x64xf32>
    %9 = arith.mulf %8, %5 : vector<88x64xf32>
    %10 = arith.select %7, %5, %9 : vector<88x64xi1>, vector<88x64xf32>
    %c0_7 = arith.constant 0 : index
    %c0_8 = arith.constant 0 : index
    %11 = vector.load %arg4[%c0_7, %c0_8] : memref<88x64xf32, #tpu.memory_space<vmem>>, vector<88x64xf32>
    tpu.vector_store %arg4[%c0_7, %c0_8], %10 {strides = array<i32>} : memref<88x64xf32, #tpu.memory_space<vmem>>, vector<88x64xf32>,
    return
  }
  func.func @transform_0(%arg0: i32) -> (i32, i32) {
    %c0_i32 = arith.constant 0 : i32
    %c0_i32_0 = arith.constant 0 : i32
    return %arg0, %c0_i32 : i32, i32
  }
  func.func @transform_1(%arg0: i32) -> (i32, i32) {
    %c0_i32 = arith.constant 0 : i32
    %c0_i32_0 = arith.constant 0 : i32
    %c0_i32_1 = arith.constant 0 : i32
    return %c0_i32, %c0_i32_0 : i32, i32
  }
  func.func @transform_2(%arg0: i32) -> (i32, i32) {
    %c0_i32 = arith.constant 0 : i32
    %c0_i32_0 = arith.constant 0 : i32
    %c0_i32_1 = arith.constant 0 : i32
    return %c0_i32, %c0_i32_0 : i32, i32
  }
  func.func @transform_3(%arg0: i32) -> (i32, i32) {
    %c0_i32 = arith.constant 0 : i32
    %c0_i32_0 = arith.constant 0 : i32
    return %arg0, %c0_i32 : i32, i32
  }
}

module attributes {stable_mosaic.version = 11 : i64} {
  func.func @_matmul_bias_act_kernel(%arg0: i32, %arg1: memref<72x256xf32, #tpu.memory_space<vmem>>, %arg2: memref<256x64xf32, #tpu.memory_space<vmem>>, %arg3: memref<1x64xf32, #tpu.memory_space<vmem>>, %arg4: memref<72x64xf32, #tpu.memory_space<vmem>>) attributes {dimension_semantics = [#tpu.dimension_semantics<parallel>], iteration_bounds = array<i64: 1>, scalar_prefetch = 0 : i64, scratch_operands = 0 : i64, tpu.core_type = #tpu.core_type<tc>, window_params = [{transform_indices = @transform_0, window_bounds = array<i64: 72, 256>}, {pipeline_mode = #tpu.pipeline_mode<synchronous>, transform_indices = @transform_1, window_bounds = array<i64: 256, 64>}, {pipeline_mode = #tpu.pipeline_mode<synchronous>, transform_indices = @transform_2, window_bounds = array<i64: 1, 64>}, {transform_indices = @transform_3, window_bounds = array<i64: 72, 64>}]} {
    %c0 = arith.constant 0 : index
    %c0_0 = arith.constant 0 : index
    %0 = vector.load %arg1[%c0, %c0_0] : memref<72x256xf32, #tpu.memory_space<vmem>>, vector<72x256xf32>
    %c0_1 = arith.constant 0 : index
    %c0_2 = arith.constant 0 : index
    %1 = vector.load %arg2[%c0_1, %c0_2] : memref<256x64xf32, #tpu.memory_space<vmem>>, vector<256x64xf32>
    %cst = arith.constant dense<0.000000e+00> : vector<72x64xf32>
    %2 = tpu.matmul %0, %1, %cst {dimension_numbers = #tpu.dot_dimension_numbers<[1], [0], [0], [1], [0, 0, 1, 1], [], []>} : vector<72x256xf32>, vector<256x64xf32>, vector<72x64xf32> -> vector<72x64xf32>
    %c0_3 = arith.constant 0 : index
    %c0_4 = arith.constant 0 : index
    %3 = vector.load %arg3[%c0_3, %c0_4] : memref<1x64xf32, #tpu.memory_space<vmem>>, vector<1x64xf32>
    %4 = vector.broadcast %3 : vector<1x64xf32> to vector<72x64xf32>
    %5 = arith.addf %2, %4 : vector<72x64xf32>
    %cst_5 = arith.constant 0.000000e+00 : f32
    %6 = vector.broadcast %cst_5 : f32 to vector<72x64xf32>
    %7 = arith.cmpf oge, %5, %6 : vector<72x64xf32>
    %cst_6 = arith.constant 1.000000e-01 : f32
    %8 = vector.broadcast %cst_6 : f32 to vector<72x64xf32>
    %9 = arith.mulf %8, %5 : vector<72x64xf32>
    %10 = arith.select %7, %5, %9 : vector<72x64xi1>, vector<72x64xf32>
    %c0_7 = arith.constant 0 : index
    %c0_8 = arith.constant 0 : index
    %11 = vector.load %arg4[%c0_7, %c0_8] : memref<72x64xf32, #tpu.memory_space<vmem>>, vector<72x64xf32>
    tpu.vector_store %arg4[%c0_7, %c0_8], %10 {strides = array<i32>} : memref<72x64xf32, #tpu.memory_space<vmem>>, vector<72x64xf32>,
    return
  }
  func.func @transform_0(%arg0: i32) -> (i32, i32) {
    %c0_i32 = arith.constant 0 : i32
    %c0_i32_0 = arith.constant 0 : i32
    return %arg0, %c0_i32 : i32, i32
  }
  func.func @transform_1(%arg0: i32) -> (i32, i32) {
    %c0_i32 = arith.constant 0 : i32
    %c0_i32_0 = arith.constant 0 : i32
    %c0_i32_1 = arith.constant 0 : i32
    return %c0_i32, %c0_i32_0 : i32, i32
  }
  func.func @transform_2(%arg0: i32) -> (i32, i32) {
    %c0_i32 = arith.constant 0 : i32
    %c0_i32_0 = arith.constant 0 : i32
    %c0_i32_1 = arith.constant 0 : i32
    return %c0_i32, %c0_i32_0 : i32, i32
  }
  func.func @transform_3(%arg0: i32) -> (i32, i32) {
    %c0_i32 = arith.constant 0 : i32
    %c0_i32_0 = arith.constant 0 : i32
    return %arg0, %c0_i32 : i32, i32
  }
}

module attributes {stable_mosaic.version = 11 : i64} {
  func.func @_matmul_bias_act_kernel(%arg0: i32, %arg1: memref<392x256xf32, #tpu.memory_space<vmem>>, %arg2: memref<256x32xf32, #tpu.memory_space<vmem>>, %arg3: memref<1x32xf32, #tpu.memory_space<vmem>>, %arg4: memref<392x32xf32, #tpu.memory_space<vmem>>) attributes {dimension_semantics = [#tpu.dimension_semantics<parallel>], iteration_bounds = array<i64: 1>, scalar_prefetch = 0 : i64, scratch_operands = 0 : i64, tpu.core_type = #tpu.core_type<tc>, window_params = [{transform_indices = @transform_0, window_bounds = array<i64: 392, 256>}, {pipeline_mode = #tpu.pipeline_mode<synchronous>, transform_indices = @transform_1, window_bounds = array<i64: 256, 32>}, {pipeline_mode = #tpu.pipeline_mode<synchronous>, transform_indices = @transform_2, window_bounds = array<i64: 1, 32>}, {transform_indices = @transform_3, window_bounds = array<i64: 392, 32>}]} {
    %c0 = arith.constant 0 : index
    %c0_0 = arith.constant 0 : index
    %0 = vector.load %arg1[%c0, %c0_0] : memref<392x256xf32, #tpu.memory_space<vmem>>, vector<392x256xf32>
    %c0_1 = arith.constant 0 : index
    %c0_2 = arith.constant 0 : index
    %1 = vector.load %arg2[%c0_1, %c0_2] : memref<256x32xf32, #tpu.memory_space<vmem>>, vector<256x32xf32>
    %cst = arith.constant dense<0.000000e+00> : vector<392x32xf32>
    %2 = tpu.matmul %0, %1, %cst {dimension_numbers = #tpu.dot_dimension_numbers<[1], [0], [0], [1], [0, 0, 1, 1], [], []>} : vector<392x256xf32>, vector<256x32xf32>, vector<392x32xf32> -> vector<392x32xf32>
    %c0_3 = arith.constant 0 : index
    %c0_4 = arith.constant 0 : index
    %3 = vector.load %arg3[%c0_3, %c0_4] : memref<1x32xf32, #tpu.memory_space<vmem>>, vector<1x32xf32>
    %4 = vector.broadcast %3 : vector<1x32xf32> to vector<392x32xf32>
    %5 = arith.addf %2, %4 : vector<392x32xf32>
    %cst_5 = arith.constant 0.000000e+00 : f32
    %6 = vector.broadcast %cst_5 : f32 to vector<392x32xf32>
    %7 = arith.cmpf oge, %5, %6 : vector<392x32xf32>
    %cst_6 = arith.constant 1.000000e-01 : f32
    %8 = vector.broadcast %cst_6 : f32 to vector<392x32xf32>
    %9 = arith.mulf %8, %5 : vector<392x32xf32>
    %10 = arith.select %7, %5, %9 : vector<392x32xi1>, vector<392x32xf32>
    %c0_7 = arith.constant 0 : index
    %c0_8 = arith.constant 0 : index
    %11 = vector.load %arg4[%c0_7, %c0_8] : memref<392x32xf32, #tpu.memory_space<vmem>>, vector<392x32xf32>
    tpu.vector_store %arg4[%c0_7, %c0_8], %10 {strides = array<i32>} : memref<392x32xf32, #tpu.memory_space<vmem>>, vector<392x32xf32>,
    return
  }
  func.func @transform_0(%arg0: i32) -> (i32, i32) {
    %c0_i32 = arith.constant 0 : i32
    %c0_i32_0 = arith.constant 0 : i32
    return %arg0, %c0_i32 : i32, i32
  }
  func.func @transform_1(%arg0: i32) -> (i32, i32) {
    %c0_i32 = arith.constant 0 : i32
    %c0_i32_0 = arith.constant 0 : i32
    %c0_i32_1 = arith.constant 0 : i32
    return %c0_i32, %c0_i32_0 : i32, i32
  }
  func.func @transform_2(%arg0: i32) -> (i32, i32) {
    %c0_i32 = arith.constant 0 : i32
    %c0_i32_0 = arith.constant 0 : i32
    %c0_i32_1 = arith.constant 0 : i32
    return %c0_i32, %c0_i32_0 : i32, i32
  }
  func.func @transform_3(%arg0: i32) -> (i32, i32) {
    %c0_i32 = arith.constant 0 : i32
    %c0_i32_0 = arith.constant 0 : i32
    return %arg0, %c0_i32 : i32, i32
  }
}

module attributes {stable_mosaic.version = 11 : i64} {
  func.func @_matmul_bias_act_kernel(%arg0: i32, %arg1: memref<392x288xf32, #tpu.memory_space<vmem>>, %arg2: memref<288x128xf32, #tpu.memory_space<vmem>>, %arg3: memref<1x128xf32, #tpu.memory_space<vmem>>, %arg4: memref<392x128xf32, #tpu.memory_space<vmem>>) attributes {dimension_semantics = [#tpu.dimension_semantics<parallel>], iteration_bounds = array<i64: 4>, scalar_prefetch = 0 : i64, scratch_operands = 0 : i64, tpu.core_type = #tpu.core_type<tc>, window_params = [{transform_indices = @transform_0, window_bounds = array<i64: 392, 288>}, {pipeline_mode = #tpu.pipeline_mode<synchronous>, transform_indices = @transform_1, window_bounds = array<i64: 288, 128>}, {pipeline_mode = #tpu.pipeline_mode<synchronous>, transform_indices = @transform_2, window_bounds = array<i64: 1, 128>}, {transform_indices = @transform_3, window_bounds = array<i64: 392, 128>}]} {
    %c0 = arith.constant 0 : index
    %c0_0 = arith.constant 0 : index
    %0 = vector.load %arg1[%c0, %c0_0] : memref<392x288xf32, #tpu.memory_space<vmem>>, vector<392x288xf32>
    %c0_1 = arith.constant 0 : index
    %c0_2 = arith.constant 0 : index
    %1 = vector.load %arg2[%c0_1, %c0_2] : memref<288x128xf32, #tpu.memory_space<vmem>>, vector<288x128xf32>
    %cst = arith.constant dense<0.000000e+00> : vector<392x128xf32>
    %2 = tpu.matmul %0, %1, %cst {dimension_numbers = #tpu.dot_dimension_numbers<[1], [0], [0], [1], [0, 0, 1, 1], [], []>} : vector<392x288xf32>, vector<288x128xf32>, vector<392x128xf32> -> vector<392x128xf32>
    %c0_3 = arith.constant 0 : index
    %c0_4 = arith.constant 0 : index
    %3 = vector.load %arg3[%c0_3, %c0_4] : memref<1x128xf32, #tpu.memory_space<vmem>>, vector<1x128xf32>
    %4 = vector.broadcast %3 : vector<1x128xf32> to vector<392x128xf32>
    %5 = arith.addf %2, %4 : vector<392x128xf32>
    %c0_5 = arith.constant 0 : index
    %c0_6 = arith.constant 0 : index
    %6 = vector.load %arg4[%c0_5, %c0_6] : memref<392x128xf32, #tpu.memory_space<vmem>>, vector<392x128xf32>
    tpu.vector_store %arg4[%c0_5, %c0_6], %5 {strides = array<i32>} : memref<392x128xf32, #tpu.memory_space<vmem>>, vector<392x128xf32>,
    return
  }
  func.func @transform_0(%arg0: i32) -> (i32, i32) {
    %c0_i32 = arith.constant 0 : i32
    %c0_i32_0 = arith.constant 0 : i32
    return %arg0, %c0_i32 : i32, i32
  }
  func.func @transform_1(%arg0: i32) -> (i32, i32) {
    %c0_i32 = arith.constant 0 : i32
    %c0_i32_0 = arith.constant 0 : i32
    %c0_i32_1 = arith.constant 0 : i32
    return %c0_i32, %c0_i32_0 : i32, i32
  }
  func.func @transform_2(%arg0: i32) -> (i32, i32) {
    %c0_i32 = arith.constant 0 : i32
    %c0_i32_0 = arith.constant 0 : i32
    %c0_i32_1 = arith.constant 0 : i32
    return %c0_i32, %c0_i32_0 : i32, i32
  }
  func.func @transform_3(%arg0: i32) -> (i32, i32) {
    %c0_i32 = arith.constant 0 : i32
    %c0_i32_0 = arith.constant 0 : i32
    return %arg0, %c0_i32 : i32, i32
  }
}

</mosaic_0001>

<llo_original>
// kernel: gan_net_forward.14
$region0: #{gan_net_forward.14}
  #allocation0 [shape = 'u32[]', space=smem, size = 0x4, offset = 0x4, fixed_abs, tag = 'smem constant byte address 0x4 - core index']
  #allocation1 [shape = 'u32[144,128]{1,0:T(1,128)}', space=vmem, size = 0x12000, scoped, tag = 'internal scratch']
  %s0 = inlined_call_operand.vmem [shape: f32[8,11], index: 0, kind: input, shape index: {}]
  %s1 = inlined_call_operand.hbm [shape: f32[11,128], index: 1, kind: input, shape index: {}]
  %s2 = inlined_call_operand.hbm [shape: f32[1,128], index: 2, kind: input, shape index: {}]
  %s3 = inlined_call_operand.vmem [shape: f32[128,576], index: 3, kind: input, shape index: {}]
  %s4 = inlined_call_operand.hbm [shape: f32[1,576], index: 4, kind: input, shape index: {}]
  %s5 = inlined_call_operand.vmem [shape: f32[8,576], index: 5, kind: output, shape index: {}]
  %s6 = sld [smem:[#allocation0]]
  $region42: #{gan_net_forward.14} parent=0
    _
  %s8 = ssub.s32 1, %s6
  %s9 = scalar_select 0, %s8, %s6
  $region1: #{gan_net_forward.14} parent=0
    #allocation2 [shape = 'u8[8192]{0}', space=vmem, size = 0x2000, scoped, tag = 'input window, operand 1, single buffered']
    #allocation3 [shape = 's32[1]{0}', space=sflag, size = 0x4, scoped, tag = 'scoped memory for gan_net_forward.14']
    #allocation4 [shape = 'u8[512]{0}', space=vmem, size = 0x400, scoped, tag = 'input window, operand 2, single buffered']
    #allocation5 [shape = 's32[1]{0}', space=sflag, size = 0x4, scoped, tag = 'scoped memory for gan_net_forward.14']
    #allocation6 [shape = 'u8[2560]{0}', space=vmem, size = 0xc00, scoped, tag = 'input window, operand 4, single buffered']
    %10 = vsyncpa [#allocation3], 0
    %11 = vsyncpa [#allocation5], 0
    // Predicated region
    $region2: #{gan_net_forward.14} parent=1 // pred_check
      _
    $region3: #{gan_net_forward.14} parent=1 // pred_check_branch
      %13 = sbr.rel (0) target = $region5
    $region4: #{gan_net_forward.14} parent=1 // pred_region
      _
    $region5: #{gan_net_forward.14} parent=1 // pred_fallthru
      _
    // Predicated region
    $region6: #{gan_net_forward.14} parent=1 // pred_check
      _
    $region7: #{gan_net_forward.14} parent=1 // pred_check_branch
      %15 = sbr.rel (0) target = $region9
    $region8: #{gan_net_forward.14} parent=1 // pred_region
      %s17 = ssub.s32 256, 256
      %18 = vsyncadd [#allocation3], %s17
      %s19 = sshll.u32 [#allocation2], 4
      %s20 = int_to_ptr.vmem [resolvable:$true] %s19
      %25 = dma.hbm_to_vmem [thread:$0]  %s1, 256, %s20, [#allocation3], 128, 128, 8
    $region9: #{gan_net_forward.14} parent=1 // pred_fallthru
      _
    // Predicated region
    $region10: #{gan_net_forward.14} parent=1 // pred_check
      _
    $region11: #{gan_net_forward.14} parent=1 // pred_check_branch
      %27 = sbr.rel (0) target = $region13
    $region12: #{gan_net_forward.14} parent=1 // pred_region
      %s29 = ssub.s32 16, 16
      %30 = vsyncadd [#allocation5], %s29
      %s32 = sshll.u32 [#allocation4], 4
      %s33 = int_to_ptr.vmem [resolvable:$true] %s32
      %35 = dma.hbm_to_vmem [thread:$0]  %s2, 16, %s33, [#allocation5]
    $region13: #{gan_net_forward.14} parent=1 // pred_fallthru
      _
    // Predicated region
    $region14: #{gan_net_forward.14} parent=1 // pred_check
      _
    $region15: #{gan_net_forward.14} parent=1 // pred_check_branch
      %37 = sbr.rel (0) target = $region17
    $region16: #{gan_net_forward.14} parent=1 // pred_region
      _
    $region17: #{gan_net_forward.14} parent=1 // pred_fallthru
      _
    // Predicated region
    $region18: #{gan_net_forward.14} parent=1 // pred_check
      _
    $region19: #{gan_net_forward.14} parent=1 // pred_check_branch
      %39 = sbr.rel (0) target = $region21
    $region20: #{gan_net_forward.14} parent=1 // pred_region
      %s41 = ssub.s32 80, 80
      %42 = vsyncadd [#allocation5], %s41
      %s44 = sshll.u32 [#allocation6], 4
      %s45 = int_to_ptr.vmem [resolvable:$true] %s44
      %47 = dma.hbm_to_vmem [thread:$0]  %s4, 80, %s45, [#allocation5]
    $region21: #{gan_net_forward.14} parent=1 // pred_fallthru
      _
    // Predicated region
    $region22: #{gan_net_forward.14} parent=1 // pred_check
      _
    $region23: #{gan_net_forward.14} parent=1 // pred_check_branch
      %49 = sbr.rel (0) target = $region25
    $region24: #{gan_net_forward.14} parent=1 // pred_region
      %50 = dma.done [#allocation3], 256
    $region25: #{gan_net_forward.14} parent=1 // pred_fallthru
      _
    // Predicated region
    $region26: #{gan_net_forward.14} parent=1 // pred_check
      _
    $region27: #{gan_net_forward.14} parent=1 // pred_check_branch
      %52 = sbr.rel (0) target = $region29
    $region28: #{gan_net_forward.14} parent=1 // pred_region
      %53 = dma.done [#allocation5], 16
    $region29: #{gan_net_forward.14} parent=1 // pred_fallthru
      _
    // Predicated region
    $region30: #{gan_net_forward.14} parent=1 // pred_check
      _
    $region31: #{gan_net_forward.14} parent=1 // pred_check_branch
      %55 = sbr.rel (0) target = $region33
    $region32: #{gan_net_forward.14} parent=1 // pred_region
      %56 = dma.done [#allocation5], 80
    $region33: #{gan_net_forward.14} parent=1 // pred_fallthru
      _
    %v57 = vld [vmem:[%s0] sm:$0xff]
    %v58 = vld [vmem:[#allocation2] sm:$0xff]
    %v59 = vld [vmem:[#allocation2 + $0x8] sm:$0x7]
    %v60 = vld [vmem:[#allocation4] sm:$0x1]
    %v62 = vlaneseq
    %v63 = vshrl.u32 %v62, 7
    %v64 = vsub.s32 0, %v63
    %v65 = vrot.slane %v60, %v64
    %vm67 = vcmask 89088
    %v69 = vsel %vm67, %v57, 0
    %vm71 = vcmask 1042432
    %v73 = vsel %vm71, %v59, 0
    %75 = vmatprep.subr.mxu0 0.0
    %76 = vmatpush1.msra.mxu0 %v58
    %77 = vmatprep.subr.mxu0 0.0
    %78 = vmatpush1.msra.mxu0 %v73
    %79 = vmatprep.subr.mxu0 0.0
    %80 = vmatpush1.msra.mxu0 0.0
    %81 = vmatprep.subr.mxu0 0.0
    %82 = vmatpush1.msra.mxu0 0.0
    %83 = vmatprep.subr.mxu0 0.0
    %84 = vmatpush1.msra.mxu0 0.0
    %85 = vmatprep.subr.mxu0 0.0
    %86 = vmatpush1.msra.mxu0 0.0
    %87 = vmatprep.subr.mxu0 0.0
    %88 = vmatpush1.msra.mxu0 0.0
    %89 = vmatprep.subr.mxu0 0.0
    %90 = vmatpush1.msra.mxu0 0.0
    %91 = vmatprep.subr.mxu0 0.0
    %92 = vmatpush1.msra.mxu0 0.0
    %93 = vmatprep.subr.mxu0 0.0
    %94 = vmatpush1.msra.mxu0 0.0
    %95 = vmatprep.subr.mxu0 0.0
    %96 = vmatpush1.msra.mxu0 0.0
    %97 = vmatprep.subr.mxu0 0.0
    %98 = vmatpush1.msra.mxu0 0.0
    %99 = vmatprep.subr.mxu0 0.0
    %100 = vmatpush1.msra.mxu0 0.0
    %101 = vmatprep.subr.mxu0 0.0
    %102 = vmatpush1.msra.mxu0 0.0
    %103 = vmatprep.subr.mxu0 0.0
    %104 = vmatpush1.msra.mxu0 0.0
    %105 = vmatprep.subr.mxu0 0.0
    %106 = vmatpush1.msra.mxu0 0.0
    %107 = vmatprep.subr.mxu0 0.0
    %108 = vmatpush1.msra.mxu0 0.0
    %109 = vmatprep.subr.mxu0 0.0
    %110 = vmatpush1.msra.mxu0 0.0
    %111 = vmatprep.subr.mxu0 0.0
    %112 = vmatpush1.msra.mxu0 0.0
    %113 = vmatprep.subr.mxu0 0.0
    %114 = vmatpush1.msra.mxu0 0.0
    %115 = vmatprep.subr.mxu0 0.0
    %116 = vmatpush1.msra.mxu0 0.0
    %117 = vmatprep.subr.mxu0 0.0
    %118 = vmatpush1.msra.mxu0 0.0
    %119 = vmatprep.subr.mxu0 0.0
    %120 = vmatpush1.msra.mxu0 0.0
    %121 = vmatprep.subr.mxu0 0.0
    %122 = vmatpush1.msra.mxu0 0.0
    %123 = vmatprep.subr.mxu0 0.0
    %124 = vmatpush1.msra.mxu0 0.0
    %125 = vmatprep.subr.mxu0 0.0
    %126 = vmatpush1.msra.mxu0 0.0
    %127 = vmatprep.subr.mxu0 0.0
    %128 = vmatpush1.msra.mxu0 0.0
    %129 = vmatprep.subr.mxu0 0.0
    %130 = vmatpush1.msra.mxu0 0.0
    %131 = vmatprep.subr.mxu0 0.0
    %132 = vmatpush1.msra.mxu0 0.0
    %133 = vmatprep.subr.mxu0 0.0
    %134 = vmatpush1.msra.mxu0 0.0
    %135 = vmatprep.subr.mxu0 0.0
    %136 = vmatpush1.msra.mxu0 0.0
    %137 = vmatprep.subr.mxu0 0.0
    %138 = vmatpush1.msra.mxu0 0.0
    %139 = vmatprep.mubr.f32.mxu0 0.0
    %140 = vmatmul.mubr.f32.gmra.mrb[0].mxu0 %v69
    %v141 = vpop.f32.mrb[0].mxu0
    %v142 = vadd.f32 %v65, %v141
    %v143 = vpop.f32.mrb[0].mxu0
    %144 = vdwg.mxu0
    %vm145 = vcmp.ge.f32.partialorder %v142, 0.0
    %v146 = vmul.f32 %v142, 0.1
    %v147 = vsel %vm145, %v142, %v146
    %v148 = vld [vmem:[%s3] sm:$0xff]
    %v149 = vld [vmem:[%s3 + $0x8] sm:$0xff]
    %v150 = vld [vmem:[%s3 + $0x10] sm:$0xff]
    %v151 = vld [vmem:[%s3 + $0x18] sm:$0xff]
    %v152 = vld [vmem:[%s3 + $0x20] sm:$0xff]
    %v153 = vld [vmem:[%s3 + $0x28] sm:$0xff]
    %v154 = vld [vmem:[%s3 + $0x30] sm:$0xff]
    %v155 = vld [vmem:[%s3 + $0x38] sm:$0xff]
    %v156 = vld [vmem:[%s3 + $0x40] sm:$0xff]
    %v157 = vld [vmem:[%s3 + $0x48] sm:$0xff]
    %v158 = vld [vmem:[%s3 + $0x50] sm:$0xff]
    %v159 = vld [vmem:[%s3 + $0x58] sm:$0xff]
    %v160 = vld [vmem:[%s3 + $0x60] sm:$0xff]
    %v161 = vld [vmem:[%s3 + $0x68] sm:$0xff]
    %v162 = vld [vmem:[%s3 + $0x70] sm:$0xff]
    %v163 = vld [vmem:[%s3 + $0x78] sm:$0xff]
    %v164 = vld [vmem:[%s3 + $0x80] sm:$0xff]
    %v165 = vld [vmem:[%s3 + $0x88] sm:$0xff]
    %v166 = vld [vmem:[%s3 + $0x90] sm:$0xff]
    %v167 = vld [vmem:[%s3 + $0x98] sm:$0xff]
    %v168 = vld [vmem:[%s3 + $0xa0] sm:$0xff]
    %v169 = vld [vmem:[%s3 + $0xa8] sm:$0xff]
    %v170 = vld [vmem:[%s3 + $0xb0] sm:$0xff]
    %v171 = vld [vmem:[%s3 + $0xb8] sm:$0xff]
    %v172 = vld [vmem:[%s3 + $0xc0] sm:$0xff]
    %v173 = vld [vmem:[%s3 + $0xc8] sm:$0xff]
    %v174 = vld [vmem:[%s3 + $0xd0] sm:$0xff]
    %v175 = vld [vmem:[%s3 + $0xd8] sm:$0xff]
    %v176 = vld [vmem:[%s3 + $0xe0] sm:$0xff]
    %v177 = vld [vmem:[%s3 + $0xe8] sm:$0xff]
    %v178 = vld [vmem:[%s3 + $0xf0] sm:$0xff]
    %v179 = vld [vmem:[%s3 + $0xf8] sm:$0xff]
    %v180 = vld [vmem:[%s3 + $0x100] sm:$0xff]
    %v181 = vld [vmem:[%s3 + $0x108] sm:$0xff]
    %v182 = vld [vmem:[%s3 + $0x110] sm:$0xff]
    %v183 = vld [vmem:[%s3 + $0x118] sm:$0xff]
    %v184 = vld [vmem:[%s3 + $0x120] sm:$0xff]
    %v185 = vld [vmem:[%s3 + $0x128] sm:$0xff]
    %v186 = vld [vmem:[%s3 + $0x130] sm:$0xff]
    %v187 = vld [vmem:[%s3 + $0x138] sm:$0xff]
    %v188 = vld [vmem:[%s3 + $0x140] sm:$0xff]
    %v189 = vld [vmem:[%s3 + $0x148] sm:$0xff]
    %v190 = vld [vmem:[%s3 + $0x150] sm:$0xff]
    %v191 = vld [vmem:[%s3 + $0x158] sm:$0xff]
    %v192 = vld [vmem:[%s3 + $0x160] sm:$0xff]
    %v193 = vld [vmem:[%s3 + $0x168] sm:$0xff]
    %v194 = vld [vmem:[%s3 + $0x170] sm:$0xff]
    %v195 = vld [vmem:[%s3 + $0x178] sm:$0xff]
    %v196 = vld [vmem:[%s3 + $0x180] sm:$0xff]
    %v197 = vld [vmem:[%s3 + $0x188] sm:$0xff]
    %v198 = vld [vmem:[%s3 + $0x190] sm:$0xff]
    %v199 = vld [vmem:[%s3 + $0x198] sm:$0xff]
    %v200 = vld [vmem:[%s3 + $0x1a0] sm:$0xff]
    %v201 = vld [vmem:[%s3 + $0x1a8] sm:$0xff]
    %v202 = vld [vmem:[%s3 + $0x1b0] sm:$0xff]
    %v203 = vld [vmem:[%s3 + $0x1b8] sm:$0xff]
    %v204 = vld [vmem:[%s3 + $0x1c0] sm:$0xff]
    %v205 = vld [vmem:[%s3 + $0x1c8] sm:$0xff]
    %v206 = vld [vmem:[%s3 + $0x1d0] sm:$0xff]
    %v207 = vld [vmem:[%s3 + $0x1d8] sm:$0xff]
    %v208 = vld [vmem:[%s3 + $0x1e0] sm:$0xff]
    %v209 = vld [vmem:[%s3 + $0x1e8] sm:$0xff]
    %v210 = vld [vmem:[%s3 + $0x1f0] sm:$0xff]
    %v211 = vld [vmem:[%s3 + $0x1f8] sm:$0xff]
    %v212 = vld [vmem:[%s3 + $0x200] sm:$0xff]
    %v213 = vld [vmem:[%s3 + $0x208] sm:$0xff]
    %v214 = vld [vmem:[%s3 + $0x210] sm:$0xff]
    %v215 = vld [vmem:[%s3 + $0x218] sm:$0xff]
    %v216 = vld [vmem:[%s3 + $0x220] sm:$0xff]
    %v217 = vld [vmem:[%s3 + $0x228] sm:$0xff]
    %v218 = vld [vmem:[%s3 + $0x230] sm:$0xff]
    %v219 = vld [vmem:[%s3 + $0x238] sm:$0xff]
    %v220 = vld [vmem:[%s3 + $0x240] sm:$0xff]
    %v221 = vld [vmem:[%s3 + $0x248] sm:$0xff]
    %v222 = vld [vmem:[%s3 + $0x250] sm:$0xff]
    %v223 = vld [vmem:[%s3 + $0x258] sm:$0xff]
    %v224 = vld [vmem:[%s3 + $0x260] sm:$0xff]
    %v225 = vld [vmem:[%s3 + $0x268] sm:$0xff]
    %v226 = vld [vmem:[%s3 + $0x270] sm:$0xff]
    %v227 = vld [vmem:[%s3 + $0x278] sm:$0xff]
    %v228 = vld [vmem:[#allocation6] sm:$0x1f]
    %v230 = vlaneseq
    %v231 = vshrl.u32 %v230, 7
    %v232 = vsub.s32 0, %v231
    %v233 = vrot.slane %v228, %v232
    %v234 = vlaneseq
    %v235 = vshrl.u32 %v234, 7
    %v236 = vsub.s32 1, %v235
    %v237 = vrot.slane %v228, %v236
    %v238 = vlaneseq
    %v239 = vshrl.u32 %v238, 7
    %v240 = vsub.s32 2, %v239
    %v241 = vrot.slane %v228, %v240
    %v242 = vlaneseq
    %v243 = vshrl.u32 %v242, 7
    %v244 = vsub.s32 3, %v243
    %v245 = vrot.slane %v228, %v244
    %v246 = vlaneseq
    %v247 = vshrl.u32 %v246, 7
    %v248 = vsub.s32 4, %v247
    %v249 = vrot.slane %v228, %v248
    %255 = vmatprep.subr.mxu0 %v149
    %256 = vmatpush1.msra.mxu0 %v148
    %257 = vmatprep.subr.mxu0 %v154
    %258 = vmatpush1.msra.mxu0 %v153
    %259 = vmatprep.subr.mxu0 %v159
    %260 = vmatpush1.msra.mxu0 %v158
    %261 = vmatprep.subr.mxu0 %v164
    %262 = vmatpush1.msra.mxu0 %v163
    %263 = vmatprep.subr.mxu0 %v169
    %264 = vmatpush1.msra.mxu0 %v168
    %265 = vmatprep.subr.mxu0 %v174
    %266 = vmatpush1.msra.mxu0 %v173
    %267 = vmatprep.subr.mxu0 %v179
    %268 = vmatpush1.msra.mxu0 %v178
    %269 = vmatprep.subr.mxu0 %v184
    %270 = vmatpush1.msra.mxu0 %v183
    %271 = vmatprep.subr.mxu0 %v189
    %272 = vmatpush1.msra.mxu0 %v188
    %273 = vmatprep.subr.mxu0 %v194
    %274 = vmatpush1.msra.mxu0 %v193
    %275 = vmatprep.subr.mxu0 %v199
    %276 = vmatpush1.msra.mxu0 %v198
    %277 = vmatprep.subr.mxu0 %v204
    %278 = vmatpush1.msra.mxu0 %v203
    %279 = vmatprep.subr.mxu0 %v209
    %280 = vmatpush1.msra.mxu0 %v208
    %281 = vmatprep.subr.mxu0 %v214
    %282 = vmatpush1.msra.mxu0 %v213
    %283 = vmatprep.subr.mxu0 %v219
    %284 = vmatpush1.msra.mxu0 %v218
    %285 = vmatprep.subr.mxu0 %v224
    %286 = vmatpush1.msra.mxu0 %v223
    %287 = vmatprep.subr.mxu0 0.0
    %288 = vmatpush1.msra.mxu0 0.0
    %289 = vmatprep.subr.mxu0 0.0
    %290 = vmatpush1.msra.mxu0 0.0
    %291 = vmatprep.subr.mxu0 0.0
    %292 = vmatpush1.msra.mxu0 0.0
    %293 = vmatprep.subr.mxu0 0.0
    %294 = vmatpush1.msra.mxu0 0.0
    %295 = vmatprep.subr.mxu0 0.0
    %296 = vmatpush1.msra.mxu0 0.0
    %297 = vmatprep.subr.mxu0 0.0
    %298 = vmatpush1.msra.mxu0 0.0
    %299 = vmatprep.subr.mxu0 0.0
    %300 = vmatpush1.msra.mxu0 0.0
    %301 = vmatprep.subr.mxu0 0.0
    %302 = vmatpush1.msra.mxu0 0.0
    %303 = vmatprep.subr.mxu0 0.0
    %304 = vmatpush1.msra.mxu0 0.0
    %305 = vmatprep.subr.mxu0 0.0
    %306 = vmatpush1.msra.mxu0 0.0
    %307 = vmatprep.subr.mxu0 0.0
    %308 = vmatpush1.msra.mxu0 0.0
    %309 = vmatprep.subr.mxu0 0.0
    %310 = vmatpush1.msra.mxu0 0.0
    %311 = vmatprep.subr.mxu0 0.0
    %312 = vmatpush1.msra.mxu0 0.0
    %313 = vmatprep.subr.mxu0 0.0
    %314 = vmatpush1.msra.mxu0 0.0
    %315 = vmatprep.subr.mxu0 0.0
    %316 = vmatpush1.msra.mxu0 0.0
    %317 = vmatprep.subr.mxu0 0.0
    %318 = vmatpush1.msra.mxu0 0.0
    %319 = vmatprep.mubr.f32.mxu0 0.0
    %320 = vmatmul.mubr.f32.gmra.mrb[0].mxu0 %v147
    %v321 = vpop.f32.mrb[0].mxu0
    %v322 = vadd.f32 %v233, %v321
    %v323 = vpop.f32.mrb[0].mxu0
    %v324 = vadd.f32 %v237, %v323
    %325 = vdwg.mxu0
    %326 = vmatprep.subr.mxu0 %v151
    %327 = vmatpush1.msra.mxu0 %v150
    %328 = vmatprep.subr.mxu0 %v156
    %329 = vmatpush1.msra.mxu0 %v155
    %330 = vmatprep.subr.mxu0 %v161
    %331 = vmatpush1.msra.mxu0 %v160
    %332 = vmatprep.subr.mxu0 %v166
    %333 = vmatpush1.msra.mxu0 %v165
    %334 = vmatprep.subr.mxu0 %v171
    %335 = vmatpush1.msra.mxu0 %v170
    %336 = vmatprep.subr.mxu0 %v176
    %337 = vmatpush1.msra.mxu0 %v175
    %338 = vmatprep.subr.mxu0 %v181
    %339 = vmatpush1.msra.mxu0 %v180
    %340 = vmatprep.subr.mxu0 %v186
    %341 = vmatpush1.msra.mxu0 %v185
    %342 = vmatprep.subr.mxu0 %v191
    %343 = vmatpush1.msra.mxu0 %v190
    %344 = vmatprep.subr.mxu0 %v196
    %345 = vmatpush1.msra.mxu0 %v195
    %346 = vmatprep.subr.mxu0 %v201
    %347 = vmatpush1.msra.mxu0 %v200
    %348 = vmatprep.subr.mxu0 %v206
    %349 = vmatpush1.msra.mxu0 %v205
    %350 = vmatprep.subr.mxu0 %v211
    %351 = vmatpush1.msra.mxu0 %v210
    %352 = vmatprep.subr.mxu0 %v216
    %353 = vmatpush1.msra.mxu0 %v215
    %354 = vmatprep.subr.mxu0 %v221
    %355 = vmatpush1.msra.mxu0 %v220
    %356 = vmatprep.subr.mxu0 %v226
    %357 = vmatpush1.msra.mxu0 %v225
    %358 = vmatprep.subr.mxu0 0.0
    %359 = vmatpush1.msra.mxu0 0.0
    %360 = vmatprep.subr.mxu0 0.0
    %361 = vmatpush1.msra.mxu0 0.0
    %362 = vmatprep.subr.mxu0 0.0
    %363 = vmatpush1.msra.mxu0 0.0
    %364 = vmatprep.subr.mxu0 0.0
    %365 = vmatpush1.msra.mxu0 0.0
    %366 = vmatprep.subr.mxu0 0.0
    %367 = vmatpush1.msra.mxu0 0.0
    %368 = vmatprep.subr.mxu0 0.0
    %369 = vmatpush1.msra.mxu0 0.0
    %370 = vmatprep.subr.mxu0 0.0
    %371 = vmatpush1.msra.mxu0 0.0
    %372 = vmatprep.subr.mxu0 0.0
    %373 = vmatpush1.msra.mxu0 0.0
    %374 = vmatprep.subr.mxu0 0.0
    %375 = vmatpush1.msra.mxu0 0.0
    %376 = vmatprep.subr.mxu0 0.0
    %377 = vmatpush1.msra.mxu0 0.0
    %378 = vmatprep.subr.mxu0 0.0
    %379 = vmatpush1.msra.mxu0 0.0
    %380 = vmatprep.subr.mxu0 0.0
    %381 = vmatpush1.msra.mxu0 0.0
    %382 = vmatprep.subr.mxu0 0.0
    %383 = vmatpush1.msra.mxu0 0.0
    %384 = vmatprep.subr.mxu0 0.0
    %385 = vmatpush1.msra.mxu0 0.0
    %386 = vmatprep.subr.mxu0 0.0
    %387 = vmatpush1.msra.mxu0 0.0
    %388 = vmatprep.subr.mxu0 0.0
    %389 = vmatpush1.msra.mxu0 0.0
    %390 = vmatprep.mubr.f32.mxu0 0.0
    %391 = vmatmul.mubr.f32.gmra.mrb[0].mxu0 %v147
    %v392 = vpop.f32.mrb[0].mxu0
    %v393 = vadd.f32 %v241, %v392
    %v394 = vpop.f32.mrb[0].mxu0
    %v395 = vadd.f32 %v245, %v394
    %396 = vdwg.mxu0
    %397 = vmatprep.subr.mxu0 0.0
    %398 = vmatpush1.msra.mxu0 %v152
    %399 = vmatprep.subr.mxu0 0.0
    %400 = vmatpush1.msra.mxu0 %v157
    %401 = vmatprep.subr.mxu0 0.0
    %402 = vmatpush1.msra.mxu0 %v162
    %403 = vmatprep.subr.mxu0 0.0
    %404 = vmatpush1.msra.mxu0 %v167
    %405 = vmatprep.subr.mxu0 0.0
    %406 = vmatpush1.msra.mxu0 %v172
    %407 = vmatprep.subr.mxu0 0.0
    %408 = vmatpush1.msra.mxu0 %v177
    %409 = vmatprep.subr.mxu0 0.0
    %410 = vmatpush1.msra.mxu0 %v182
    %411 = vmatprep.subr.mxu0 0.0
    %412 = vmatpush1.msra.mxu0 %v187
    %413 = vmatprep.subr.mxu0 0.0
    %414 = vmatpush1.msra.mxu0 %v192
    %415 = vmatprep.subr.mxu0 0.0
    %416 = vmatpush1.msra.mxu0 %v197
    %417 = vmatprep.subr.mxu0 0.0
    %418 = vmatpush1.msra.mxu0 %v202
    %419 = vmatprep.subr.mxu0 0.0
    %420 = vmatpush1.msra.mxu0 %v207
    %421 = vmatprep.subr.mxu0 0.0
    %422 = vmatpush1.msra.mxu0 %v212
    %423 = vmatprep.subr.mxu0 0.0
    %424 = vmatpush1.msra.mxu0 %v217
    %425 = vmatprep.subr.mxu0 0.0
    %426 = vmatpush1.msra.mxu0 %v222
    %427 = vmatprep.subr.mxu0 0.0
    %428 = vmatpush1.msra.mxu0 %v227
    %429 = vmatprep.subr.mxu0 0.0
    %430 = vmatpush1.msra.mxu0 0.0
    %431 = vmatprep.subr.mxu0 0.0
    %432 = vmatpush1.msra.mxu0 0.0
    %433 = vmatprep.subr.mxu0 0.0
    %434 = vmatpush1.msra.mxu0 0.0
    %435 = vmatprep.subr.mxu0 0.0
    %436 = vmatpush1.msra.mxu0 0.0
    %437 = vmatprep.subr.mxu0 0.0
    %438 = vmatpush1.msra.mxu0 0.0
    %439 = vmatprep.subr.mxu0 0.0
    %440 = vmatpush1.msra.mxu0 0.0
    %441 = vmatprep.subr.mxu0 0.0
    %442 = vmatpush1.msra.mxu0 0.0
    %443 = vmatprep.subr.mxu0 0.0
    %444 = vmatpush1.msra.mxu0 0.0
    %445 = vmatprep.subr.mxu0 0.0
    %446 = vmatpush1.msra.mxu0 0.0
    %447 = vmatprep.subr.mxu0 0.0
    %448 = vmatpush1.msra.mxu0 0.0
    %449 = vmatprep.subr.mxu0 0.0
    %450 = vmatpush1.msra.mxu0 0.0
    %451 = vmatprep.subr.mxu0 0.0
    %452 = vmatpush1.msra.mxu0 0.0
    %453 = vmatprep.subr.mxu0 0.0
    %454 = vmatpush1.msra.mxu0 0.0
    %455 = vmatprep.subr.mxu0 0.0
    %456 = vmatpush1.msra.mxu0 0.0
    %457 = vmatprep.subr.mxu0 0.0
    %458 = vmatpush1.msra.mxu0 0.0
    %459 = vmatprep.subr.mxu0 0.0
    %460 = vmatpush1.msra.mxu0 0.0
    %461 = vmatprep.mubr.f32.mxu0 0.0
    %462 = vmatmul.mubr.f32.gmra.mrb[0].mxu0 %v147
    %v463 = vpop.f32.mrb[0].mxu0
    %v464 = vadd.f32 %v249, %v463
    %v465 = vpop.f32.mrb[0].mxu0
    %466 = vdwg.mxu0
    %vm467 = vcmp.ge.f32.partialorder %v322, 0.0
    %vm468 = vcmp.ge.f32.partialorder %v324, 0.0
    %vm469 = vcmp.ge.f32.partialorder %v393, 0.0
    %vm470 = vcmp.ge.f32.partialorder %v395, 0.0
    %vm471 = vcmp.ge.f32.partialorder %v464, 0.0
    %v472 = vmul.f32 %v322, 0.1
    %v473 = vmul.f32 %v324, 0.1
    %v474 = vmul.f32 %v393, 0.1
    %v475 = vmul.f32 %v395, 0.1
    %v476 = vmul.f32 %v464, 0.1
    %v477 = vsel %vm467, %v322, %v472
    %v478 = vsel %vm468, %v324, %v473
    %v479 = vsel %vm469, %v393, %v474
    %v480 = vsel %vm470, %v395, %v475
    %v481 = vsel %vm471, %v464, %v476
    %482 = vst [vmem:[%s5] sm:$0xff] %v477
    %483 = vst [vmem:[%s5 + $0x8] sm:$0xff] %v478
    %484 = vst [vmem:[%s5 + $0x10] sm:$0xff] %v479
    %485 = vst [vmem:[%s5 + $0x18] sm:$0xff] %v480
    %vm486 = vcmask 523264
    %487 = vst.msk [vmem:[%s5 + $0x20] sm:$0xff] %vm486, %v481
    // Predicated region
    $region34: #{gan_net_forward.14} parent=1 // pred_check
      _
    $region35: #{gan_net_forward.14} parent=1 // pred_check_branch
      %489 = sbr.rel (0) target = $region37
    $region36: #{gan_net_forward.14} parent=1 // pred_region
      _
    $region37: #{gan_net_forward.14} parent=1 // pred_fallthru
      _
    // Predicated region
    $region38: #{gan_net_forward.14} parent=1 // pred_check
      _
    $region39: #{gan_net_forward.14} parent=1 // pred_check_branch
      %491 = sbr.rel (0) target = $region41
    $region40: #{gan_net_forward.14} parent=1 // pred_region
      _
    $region41: #{gan_net_forward.14} parent=1 // pred_fallthru
      _
    %492 = vsyncpa [#allocation3], 1
    %493 = vsyncpa [#allocation5], 1

// kernel: gan_net_forward.18
$region0: #{gan_net_forward.18}
  #allocation0 [shape = 'u32[]', space=smem, size = 0x4, offset = 0x4, fixed_abs, tag = 'smem constant byte address 0x4 - core index']
  #allocation1 [shape = 'u32[144,128]{1,0:T(1,128)}', space=vmem, size = 0x12000, scoped, tag = 'internal scratch']
  %s0 = inlined_call_operand.vmem [shape: f32[24,64], index: 0, kind: input, shape index: {}]
  %s1 = inlined_call_operand.vmem [shape: f32[64,64], index: 1, kind: input, shape index: {}]
  %s2 = inlined_call_operand.vmem [shape: f32[1,64], index: 2, kind: input, shape index: {}]
  %s3 = inlined_call_operand.vmem [shape: f32[24,64], index: 3, kind: output, shape index: {}]
  %s4 = sld [smem:[#allocation0]]
  $region22: #{gan_net_forward.18} parent=0
    _
  %s6 = ssub.s32 1, %s4
  %s7 = scalar_select 0, %s6, %s4
  // Predicated region
  $region2: #{gan_net_forward.18} parent=0 // pred_check
    _
  $region3: #{gan_net_forward.18} parent=0 // pred_check_branch
    %9 = sbr.rel (0) target = $region5
  $region4: #{gan_net_forward.18} parent=0 // pred_region
    _
  $region5: #{gan_net_forward.18} parent=0 // pred_fallthru
    _
  // Predicated region
  $region6: #{gan_net_forward.18} parent=0 // pred_check
    _
  $region7: #{gan_net_forward.18} parent=0 // pred_check_branch
    %11 = sbr.rel (0) target = $region9
  $region8: #{gan_net_forward.18} parent=0 // pred_region
    _
  $region9: #{gan_net_forward.18} parent=0 // pred_fallthru
    _
  // Predicated region
  $region10: #{gan_net_forward.18} parent=0 // pred_check
    _
  $region11: #{gan_net_forward.18} parent=0 // pred_check_branch
    %13 = sbr.rel (0) target = $region13
  $region12: #{gan_net_forward.18} parent=0 // pred_region
    _
  $region13: #{gan_net_forward.18} parent=0 // pred_fallthru
    _
  %v14 = vld [vmem:[%s0] sm:$0xff]
  %v15 = vld [vmem:[%s0 + $0x8] sm:$0xff]
  %v16 = vld [vmem:[%s0 + $0x10] sm:$0xff]
  %v17 = vld [vmem:[%s1] sm:$0xff]
  %v18 = vld [vmem:[%s1 + $0x8] sm:$0xff]
  %v19 = vld [vmem:[%s1 + $0x10] sm:$0xff]
  %v20 = vld [vmem:[%s1 + $0x18] sm:$0xff]
  %v21 = vld [vmem:[%s1 + $0x20] sm:$0xff]
  %v22 = vld [vmem:[%s1 + $0x28] sm:$0xff]
  %v23 = vld [vmem:[%s1 + $0x30] sm:$0xff]
  %v24 = vld [vmem:[%s1 + $0x38] sm:$0xff]
  %v25 = vld [vmem:[%s2] sm:$0x1]
  %v27 = vlaneseq
  %v28 = vshrl.u32 %v27, 7
  %v29 = vsub.s32 0, %v28
  %v30 = vrot.slane %v25, %v29
  %vm32 = vcmask 523264
  %v34 = vsel %vm32, %v14, 0
  %v37 = vsel %vm32, %v15, 0
  %v40 = vsel %vm32, %v16, 0
  %42 = vmatprep.subr.mxu0 0.0
  %43 = vmatpush1.msra.mxu0 %v17
  %44 = vmatprep.subr.mxu0 0.0
  %45 = vmatpush1.msra.mxu0 %v18
  %46 = vmatprep.subr.mxu0 0.0
  %47 = vmatpush1.msra.mxu0 %v19
  %48 = vmatprep.subr.mxu0 0.0
  %49 = vmatpush1.msra.mxu0 %v20
  %50 = vmatprep.subr.mxu0 0.0
  %51 = vmatpush1.msra.mxu0 %v21
  %52 = vmatprep.subr.mxu0 0.0
  %53 = vmatpush1.msra.mxu0 %v22
  %54 = vmatprep.subr.mxu0 0.0
  %55 = vmatpush1.msra.mxu0 %v23
  %56 = vmatprep.subr.mxu0 0.0
  %57 = vmatpush1.msra.mxu0 %v24
  %58 = vmatprep.subr.mxu0 0.0
  %59 = vmatpush1.msra.mxu0 0.0
  %60 = vmatprep.subr.mxu0 0.0
  %61 = vmatpush1.msra.mxu0 0.0
  %62 = vmatprep.subr.mxu0 0.0
  %63 = vmatpush1.msra.mxu0 0.0
  %64 = vmatprep.subr.mxu0 0.0
  %65 = vmatpush1.msra.mxu0 0.0
  %66 = vmatprep.subr.mxu0 0.0
  %67 = vmatpush1.msra.mxu0 0.0
  %68 = vmatprep.subr.mxu0 0.0
  %69 = vmatpush1.msra.mxu0 0.0
  %70 = vmatprep.subr.mxu0 0.0
  %71 = vmatpush1.msra.mxu0 0.0
  %72 = vmatprep.subr.mxu0 0.0
  %73 = vmatpush1.msra.mxu0 0.0
  %74 = vmatprep.subr.mxu0 0.0
  %75 = vmatpush1.msra.mxu0 0.0
  %76 = vmatprep.subr.mxu0 0.0
  %77 = vmatpush1.msra.mxu0 0.0
  %78 = vmatprep.subr.mxu0 0.0
  %79 = vmatpush1.msra.mxu0 0.0
  %80 = vmatprep.subr.mxu0 0.0
  %81 = vmatpush1.msra.mxu0 0.0
  %82 = vmatprep.subr.mxu0 0.0
  %83 = vmatpush1.msra.mxu0 0.0
  %84 = vmatprep.subr.mxu0 0.0
  %85 = vmatpush1.msra.mxu0 0.0
  %86 = vmatprep.subr.mxu0 0.0
  %87 = vmatpush1.msra.mxu0 0.0
  %88 = vmatprep.subr.mxu0 0.0
  %89 = vmatpush1.msra.mxu0 0.0
  %90 = vmatprep.subr.mxu0 0.0
  %91 = vmatpush1.msra.mxu0 0.0
  %92 = vmatprep.subr.mxu0 0.0
  %93 = vmatpush1.msra.mxu0 0.0
  %94 = vmatprep.subr.mxu0 0.0
  %95 = vmatpush1.msra.mxu0 0.0
  %96 = vmatprep.subr.mxu0 0.0
  %97 = vmatpush1.msra.mxu0 0.0
  %98 = vmatprep.subr.mxu0 0.0
  %99 = vmatpush1.msra.mxu0 0.0
  %100 = vmatprep.subr.mxu0 0.0
  %101 = vmatpush1.msra.mxu0 0.0
  %102 = vmatprep.subr.mxu0 0.0
  %103 = vmatpush1.msra.mxu0 0.0
  %104 = vmatprep.subr.mxu0 0.0
  %105 = vmatpush1.msra.mxu0 0.0
  %106 = vmatprep.mubr.f32.mxu0 0.0
  %107 = vmatmul.mubr.f32.gmra.mrb[0].mxu0 %v34
  %v108 = vpop.f32.mrb[0].mxu0
  %v109 = vadd.f32 %v30, %v108
  %v110 = vpop.f32.mrb[0].mxu0
  %111 = vmatprep.mubr.f32.mxu0 0.0
  %112 = vmatmul.mubr.f32.gmra.mrb[0].mxu0 %v37
  %v113 = vpop.f32.mrb[0].mxu0
  %v114 = vadd.f32 %v30, %v113
  %v115 = vpop.f32.mrb[0].mxu0
  %116 = vmatprep.mubr.f32.mxu0 0.0
  %117 = vmatmul.mubr.f32.gmra.mrb[0].mxu0 %v40
  %v118 = vpop.f32.mrb[0].mxu0
  %v119 = vadd.f32 %v30, %v118
  %v120 = vpop.f32.mrb[0].mxu0
  %121 = vdwg.mxu0
  %vm122 = vcmp.ge.f32.partialorder %v109, 0.0
  %vm123 = vcmp.ge.f32.partialorder %v114, 0.0
  %vm124 = vcmp.ge.f32.partialorder %v119, 0.0
  %v125 = vmul.f32 %v109, 0.1
  %v126 = vmul.f32 %v114, 0.1
  %v127 = vmul.f32 %v119, 0.1
  %v128 = vsel %vm122, %v109, %v125
  %v129 = vsel %vm123, %v114, %v126
  %v130 = vsel %vm124, %v119, %v127
  %131 = vst.msk [vmem:[%s3] sm:$0xff] %vm32, %v128
  %132 = vst.msk [vmem:[%s3 + $0x8] sm:$0xff] %vm32, %v129
  %133 = vst.msk [vmem:[%s3 + $0x10] sm:$0xff] %vm32, %v130
  // Predicated region
  $region14: #{gan_net_forward.18} parent=0 // pred_check
    _
  $region15: #{gan_net_forward.18} parent=0 // pred_check_branch
    %135 = sbr.rel (0) target = $region17
  $region16: #{gan_net_forward.18} parent=0 // pred_region
    _
  $region17: #{gan_net_forward.18} parent=0 // pred_fallthru
    _
  // Predicated region
  $region18: #{gan_net_forward.18} parent=0 // pred_check
    _
  $region19: #{gan_net_forward.18} parent=0 // pred_check_branch
    %137 = sbr.rel (0) target = $region21
  $region20: #{gan_net_forward.18} parent=0 // pred_region
    _
  $region21: #{gan_net_forward.18} parent=0 // pred_fallthru
    _

// kernel: gan_net_forward.17
$region0: #{gan_net_forward.17}
  #allocation0 [shape = 'u32[]', space=smem, size = 0x4, offset = 0x4, fixed_abs, tag = 'smem constant byte address 0x4 - core index']
  #allocation1 [shape = 'u32[144,128]{1,0:T(1,128)}', space=vmem, size = 0x12000, scoped, tag = 'internal scratch']
  %s0 = inlined_call_operand.vmem [shape: f32[24,128], index: 0, kind: input, shape index: {}]
  %s1 = inlined_call_operand.vmem [shape: f32[128,64], index: 1, kind: input, shape index: {}]
  %s2 = inlined_call_operand.vmem [shape: f32[1,64], index: 2, kind: input, shape index: {}]
  %s3 = inlined_call_operand.vmem [shape: f32[24,64], index: 3, kind: output, shape index: {}]
  %s4 = sld [smem:[#allocation0]]
  $region22: #{gan_net_forward.17} parent=0
    _
  %s6 = ssub.s32 1, %s4
  %s7 = scalar_select 0, %s6, %s4
  // Predicated region
  $region2: #{gan_net_forward.17} parent=0 // pred_check
    _
  $region3: #{gan_net_forward.17} parent=0 // pred_check_branch
    %9 = sbr.rel (0) target = $region5
  $region4: #{gan_net_forward.17} parent=0 // pred_region
    _
  $region5: #{gan_net_forward.17} parent=0 // pred_fallthru
    _
  // Predicated region
  $region6: #{gan_net_forward.17} parent=0 // pred_check
    _
  $region7: #{gan_net_forward.17} parent=0 // pred_check_branch
    %11 = sbr.rel (0) target = $region9
  $region8: #{gan_net_forward.17} parent=0 // pred_region
    _
  $region9: #{gan_net_forward.17} parent=0 // pred_fallthru
    _
  // Predicated region
  $region10: #{gan_net_forward.17} parent=0 // pred_check
    _
  $region11: #{gan_net_forward.17} parent=0 // pred_check_branch
    %13 = sbr.rel (0) target = $region13
  $region12: #{gan_net_forward.17} parent=0 // pred_region
    _
  $region13: #{gan_net_forward.17} parent=0 // pred_fallthru
    _
  %v14 = vld [vmem:[%s0] sm:$0xff]
  %v15 = vld [vmem:[%s0 + $0x8] sm:$0xff]
  %v16 = vld [vmem:[%s0 + $0x10] sm:$0xff]
  %v17 = vld [vmem:[%s1] sm:$0xff]
  %v18 = vld [vmem:[%s1 + $0x8] sm:$0xff]
  %v19 = vld [vmem:[%s1 + $0x10] sm:$0xff]
  %v20 = vld [vmem:[%s1 + $0x18] sm:$0xff]
  %v21 = vld [vmem:[%s1 + $0x20] sm:$0xff]
  %v22 = vld [vmem:[%s1 + $0x28] sm:$0xff]
  %v23 = vld [vmem:[%s1 + $0x30] sm:$0xff]
  %v24 = vld [vmem:[%s1 + $0x38] sm:$0xff]
  %v25 = vld [vmem:[%s1 + $0x40] sm:$0xff]
  %v26 = vld [vmem:[%s1 + $0x48] sm:$0xff]
  %v27 = vld [vmem:[%s1 + $0x50] sm:$0xff]
  %v28 = vld [vmem:[%s1 + $0x58] sm:$0xff]
  %v29 = vld [vmem:[%s1 + $0x60] sm:$0xff]
  %v30 = vld [vmem:[%s1 + $0x68] sm:$0xff]
  %v31 = vld [vmem:[%s1 + $0x70] sm:$0xff]
  %v32 = vld [vmem:[%s1 + $0x78] sm:$0xff]
  %v33 = vld [vmem:[%s2] sm:$0x1]
  %v35 = vlaneseq
  %v36 = vshrl.u32 %v35, 7
  %v37 = vsub.s32 0, %v36
  %v38 = vrot.slane %v33, %v37
  %40 = vmatprep.subr.mxu0 0.0
  %41 = vmatpush1.msra.mxu0 %v17
  %42 = vmatprep.subr.mxu0 0.0
  %43 = vmatpush1.msra.mxu0 %v18
  %44 = vmatprep.subr.mxu0 0.0
  %45 = vmatpush1.msra.mxu0 %v19
  %46 = vmatprep.subr.mxu0 0.0
  %47 = vmatpush1.msra.mxu0 %v20
  %48 = vmatprep.subr.mxu0 0.0
  %49 = vmatpush1.msra.mxu0 %v21
  %50 = vmatprep.subr.mxu0 0.0
  %51 = vmatpush1.msra.mxu0 %v22
  %52 = vmatprep.subr.mxu0 0.0
  %53 = vmatpush1.msra.mxu0 %v23
  %54 = vmatprep.subr.mxu0 0.0
  %55 = vmatpush1.msra.mxu0 %v24
  %56 = vmatprep.subr.mxu0 0.0
  %57 = vmatpush1.msra.mxu0 %v25
  %58 = vmatprep.subr.mxu0 0.0
  %59 = vmatpush1.msra.mxu0 %v26
  %60 = vmatprep.subr.mxu0 0.0
  %61 = vmatpush1.msra.mxu0 %v27
  %62 = vmatprep.subr.mxu0 0.0
  %63 = vmatpush1.msra.mxu0 %v28
  %64 = vmatprep.subr.mxu0 0.0
  %65 = vmatpush1.msra.mxu0 %v29
  %66 = vmatprep.subr.mxu0 0.0
  %67 = vmatpush1.msra.mxu0 %v30
  %68 = vmatprep.subr.mxu0 0.0
  %69 = vmatpush1.msra.mxu0 %v31
  %70 = vmatprep.subr.mxu0 0.0
  %71 = vmatpush1.msra.mxu0 %v32
  %72 = vmatprep.subr.mxu0 0.0
  %73 = vmatpush1.msra.mxu0 0.0
  %74 = vmatprep.subr.mxu0 0.0
  %75 = vmatpush1.msra.mxu0 0.0
  %76 = vmatprep.subr.mxu0 0.0
  %77 = vmatpush1.msra.mxu0 0.0
  %78 = vmatprep.subr.mxu0 0.0
  %79 = vmatpush1.msra.mxu0 0.0
  %80 = vmatprep.subr.mxu0 0.0
  %81 = vmatpush1.msra.mxu0 0.0
  %82 = vmatprep.subr.mxu0 0.0
  %83 = vmatpush1.msra.mxu0 0.0
  %84 = vmatprep.subr.mxu0 0.0
  %85 = vmatpush1.msra.mxu0 0.0
  %86 = vmatprep.subr.mxu0 0.0
  %87 = vmatpush1.msra.mxu0 0.0
  %88 = vmatprep.subr.mxu0 0.0
  %89 = vmatpush1.msra.mxu0 0.0
  %90 = vmatprep.subr.mxu0 0.0
  %91 = vmatpush1.msra.mxu0 0.0
  %92 = vmatprep.subr.mxu0 0.0
  %93 = vmatpush1.msra.mxu0 0.0
  %94 = vmatprep.subr.mxu0 0.0
  %95 = vmatpush1.msra.mxu0 0.0
  %96 = vmatprep.subr.mxu0 0.0
  %97 = vmatpush1.msra.mxu0 0.0
  %98 = vmatprep.subr.mxu0 0.0
  %99 = vmatpush1.msra.mxu0 0.0
  %100 = vmatprep.subr.mxu0 0.0
  %101 = vmatpush1.msra.mxu0 0.0
  %102 = vmatprep.subr.mxu0 0.0
  %103 = vmatpush1.msra.mxu0 0.0
  %104 = vmatprep.mubr.f32.mxu0 0.0
  %105 = vmatmul.mubr.f32.gmra.mrb[0].mxu0 %v14
  %v106 = vpop.f32.mrb[0].mxu0
  %v107 = vadd.f32 %v38, %v106
  %v108 = vpop.f32.mrb[0].mxu0
  %109 = vmatprep.mubr.f32.mxu0 0.0
  %110 = vmatmul.mubr.f32.gmra.mrb[0].mxu0 %v15
  %v111 = vpop.f32.mrb[0].mxu0
  %v112 = vadd.f32 %v38, %v111
  %v113 = vpop.f32.mrb[0].mxu0
  %114 = vmatprep.mubr.f32.mxu0 0.0
  %115 = vmatmul.mubr.f32.gmra.mrb[0].mxu0 %v16
  %v116 = vpop.f32.mrb[0].mxu0
  %v117 = vadd.f32 %v38, %v116
  %v118 = vpop.f32.mrb[0].mxu0
  %119 = vdwg.mxu0
  %vm120 = vcmp.ge.f32.partialorder %v107, 0.0
  %vm121 = vcmp.ge.f32.partialorder %v112, 0.0
  %vm122 = vcmp.ge.f32.partialorder %v117, 0.0
  %v123 = vmul.f32 %v107, 0.1
  %v124 = vmul.f32 %v112, 0.1
  %v125 = vmul.f32 %v117, 0.1
  %v126 = vsel %vm120, %v107, %v123
  %v127 = vsel %vm121, %v112, %v124
  %v128 = vsel %vm122, %v117, %v125
  %vm129 = vcmask 523264
  %130 = vst.msk [vmem:[%s3] sm:$0xff] %vm129, %v126
  %131 = vst.msk [vmem:[%s3 + $0x8] sm:$0xff] %vm129, %v127
  %132 = vst.msk [vmem:[%s3 + $0x10] sm:$0xff] %vm129, %v128
  // Predicated region
  $region14: #{gan_net_forward.17} parent=0 // pred_check
    _
  $region15: #{gan_net_forward.17} parent=0 // pred_check_branch
    %134 = sbr.rel (0) target = $region17
  $region16: #{gan_net_forward.17} parent=0 // pred_region
    _
  $region17: #{gan_net_forward.17} parent=0 // pred_fallthru
    _
  // Predicated region
  $region18: #{gan_net_forward.17} parent=0 // pred_check
    _
  $region19: #{gan_net_forward.17} parent=0 // pred_check_branch
    %136 = sbr.rel (0) target = $region21
  $region20: #{gan_net_forward.17} parent=0 // pred_region
    _
  $region21: #{gan_net_forward.17} parent=0 // pred_fallthru
    _

// kernel: gan_net_forward.15
$region0: #{gan_net_forward.15}
  #allocation0 [shape = 'u32[]', space=smem, size = 0x4, offset = 0x4, fixed_abs, tag = 'smem constant byte address 0x4 - core index']
  #allocation1 [shape = 'u32[144,128]{1,0:T(1,128)}', space=vmem, size = 0x12000, scoped, tag = 'internal scratch']
  %s0 = inlined_call_operand.vmem [shape: f32[32,256], index: 0, kind: input, shape index: {}]
  %s1 = inlined_call_operand.vmem [shape: f32[256,64], index: 1, kind: input, shape index: {}]
  %s2 = inlined_call_operand.vmem [shape: f32[1,64], index: 2, kind: input, shape index: {}]
  %s3 = inlined_call_operand.vmem [shape: f32[32,64], index: 3, kind: output, shape index: {}]
  %s4 = sld [smem:[#allocation0]]
  $region22: #{gan_net_forward.15} parent=0
    _
  %s6 = ssub.s32 1, %s4
  %s7 = scalar_select 0, %s6, %s4
  // Predicated region
  $region2: #{gan_net_forward.15} parent=0 // pred_check
    _
  $region3: #{gan_net_forward.15} parent=0 // pred_check_branch
    %9 = sbr.rel (0) target = $region5
  $region4: #{gan_net_forward.15} parent=0 // pred_region
    _
  $region5: #{gan_net_forward.15} parent=0 // pred_fallthru
    _
  // Predicated region
  $region6: #{gan_net_forward.15} parent=0 // pred_check
    _
  $region7: #{gan_net_forward.15} parent=0 // pred_check_branch
    %11 = sbr.rel (0) target = $region9
  $region8: #{gan_net_forward.15} parent=0 // pred_region
    _
  $region9: #{gan_net_forward.15} parent=0 // pred_fallthru
    _
  // Predicated region
  $region10: #{gan_net_forward.15} parent=0 // pred_check
    _
  $region11: #{gan_net_forward.15} parent=0 // pred_check_branch
    %13 = sbr.rel (0) target = $region13
  $region12: #{gan_net_forward.15} parent=0 // pred_region
    _
  $region13: #{gan_net_forward.15} parent=0 // pred_fallthru
    _
  %v14 = vld [vmem:[%s0] sm:$0xff]
  %v15 = vld [vmem:[%s0 + $0x8] sm:$0xff]
  %v16 = vld [vmem:[%s0 + $0x10] sm:$0xff]
  %v17 = vld [vmem:[%s0 + $0x18] sm:$0xff]
  %v18 = vld [vmem:[%s0 + $0x20] sm:$0xff]
  %v19 = vld [vmem:[%s0 + $0x28] sm:$0xff]
  %v20 = vld [vmem:[%s0 + $0x30] sm:$0xff]
  %v21 = vld [vmem:[%s0 + $0x38] sm:$0xff]
  %v22 = vld [vmem:[%s1] sm:$0xff]
  %v23 = vld [vmem:[%s1 + $0x8] sm:$0xff]
  %v24 = vld [vmem:[%s1 + $0x10] sm:$0xff]
  %v25 = vld [vmem:[%s1 + $0x18] sm:$0xff]
  %v26 = vld [vmem:[%s1 + $0x20] sm:$0xff]
  %v27 = vld [vmem:[%s1 + $0x28] sm:$0xff]
  %v28 = vld [vmem:[%s1 + $0x30] sm:$0xff]
  %v29 = vld [vmem:[%s1 + $0x38] sm:$0xff]
  %v30 = vld [vmem:[%s1 + $0x40] sm:$0xff]
  %v31 = vld [vmem:[%s1 + $0x48] sm:$0xff]
  %v32 = vld [vmem:[%s1 + $0x50] sm:$0xff]
  %v33 = vld [vmem:[%s1 + $0x58] sm:$0xff]
  %v34 = vld [vmem:[%s1 + $0x60] sm:$0xff]
  %v35 = vld [vmem:[%s1 + $0x68] sm:$0xff]
  %v36 = vld [vmem:[%s1 + $0x70] sm:$0xff]
  %v37 = vld [vmem:[%s1 + $0x78] sm:$0xff]
  %v38 = vld [vmem:[%s1 + $0x80] sm:$0xff]
  %v39 = vld [vmem:[%s1 + $0x88] sm:$0xff]
  %v40 = vld [vmem:[%s1 + $0x90] sm:$0xff]
  %v41 = vld [vmem:[%s1 + $0x98] sm:$0xff]
  %v42 = vld [vmem:[%s1 + $0xa0] sm:$0xff]
  %v43 = vld [vmem:[%s1 + $0xa8] sm:$0xff]
  %v44 = vld [vmem:[%s1 + $0xb0] sm:$0xff]
  %v45 = vld [vmem:[%s1 + $0xb8] sm:$0xff]
  %v46 = vld [vmem:[%s1 + $0xc0] sm:$0xff]
  %v47 = vld [vmem:[%s1 + $0xc8] sm:$0xff]
  %v48 = vld [vmem:[%s1 + $0xd0] sm:$0xff]
  %v49 = vld [vmem:[%s1 + $0xd8] sm:$0xff]
  %v50 = vld [vmem:[%s1 + $0xe0] sm:$0xff]
  %v51 = vld [vmem:[%s1 + $0xe8] sm:$0xff]
  %v52 = vld [vmem:[%s1 + $0xf0] sm:$0xff]
  %v53 = vld [vmem:[%s1 + $0xf8] sm:$0xff]
  %v54 = vld [vmem:[%s2] sm:$0x1]
  %v56 = vlaneseq
  %v57 = vshrl.u32 %v56, 7
  %v58 = vsub.s32 0, %v57
  %v59 = vrot.slane %v54, %v58
  %61 = vmatprep.subr.mxu0 0.0
  %62 = vmatpush1.msra.mxu0 %v22
  %63 = vmatprep.subr.mxu0 0.0
  %64 = vmatpush1.msra.mxu0 %v23
  %65 = vmatprep.subr.mxu0 0.0
  %66 = vmatpush1.msra.mxu0 %v24
  %67 = vmatprep.subr.mxu0 0.0
  %68 = vmatpush1.msra.mxu0 %v25
  %69 = vmatprep.subr.mxu0 0.0
  %70 = vmatpush1.msra.mxu0 %v26
  %71 = vmatprep.subr.mxu0 0.0
  %72 = vmatpush1.msra.mxu0 %v27
  %73 = vmatprep.subr.mxu0 0.0
  %74 = vmatpush1.msra.mxu0 %v28
  %75 = vmatprep.subr.mxu0 0.0
  %76 = vmatpush1.msra.mxu0 %v29
  %77 = vmatprep.subr.mxu0 0.0
  %78 = vmatpush1.msra.mxu0 %v30
  %79 = vmatprep.subr.mxu0 0.0
  %80 = vmatpush1.msra.mxu0 %v31
  %81 = vmatprep.subr.mxu0 0.0
  %82 = vmatpush1.msra.mxu0 %v32
  %83 = vmatprep.subr.mxu0 0.0
  %84 = vmatpush1.msra.mxu0 %v33
  %85 = vmatprep.subr.mxu0 0.0
  %86 = vmatpush1.msra.mxu0 %v34
  %87 = vmatprep.subr.mxu0 0.0
  %88 = vmatpush1.msra.mxu0 %v35
  %89 = vmatprep.subr.mxu0 0.0
  %90 = vmatpush1.msra.mxu0 %v36
  %91 = vmatprep.subr.mxu0 0.0
  %92 = vmatpush1.msra.mxu0 %v37
  %93 = vmatprep.subr.mxu0 0.0
  %94 = vmatpush1.msra.mxu0 %v38
  %95 = vmatprep.subr.mxu0 0.0
  %96 = vmatpush1.msra.mxu0 %v39
  %97 = vmatprep.subr.mxu0 0.0
  %98 = vmatpush1.msra.mxu0 %v40
  %99 = vmatprep.subr.mxu0 0.0
  %100 = vmatpush1.msra.mxu0 %v41
  %101 = vmatprep.subr.mxu0 0.0
  %102 = vmatpush1.msra.mxu0 %v42
  %103 = vmatprep.subr.mxu0 0.0
  %104 = vmatpush1.msra.mxu0 %v43
  %105 = vmatprep.subr.mxu0 0.0
  %106 = vmatpush1.msra.mxu0 %v44
  %107 = vmatprep.subr.mxu0 0.0
  %108 = vmatpush1.msra.mxu0 %v45
  %109 = vmatprep.subr.mxu0 0.0
  %110 = vmatpush1.msra.mxu0 %v46
  %111 = vmatprep.subr.mxu0 0.0
  %112 = vmatpush1.msra.mxu0 %v47
  %113 = vmatprep.subr.mxu0 0.0
  %114 = vmatpush1.msra.mxu0 %v48
  %115 = vmatprep.subr.mxu0 0.0
  %116 = vmatpush1.msra.mxu0 %v49
  %117 = vmatprep.subr.mxu0 0.0
  %118 = vmatpush1.msra.mxu0 %v50
  %119 = vmatprep.subr.mxu0 0.0
  %120 = vmatpush1.msra.mxu0 %v51
  %121 = vmatprep.subr.mxu0 0.0
  %122 = vmatpush1.msra.mxu0 %v52
  %123 = vmatprep.subr.mxu0 0.0
  %124 = vmatpush1.msra.mxu0 %v53
  %125 = vmatprep.mubr.f32.mxu0 %v15
  %126 = vmatmul.mubr.f32.gmra.mrb[0].mxu0 %v14
  %v127 = vpop.f32.mrb[0].mxu0
  %v128 = vadd.f32 %v59, %v127
  %v129 = vpop.f32.mrb[0].mxu0
  %130 = vmatprep.mubr.f32.mxu0 %v17
  %131 = vmatmul.mubr.f32.gmra.mrb[0].mxu0 %v16
  %v132 = vpop.f32.mrb[0].mxu0
  %v133 = vadd.f32 %v59, %v132
  %v134 = vpop.f32.mrb[0].mxu0
  %135 = vmatprep.mubr.f32.mxu0 %v19
  %136 = vmatmul.mubr.f32.gmra.mrb[0].mxu0 %v18
  %v137 = vpop.f32.mrb[0].mxu0
  %v138 = vadd.f32 %v59, %v137
  %v139 = vpop.f32.mrb[0].mxu0
  %140 = vmatprep.mubr.f32.mxu0 %v21
  %141 = vmatmul.mubr.f32.gmra.mrb[0].mxu0 %v20
  %v142 = vpop.f32.mrb[0].mxu0
  %v143 = vadd.f32 %v59, %v142
  %v144 = vpop.f32.mrb[0].mxu0
  %145 = vdwg.mxu0
  %vm146 = vcmp.ge.f32.partialorder %v128, 0.0
  %vm147 = vcmp.ge.f32.partialorder %v133, 0.0
  %vm148 = vcmp.ge.f32.partialorder %v138, 0.0
  %vm149 = vcmp.ge.f32.partialorder %v143, 0.0
  %v150 = vmul.f32 %v128, 0.1
  %v151 = vmul.f32 %v133, 0.1
  %v152 = vmul.f32 %v138, 0.1
  %v153 = vmul.f32 %v143, 0.1
  %v154 = vsel %vm146, %v128, %v150
  %v155 = vsel %vm147, %v133, %v151
  %v156 = vsel %vm148, %v138, %v152
  %v157 = vsel %vm149, %v143, %v153
  %vm158 = vcmask 523264
  %159 = vst.msk [vmem:[%s3] sm:$0xff] %vm158, %v154
  %160 = vst.msk [vmem:[%s3 + $0x8] sm:$0xff] %vm158, %v155
  %161 = vst.msk [vmem:[%s3 + $0x10] sm:$0xff] %vm158, %v156
  %162 = vst.msk [vmem:[%s3 + $0x18] sm:$0xff] %vm158, %v157
  // Predicated region
  $region14: #{gan_net_forward.15} parent=0 // pred_check
    _
  $region15: #{gan_net_forward.15} parent=0 // pred_check_branch
    %164 = sbr.rel (0) target = $region17
  $region16: #{gan_net_forward.15} parent=0 // pred_region
    _
  $region17: #{gan_net_forward.15} parent=0 // pred_fallthru
    _
  // Predicated region
  $region18: #{gan_net_forward.15} parent=0 // pred_check
    _
  $region19: #{gan_net_forward.15} parent=0 // pred_check_branch
    %166 = sbr.rel (0) target = $region21
  $region20: #{gan_net_forward.15} parent=0 // pred_region
    _
  $region21: #{gan_net_forward.15} parent=0 // pred_fallthru
    _

// kernel: gan_net_forward.22
$region0: #{gan_net_forward.22}
  #allocation0 [shape = 'u32[]', space=smem, size = 0x4, offset = 0x4, fixed_abs, tag = 'smem constant byte address 0x4 - core index']
  #allocation1 [shape = 'u32[144,128]{1,0:T(1,128)}', space=vmem, size = 0x12000, scoped, tag = 'internal scratch']
  %s0 = inlined_call_operand.vmem [shape: f32[104,64], index: 0, kind: input, shape index: {}]
  %s1 = inlined_call_operand.vmem [shape: f32[64,64], index: 1, kind: input, shape index: {}]
  %s2 = inlined_call_operand.vmem [shape: f32[1,64], index: 2, kind: input, shape index: {}]
  %s3 = inlined_call_operand.vmem [shape: f32[104,64], index: 3, kind: output, shape index: {}]
  %s4 = sld [smem:[#allocation0]]
  $region22: #{gan_net_forward.22} parent=0
    _
  %s6 = ssub.s32 1, %s4
  %s7 = scalar_select 0, %s6, %s4
  // Predicated region
  $region2: #{gan_net_forward.22} parent=0 // pred_check
    _
  $region3: #{gan_net_forward.22} parent=0 // pred_check_branch
    %9 = sbr.rel (0) target = $region5
  $region4: #{gan_net_forward.22} parent=0 // pred_region
    _
  $region5: #{gan_net_forward.22} parent=0 // pred_fallthru
    _
  // Predicated region
  $region6: #{gan_net_forward.22} parent=0 // pred_check
    _
  $region7: #{gan_net_forward.22} parent=0 // pred_check_branch
    %11 = sbr.rel (0) target = $region9
  $region8: #{gan_net_forward.22} parent=0 // pred_region
    _
  $region9: #{gan_net_forward.22} parent=0 // pred_fallthru
    _
  // Predicated region
  $region10: #{gan_net_forward.22} parent=0 // pred_check
    _
  $region11: #{gan_net_forward.22} parent=0 // pred_check_branch
    %13 = sbr.rel (0) target = $region13
  $region12: #{gan_net_forward.22} parent=0 // pred_region
    _
  $region13: #{gan_net_forward.22} parent=0 // pred_fallthru
    _
  %v14 = vld [vmem:[%s0] sm:$0xff]
  %v15 = vld [vmem:[%s0 + $0x8] sm:$0xff]
  %v16 = vld [vmem:[%s0 + $0x10] sm:$0xff]
  %v17 = vld [vmem:[%s0 + $0x18] sm:$0xff]
  %v18 = vld [vmem:[%s0 + $0x20] sm:$0xff]
  %v19 = vld [vmem:[%s0 + $0x28] sm:$0xff]
  %v20 = vld [vmem:[%s0 + $0x30] sm:$0xff]
  %v21 = vld [vmem:[%s0 + $0x38] sm:$0xff]
  %v22 = vld [vmem:[%s0 + $0x40] sm:$0xff]
  %v23 = vld [vmem:[%s0 + $0x48] sm:$0xff]
  %v24 = vld [vmem:[%s0 + $0x50] sm:$0xff]
  %v25 = vld [vmem:[%s0 + $0x58] sm:$0xff]
  %v26 = vld [vmem:[%s0 + $0x60] sm:$0xff]
  %v27 = vld [vmem:[%s1] sm:$0xff]
  %v28 = vld [vmem:[%s1 + $0x8] sm:$0xff]
  %v29 = vld [vmem:[%s1 + $0x10] sm:$0xff]
  %v30 = vld [vmem:[%s1 + $0x18] sm:$0xff]
  %v31 = vld [vmem:[%s1 + $0x20] sm:$0xff]
  %v32 = vld [vmem:[%s1 + $0x28] sm:$0xff]
  %v33 = vld [vmem:[%s1 + $0x30] sm:$0xff]
  %v34 = vld [vmem:[%s1 + $0x38] sm:$0xff]
  %v35 = vld [vmem:[%s2] sm:$0x1]
  %v37 = vlaneseq
  %v38 = vshrl.u32 %v37, 7
  %v39 = vsub.s32 0, %v38
  %v40 = vrot.slane %v35, %v39
  %vm42 = vcmask 523264
  %v44 = vsel %vm42, %v14, 0
  %v47 = vsel %vm42, %v15, 0
  %v50 = vsel %vm42, %v16, 0
  %v53 = vsel %vm42, %v17, 0
  %v56 = vsel %vm42, %v18, 0
  %v59 = vsel %vm42, %v19, 0
  %v62 = vsel %vm42, %v20, 0
  %v65 = vsel %vm42, %v21, 0
  %v68 = vsel %vm42, %v22, 0
  %v71 = vsel %vm42, %v23, 0
  %v74 = vsel %vm42, %v24, 0
  %v77 = vsel %vm42, %v25, 0
  %v80 = vsel %vm42, %v26, 0
  %82 = vmatprep.subr.mxu0 0.0
  %83 = vmatpush1.msra.mxu0 %v27
  %84 = vmatprep.subr.mxu0 0.0
  %85 = vmatpush1.msra.mxu0 %v28
  %86 = vmatprep.subr.mxu0 0.0
  %87 = vmatpush1.msra.mxu0 %v29
  %88 = vmatprep.subr.mxu0 0.0
  %89 = vmatpush1.msra.mxu0 %v30
  %90 = vmatprep.subr.mxu0 0.0
  %91 = vmatpush1.msra.mxu0 %v31
  %92 = vmatprep.subr.mxu0 0.0
  %93 = vmatpush1.msra.mxu0 %v32
  %94 = vmatprep.subr.mxu0 0.0
  %95 = vmatpush1.msra.mxu0 %v33
  %96 = vmatprep.subr.mxu0 0.0
  %97 = vmatpush1.msra.mxu0 %v34
  %98 = vmatprep.subr.mxu0 0.0
  %99 = vmatpush1.msra.mxu0 0.0
  %100 = vmatprep.subr.mxu0 0.0
  %101 = vmatpush1.msra.mxu0 0.0
  %102 = vmatprep.subr.mxu0 0.0
  %103 = vmatpush1.msra.mxu0 0.0
  %104 = vmatprep.subr.mxu0 0.0
  %105 = vmatpush1.msra.mxu0 0.0
  %106 = vmatprep.subr.mxu0 0.0
  %107 = vmatpush1.msra.mxu0 0.0
  %108 = vmatprep.subr.mxu0 0.0
  %109 = vmatpush1.msra.mxu0 0.0
  %110 = vmatprep.subr.mxu0 0.0
  %111 = vmatpush1.msra.mxu0 0.0
  %112 = vmatprep.subr.mxu0 0.0
  %113 = vmatpush1.msra.mxu0 0.0
  %114 = vmatprep.subr.mxu0 0.0
  %115 = vmatpush1.msra.mxu0 0.0
  %116 = vmatprep.subr.mxu0 0.0
  %117 = vmatpush1.msra.mxu0 0.0
  %118 = vmatprep.subr.mxu0 0.0
  %119 = vmatpush1.msra.mxu0 0.0
  %120 = vmatprep.subr.mxu0 0.0
  %121 = vmatpush1.msra.mxu0 0.0
  %122 = vmatprep.subr.mxu0 0.0
  %123 = vmatpush1.msra.mxu0 0.0
  %124 = vmatprep.subr.mxu0 0.0
  %125 = vmatpush1.msra.mxu0 0.0
  %126 = vmatprep.subr.mxu0 0.0
  %127 = vmatpush1.msra.mxu0 0.0
  %128 = vmatprep.subr.mxu0 0.0
  %129 = vmatpush1.msra.mxu0 0.0
  %130 = vmatprep.subr.mxu0 0.0
  %131 = vmatpush1.msra.mxu0 0.0
  %132 = vmatprep.subr.mxu0 0.0
  %133 = vmatpush1.msra.mxu0 0.0
  %134 = vmatprep.subr.mxu0 0.0
  %135 = vmatpush1.msra.mxu0 0.0
  %136 = vmatprep.subr.mxu0 0.0
  %137 = vmatpush1.msra.mxu0 0.0
  %138 = vmatprep.subr.mxu0 0.0
  %139 = vmatpush1.msra.mxu0 0.0
  %140 = vmatprep.subr.mxu0 0.0
  %141 = vmatpush1.msra.mxu0 0.0
  %142 = vmatprep.subr.mxu0 0.0
  %143 = vmatpush1.msra.mxu0 0.0
  %144 = vmatprep.subr.mxu0 0.0
  %145 = vmatpush1.msra.mxu0 0.0
  %146 = vmatprep.mubr.f32.mxu0 0.0
  %147 = vmatmul.mubr.f32.gmra.mrb[0].mxu0 %v44
  %v148 = vpop.f32.mrb[0].mxu0
  %v149 = vadd.f32 %v40, %v148
  %v150 = vpop.f32.mrb[0].mxu0
  %151 = vmatprep.mubr.f32.mxu0 0.0
  %152 = vmatmul.mubr.f32.gmra.mrb[0].mxu0 %v47
  %v153 = vpop.f32.mrb[0].mxu0
  %v154 = vadd.f32 %v40, %v153
  %v155 = vpop.f32.mrb[0].mxu0
  %156 = vmatprep.mubr.f32.mxu0 0.0
  %157 = vmatmul.mubr.f32.gmra.mrb[0].mxu0 %v50
  %v158 = vpop.f32.mrb[0].mxu0
  %v159 = vadd.f32 %v40, %v158
  %v160 = vpop.f32.mrb[0].mxu0
  %161 = vmatprep.mubr.f32.mxu0 0.0
  %162 = vmatmul.mubr.f32.gmra.mrb[0].mxu0 %v53
  %v163 = vpop.f32.mrb[0].mxu0
  %v164 = vadd.f32 %v40, %v163
  %v165 = vpop.f32.mrb[0].mxu0
  %166 = vmatprep.mubr.f32.mxu0 0.0
  %167 = vmatmul.mubr.f32.gmra.mrb[0].mxu0 %v56
  %v168 = vpop.f32.mrb[0].mxu0
  %v169 = vadd.f32 %v40, %v168
  %v170 = vpop.f32.mrb[0].mxu0
  %171 = vmatprep.mubr.f32.mxu0 0.0
  %172 = vmatmul.mubr.f32.gmra.mrb[0].mxu0 %v59
  %v173 = vpop.f32.mrb[0].mxu0
  %v174 = vadd.f32 %v40, %v173
  %v175 = vpop.f32.mrb[0].mxu0
  %176 = vmatprep.mubr.f32.mxu0 0.0
  %177 = vmatmul.mubr.f32.gmra.mrb[0].mxu0 %v62
  %v178 = vpop.f32.mrb[0].mxu0
  %v179 = vadd.f32 %v40, %v178
  %v180 = vpop.f32.mrb[0].mxu0
  %181 = vmatprep.mubr.f32.mxu0 0.0
  %182 = vmatmul.mubr.f32.gmra.mrb[0].mxu0 %v65
  %v183 = vpop.f32.mrb[0].mxu0
  %v184 = vadd.f32 %v40, %v183
  %v185 = vpop.f32.mrb[0].mxu0
  %186 = vmatprep.mubr.f32.mxu0 0.0
  %187 = vmatmul.mubr.f32.gmra.mrb[0].mxu0 %v68
  %v188 = vpop.f32.mrb[0].mxu0
  %v189 = vadd.f32 %v40, %v188
  %v190 = vpop.f32.mrb[0].mxu0
  %191 = vmatprep.mubr.f32.mxu0 0.0
  %192 = vmatmul.mubr.f32.gmra.mrb[0].mxu0 %v71
  %v193 = vpop.f32.mrb[0].mxu0
  %v194 = vadd.f32 %v40, %v193
  %v195 = vpop.f32.mrb[0].mxu0
  %196 = vmatprep.mubr.f32.mxu0 0.0
  %197 = vmatmul.mubr.f32.gmra.mrb[0].mxu0 %v74
  %v198 = vpop.f32.mrb[0].mxu0
  %v199 = vadd.f32 %v40, %v198
  %v200 = vpop.f32.mrb[0].mxu0
  %201 = vmatprep.mubr.f32.mxu0 0.0
  %202 = vmatmul.mubr.f32.gmra.mrb[0].mxu0 %v77
  %v203 = vpop.f32.mrb[0].mxu0
  %v204 = vadd.f32 %v40, %v203
  %v205 = vpop.f32.mrb[0].mxu0
  %206 = vmatprep.mubr.f32.mxu0 0.0
  %207 = vmatmul.mubr.f32.gmra.mrb[0].mxu0 %v80
  %v208 = vpop.f32.mrb[0].mxu0
  %v209 = vadd.f32 %v40, %v208
  %v210 = vpop.f32.mrb[0].mxu0
  %211 = vdwg.mxu0
  %vm212 = vcmp.ge.f32.partialorder %v149, 0.0
  %vm213 = vcmp.ge.f32.partialorder %v154, 0.0
  %vm214 = vcmp.ge.f32.partialorder %v159, 0.0
  %vm215 = vcmp.ge.f32.partialorder %v164, 0.0
  %vm216 = vcmp.ge.f32.partialorder %v169, 0.0
  %vm217 = vcmp.ge.f32.partialorder %v174, 0.0
  %vm218 = vcmp.ge.f32.partialorder %v179, 0.0
  %vm219 = vcmp.ge.f32.partialorder %v184, 0.0
  %vm220 = vcmp.ge.f32.partialorder %v189, 0.0
  %vm221 = vcmp.ge.f32.partialorder %v194, 0.0
  %vm222 = vcmp.ge.f32.partialorder %v199, 0.0
  %vm223 = vcmp.ge.f32.partialorder %v204, 0.0
  %vm224 = vcmp.ge.f32.partialorder %v209, 0.0
  %v225 = vmul.f32 %v149, 0.1
  %v226 = vmul.f32 %v154, 0.1
  %v227 = vmul.f32 %v159, 0.1
  %v228 = vmul.f32 %v164, 0.1
  %v229 = vmul.f32 %v169, 0.1
  %v230 = vmul.f32 %v174, 0.1
  %v231 = vmul.f32 %v179, 0.1
  %v232 = vmul.f32 %v184, 0.1
  %v233 = vmul.f32 %v189, 0.1
  %v234 = vmul.f32 %v194, 0.1
  %v235 = vmul.f32 %v199, 0.1
  %v236 = vmul.f32 %v204, 0.1
  %v237 = vmul.f32 %v209, 0.1
  %v238 = vsel %vm212, %v149, %v225
  %v239 = vsel %vm213, %v154, %v226
  %v240 = vsel %vm214, %v159, %v227
  %v241 = vsel %vm215, %v164, %v228
  %v242 = vsel %vm216, %v169, %v229
  %v243 = vsel %vm217, %v174, %v230
  %v244 = vsel %vm218, %v179, %v231
  %v245 = vsel %vm219, %v184, %v232
  %v246 = vsel %vm220, %v189, %v233
  %v247 = vsel %vm221, %v194, %v234
  %v248 = vsel %vm222, %v199, %v235
  %v249 = vsel %vm223, %v204, %v236
  %v250 = vsel %vm224, %v209, %v237
  %251 = vst.msk [vmem:[%s3] sm:$0xff] %vm42, %v238
  %252 = vst.msk [vmem:[%s3 + $0x8] sm:$0xff] %vm42, %v239
  %253 = vst.msk [vmem:[%s3 + $0x10] sm:$0xff] %vm42, %v240
  %254 = vst.msk [vmem:[%s3 + $0x18] sm:$0xff] %vm42, %v241
  %255 = vst.msk [vmem:[%s3 + $0x20] sm:$0xff] %vm42, %v242
  %256 = vst.msk [vmem:[%s3 + $0x28] sm:$0xff] %vm42, %v243
  %257 = vst.msk [vmem:[%s3 + $0x30] sm:$0xff] %vm42, %v244
  %258 = vst.msk [vmem:[%s3 + $0x38] sm:$0xff] %vm42, %v245
  %259 = vst.msk [vmem:[%s3 + $0x40] sm:$0xff] %vm42, %v246
  %260 = vst.msk [vmem:[%s3 + $0x48] sm:$0xff] %vm42, %v247
  %261 = vst.msk [vmem:[%s3 + $0x50] sm:$0xff] %vm42, %v248
  %262 = vst.msk [vmem:[%s3 + $0x58] sm:$0xff] %vm42, %v249
  %263 = vst.msk [vmem:[%s3 + $0x60] sm:$0xff] %vm42, %v250
  // Predicated region
  $region14: #{gan_net_forward.22} parent=0 // pred_check
    _
  $region15: #{gan_net_forward.22} parent=0 // pred_check_branch
    %265 = sbr.rel (0) target = $region17
  $region16: #{gan_net_forward.22} parent=0 // pred_region
    _
  $region17: #{gan_net_forward.22} parent=0 // pred_fallthru
    _
  // Predicated region
  $region18: #{gan_net_forward.22} parent=0 // pred_check
    _
  $region19: #{gan_net_forward.22} parent=0 // pred_check_branch
    %267 = sbr.rel (0) target = $region21
  $region20: #{gan_net_forward.22} parent=0 // pred_region
    _
  $region21: #{gan_net_forward.22} parent=0 // pred_fallthru
    _

// kernel: gan_net_forward.21
$region0: #{gan_net_forward.21}
  #allocation0 [shape = 'u32[]', space=smem, size = 0x4, offset = 0x4, fixed_abs, tag = 'smem constant byte address 0x4 - core index']
  #allocation1 [shape = 'u32[144,128]{1,0:T(1,128)}', space=vmem, size = 0x12000, scoped, tag = 'internal scratch']
  %s0 = inlined_call_operand.vmem [shape: f32[88,128], index: 0, kind: input, shape index: {}]
  %s1 = inlined_call_operand.vmem [shape: f32[128,64], index: 1, kind: input, shape index: {}]
  %s2 = inlined_call_operand.vmem [shape: f32[1,64], index: 2, kind: input, shape index: {}]
  %s3 = inlined_call_operand.vmem [shape: f32[88,64], index: 3, kind: output, shape index: {}]
  %s4 = sld [smem:[#allocation0]]
  $region22: #{gan_net_forward.21} parent=0
    _
  %s6 = ssub.s32 1, %s4
  %s7 = scalar_select 0, %s6, %s4
  // Predicated region
  $region2: #{gan_net_forward.21} parent=0 // pred_check
    _
  $region3: #{gan_net_forward.21} parent=0 // pred_check_branch
    %9 = sbr.rel (0) target = $region5
  $region4: #{gan_net_forward.21} parent=0 // pred_region
    _
  $region5: #{gan_net_forward.21} parent=0 // pred_fallthru
    _
  // Predicated region
  $region6: #{gan_net_forward.21} parent=0 // pred_check
    _
  $region7: #{gan_net_forward.21} parent=0 // pred_check_branch
    %11 = sbr.rel (0) target = $region9
  $region8: #{gan_net_forward.21} parent=0 // pred_region
    _
  $region9: #{gan_net_forward.21} parent=0 // pred_fallthru
    _
  // Predicated region
  $region10: #{gan_net_forward.21} parent=0 // pred_check
    _
  $region11: #{gan_net_forward.21} parent=0 // pred_check_branch
    %13 = sbr.rel (0) target = $region13
  $region12: #{gan_net_forward.21} parent=0 // pred_region
    _
  $region13: #{gan_net_forward.21} parent=0 // pred_fallthru
    _
  %v14 = vld [vmem:[%s0] sm:$0xff]
  %v15 = vld [vmem:[%s0 + $0x8] sm:$0xff]
  %v16 = vld [vmem:[%s0 + $0x10] sm:$0xff]
  %v17 = vld [vmem:[%s0 + $0x18] sm:$0xff]
  %v18 = vld [vmem:[%s0 + $0x20] sm:$0xff]
  %v19 = vld [vmem:[%s0 + $0x28] sm:$0xff]
  %v20 = vld [vmem:[%s0 + $0x30] sm:$0xff]
  %v21 = vld [vmem:[%s0 + $0x38] sm:$0xff]
  %v22 = vld [vmem:[%s0 + $0x40] sm:$0xff]
  %v23 = vld [vmem:[%s0 + $0x48] sm:$0xff]
  %v24 = vld [vmem:[%s0 + $0x50] sm:$0xff]
  %v25 = vld [vmem:[%s1] sm:$0xff]
  %v26 = vld [vmem:[%s1 + $0x8] sm:$0xff]
  %v27 = vld [vmem:[%s1 + $0x10] sm:$0xff]
  %v28 = vld [vmem:[%s1 + $0x18] sm:$0xff]
  %v29 = vld [vmem:[%s1 + $0x20] sm:$0xff]
  %v30 = vld [vmem:[%s1 + $0x28] sm:$0xff]
  %v31 = vld [vmem:[%s1 + $0x30] sm:$0xff]
  %v32 = vld [vmem:[%s1 + $0x38] sm:$0xff]
  %v33 = vld [vmem:[%s1 + $0x40] sm:$0xff]
  %v34 = vld [vmem:[%s1 + $0x48] sm:$0xff]
  %v35 = vld [vmem:[%s1 + $0x50] sm:$0xff]
  %v36 = vld [vmem:[%s1 + $0x58] sm:$0xff]
  %v37 = vld [vmem:[%s1 + $0x60] sm:$0xff]
  %v38 = vld [vmem:[%s1 + $0x68] sm:$0xff]
  %v39 = vld [vmem:[%s1 + $0x70] sm:$0xff]
  %v40 = vld [vmem:[%s1 + $0x78] sm:$0xff]
  %v41 = vld [vmem:[%s2] sm:$0x1]
  %v43 = vlaneseq
  %v44 = vshrl.u32 %v43, 7
  %v45 = vsub.s32 0, %v44
  %v46 = vrot.slane %v41, %v45
  %48 = vmatprep.subr.mxu0 0.0
  %49 = vmatpush1.msra.mxu0 %v25
  %50 = vmatprep.subr.mxu0 0.0
  %51 = vmatpush1.msra.mxu0 %v26
  %52 = vmatprep.subr.mxu0 0.0
  %53 = vmatpush1.msra.mxu0 %v27
  %54 = vmatprep.subr.mxu0 0.0
  %55 = vmatpush1.msra.mxu0 %v28
  %56 = vmatprep.subr.mxu0 0.0
  %57 = vmatpush1.msra.mxu0 %v29
  %58 = vmatprep.subr.mxu0 0.0
  %59 = vmatpush1.msra.mxu0 %v30
  %60 = vmatprep.subr.mxu0 0.0
  %61 = vmatpush1.msra.mxu0 %v31
  %62 = vmatprep.subr.mxu0 0.0
  %63 = vmatpush1.msra.mxu0 %v32
  %64 = vmatprep.subr.mxu0 0.0
  %65 = vmatpush1.msra.mxu0 %v33
  %66 = vmatprep.subr.mxu0 0.0
  %67 = vmatpush1.msra.mxu0 %v34
  %68 = vmatprep.subr.mxu0 0.0
  %69 = vmatpush1.msra.mxu0 %v35
  %70 = vmatprep.subr.mxu0 0.0
  %71 = vmatpush1.msra.mxu0 %v36
  %72 = vmatprep.subr.mxu0 0.0
  %73 = vmatpush1.msra.mxu0 %v37
  %74 = vmatprep.subr.mxu0 0.0
  %75 = vmatpush1.msra.mxu0 %v38
  %76 = vmatprep.subr.mxu0 0.0
  %77 = vmatpush1.msra.mxu0 %v39
  %78 = vmatprep.subr.mxu0 0.0
  %79 = vmatpush1.msra.mxu0 %v40
  %80 = vmatprep.subr.mxu0 0.0
  %81 = vmatpush1.msra.mxu0 0.0
  %82 = vmatprep.subr.mxu0 0.0
  %83 = vmatpush1.msra.mxu0 0.0
  %84 = vmatprep.subr.mxu0 0.0
  %85 = vmatpush1.msra.mxu0 0.0
  %86 = vmatprep.subr.mxu0 0.0
  %87 = vmatpush1.msra.mxu0 0.0
  %88 = vmatprep.subr.mxu0 0.0
  %89 = vmatpush1.msra.mxu0 0.0
  %90 = vmatprep.subr.mxu0 0.0
  %91 = vmatpush1.msra.mxu0 0.0
  %92 = vmatprep.subr.mxu0 0.0
  %93 = vmatpush1.msra.mxu0 0.0
  %94 = vmatprep.subr.mxu0 0.0
  %95 = vmatpush1.msra.mxu0 0.0
  %96 = vmatprep.subr.mxu0 0.0
  %97 = vmatpush1.msra.mxu0 0.0
  %98 = vmatprep.subr.mxu0 0.0
  %99 = vmatpush1.msra.mxu0 0.0
  %100 = vmatprep.subr.mxu0 0.0
  %101 = vmatpush1.msra.mxu0 0.0
  %102 = vmatprep.subr.mxu0 0.0
  %103 = vmatpush1.msra.mxu0 0.0
  %104 = vmatprep.subr.mxu0 0.0
  %105 = vmatpush1.msra.mxu0 0.0
  %106 = vmatprep.subr.mxu0 0.0
  %107 = vmatpush1.msra.mxu0 0.0
  %108 = vmatprep.subr.mxu0 0.0
  %109 = vmatpush1.msra.mxu0 0.0
  %110 = vmatprep.subr.mxu0 0.0
  %111 = vmatpush1.msra.mxu0 0.0
  %112 = vmatprep.mubr.f32.mxu0 0.0
  %113 = vmatmul.mubr.f32.gmra.mrb[0].mxu0 %v14
  %v114 = vpop.f32.mrb[0].mxu0
  %v115 = vadd.f32 %v46, %v114
  %v116 = vpop.f32.mrb[0].mxu0
  %117 = vmatprep.mubr.f32.mxu0 0.0
  %118 = vmatmul.mubr.f32.gmra.mrb[0].mxu0 %v15
  %v119 = vpop.f32.mrb[0].mxu0
  %v120 = vadd.f32 %v46, %v119
  %v121 = vpop.f32.mrb[0].mxu0
  %122 = vmatprep.mubr.f32.mxu0 0.0
  %123 = vmatmul.mubr.f32.gmra.mrb[0].mxu0 %v16
  %v124 = vpop.f32.mrb[0].mxu0
  %v125 = vadd.f32 %v46, %v124
  %v126 = vpop.f32.mrb[0].mxu0
  %127 = vmatprep.mubr.f32.mxu0 0.0
  %128 = vmatmul.mubr.f32.gmra.mrb[0].mxu0 %v17
  %v129 = vpop.f32.mrb[0].mxu0
  %v130 = vadd.f32 %v46, %v129
  %v131 = vpop.f32.mrb[0].mxu0
  %132 = vmatprep.mubr.f32.mxu0 0.0
  %133 = vmatmul.mubr.f32.gmra.mrb[0].mxu0 %v18
  %v134 = vpop.f32.mrb[0].mxu0
  %v135 = vadd.f32 %v46, %v134
  %v136 = vpop.f32.mrb[0].mxu0
  %137 = vmatprep.mubr.f32.mxu0 0.0
  %138 = vmatmul.mubr.f32.gmra.mrb[0].mxu0 %v19
  %v139 = vpop.f32.mrb[0].mxu0
  %v140 = vadd.f32 %v46, %v139
  %v141 = vpop.f32.mrb[0].mxu0
  %142 = vmatprep.mubr.f32.mxu0 0.0
  %143 = vmatmul.mubr.f32.gmra.mrb[0].mxu0 %v20
  %v144 = vpop.f32.mrb[0].mxu0
  %v145 = vadd.f32 %v46, %v144
  %v146 = vpop.f32.mrb[0].mxu0
  %147 = vmatprep.mubr.f32.mxu0 0.0
  %148 = vmatmul.mubr.f32.gmra.mrb[0].mxu0 %v21
  %v149 = vpop.f32.mrb[0].mxu0
  %v150 = vadd.f32 %v46, %v149
  %v151 = vpop.f32.mrb[0].mxu0
  %152 = vmatprep.mubr.f32.mxu0 0.0
  %153 = vmatmul.mubr.f32.gmra.mrb[0].mxu0 %v22
  %v154 = vpop.f32.mrb[0].mxu0
  %v155 = vadd.f32 %v46, %v154
  %v156 = vpop.f32.mrb[0].mxu0
  %157 = vmatprep.mubr.f32.mxu0 0.0
  %158 = vmatmul.mubr.f32.gmra.mrb[0].mxu0 %v23
  %v159 = vpop.f32.mrb[0].mxu0
  %v160 = vadd.f32 %v46, %v159
  %v161 = vpop.f32.mrb[0].mxu0
  %162 = vmatprep.mubr.f32.mxu0 0.0
  %163 = vmatmul.mubr.f32.gmra.mrb[0].mxu0 %v24
  %v164 = vpop.f32.mrb[0].mxu0
  %v165 = vadd.f32 %v46, %v164
  %v166 = vpop.f32.mrb[0].mxu0
  %167 = vdwg.mxu0
  %vm168 = vcmp.ge.f32.partialorder %v115, 0.0
  %vm169 = vcmp.ge.f32.partialorder %v120, 0.0
  %vm170 = vcmp.ge.f32.partialorder %v125, 0.0
  %vm171 = vcmp.ge.f32.partialorder %v130, 0.0
  %vm172 = vcmp.ge.f32.partialorder %v135, 0.0
  %vm173 = vcmp.ge.f32.partialorder %v140, 0.0
  %vm174 = vcmp.ge.f32.partialorder %v145, 0.0
  %vm175 = vcmp.ge.f32.partialorder %v150, 0.0
  %vm176 = vcmp.ge.f32.partialorder %v155, 0.0
  %vm177 = vcmp.ge.f32.partialorder %v160, 0.0
  %vm178 = vcmp.ge.f32.partialorder %v165, 0.0
  %v179 = vmul.f32 %v115, 0.1
  %v180 = vmul.f32 %v120, 0.1
  %v181 = vmul.f32 %v125, 0.1
  %v182 = vmul.f32 %v130, 0.1
  %v183 = vmul.f32 %v135, 0.1
  %v184 = vmul.f32 %v140, 0.1
  %v185 = vmul.f32 %v145, 0.1
  %v186 = vmul.f32 %v150, 0.1
  %v187 = vmul.f32 %v155, 0.1
  %v188 = vmul.f32 %v160, 0.1
  %v189 = vmul.f32 %v165, 0.1
  %v190 = vsel %vm168, %v115, %v179
  %v191 = vsel %vm169, %v120, %v180
  %v192 = vsel %vm170, %v125, %v181
  %v193 = vsel %vm171, %v130, %v182
  %v194 = vsel %vm172, %v135, %v183
  %v195 = vsel %vm173, %v140, %v184
  %v196 = vsel %vm174, %v145, %v185
  %v197 = vsel %vm175, %v150, %v186
  %v198 = vsel %vm176, %v155, %v187
  %v199 = vsel %vm177, %v160, %v188
  %v200 = vsel %vm178, %v165, %v189
  %vm201 = vcmask 523264
  %202 = vst.msk [vmem:[%s3] sm:$0xff] %vm201, %v190
  %203 = vst.msk [vmem:[%s3 + $0x8] sm:$0xff] %vm201, %v191
  %204 = vst.msk [vmem:[%s3 + $0x10] sm:$0xff] %vm201, %v192
  %205 = vst.msk [vmem:[%s3 + $0x18] sm:$0xff] %vm201, %v193
  %206 = vst.msk [vmem:[%s3 + $0x20] sm:$0xff] %vm201, %v194
  %207 = vst.msk [vmem:[%s3 + $0x28] sm:$0xff] %vm201, %v195
  %208 = vst.msk [vmem:[%s3 + $0x30] sm:$0xff] %vm201, %v196
  %209 = vst.msk [vmem:[%s3 + $0x38] sm:$0xff] %vm201, %v197
  %210 = vst.msk [vmem:[%s3 + $0x40] sm:$0xff] %vm201, %v198
  %211 = vst.msk [vmem:[%s3 + $0x48] sm:$0xff] %vm201, %v199
  %212 = vst.msk [vmem:[%s3 + $0x50] sm:$0xff] %vm201, %v200
  // Predicated region
  $region14: #{gan_net_forward.21} parent=0 // pred_check
    _
  $region15: #{gan_net_forward.21} parent=0 // pred_check_branch
    %214 = sbr.rel (0) target = $region17
  $region16: #{gan_net_forward.21} parent=0 // pred_region
    _
  $region17: #{gan_net_forward.21} parent=0 // pred_fallthru
    _
  // Predicated region
  $region18: #{gan_net_forward.21} parent=0 // pred_check
    _
  $region19: #{gan_net_forward.21} parent=0 // pred_check_branch
    %216 = sbr.rel (0) target = $region21
  $region20: #{gan_net_forward.21} parent=0 // pred_region
    _
  $region21: #{gan_net_forward.21} parent=0 // pred_fallthru
    _

// kernel: gan_net_forward.19
$region0: #{gan_net_forward.19}
  #allocation0 [shape = 'u32[]', space=smem, size = 0x4, offset = 0x4, fixed_abs, tag = 'smem constant byte address 0x4 - core index']
  #allocation1 [shape = 'u32[144,128]{1,0:T(1,128)}', space=vmem, size = 0x12000, scoped, tag = 'internal scratch']
  %s0 = inlined_call_operand.vmem [shape: f32[72,256], index: 0, kind: input, shape index: {}]
  %s1 = inlined_call_operand.vmem [shape: f32[256,64], index: 1, kind: input, shape index: {}]
  %s2 = inlined_call_operand.vmem [shape: f32[1,64], index: 2, kind: input, shape index: {}]
  %s3 = inlined_call_operand.vmem [shape: f32[72,64], index: 3, kind: output, shape index: {}]
  %s4 = sld [smem:[#allocation0]]
  $region22: #{gan_net_forward.19} parent=0
    _
  %s6 = ssub.s32 1, %s4
  %s7 = scalar_select 0, %s6, %s4
  // Predicated region
  $region2: #{gan_net_forward.19} parent=0 // pred_check
    _
  $region3: #{gan_net_forward.19} parent=0 // pred_check_branch
    %9 = sbr.rel (0) target = $region5
  $region4: #{gan_net_forward.19} parent=0 // pred_region
    _
  $region5: #{gan_net_forward.19} parent=0 // pred_fallthru
    _
  // Predicated region
  $region6: #{gan_net_forward.19} parent=0 // pred_check
    _
  $region7: #{gan_net_forward.19} parent=0 // pred_check_branch
    %11 = sbr.rel (0) target = $region9
  $region8: #{gan_net_forward.19} parent=0 // pred_region
    _
  $region9: #{gan_net_forward.19} parent=0 // pred_fallthru
    _
  // Predicated region
  $region10: #{gan_net_forward.19} parent=0 // pred_check
    _
  $region11: #{gan_net_forward.19} parent=0 // pred_check_branch
    %13 = sbr.rel (0) target = $region13
  $region12: #{gan_net_forward.19} parent=0 // pred_region
    _
  $region13: #{gan_net_forward.19} parent=0 // pred_fallthru
    _
  %v14 = vld [vmem:[%s0] sm:$0xff]
  %v15 = vld [vmem:[%s0 + $0x8] sm:$0xff]
  %v16 = vld [vmem:[%s0 + $0x10] sm:$0xff]
  %v17 = vld [vmem:[%s0 + $0x18] sm:$0xff]
  %v18 = vld [vmem:[%s0 + $0x20] sm:$0xff]
  %v19 = vld [vmem:[%s0 + $0x28] sm:$0xff]
  %v20 = vld [vmem:[%s0 + $0x30] sm:$0xff]
  %v21 = vld [vmem:[%s0 + $0x38] sm:$0xff]
  %v22 = vld [vmem:[%s0 + $0x40] sm:$0xff]
  %v23 = vld [vmem:[%s0 + $0x48] sm:$0xff]
  %v24 = vld [vmem:[%s0 + $0x50] sm:$0xff]
  %v25 = vld [vmem:[%s0 + $0x58] sm:$0xff]
  %v26 = vld [vmem:[%s0 + $0x60] sm:$0xff]
  %v27 = vld [vmem:[%s0 + $0x68] sm:$0xff]
  %v28 = vld [vmem:[%s0 + $0x70] sm:$0xff]
  %v29 = vld [vmem:[%s0 + $0x78] sm:$0xff]
  %v30 = vld [vmem:[%s0 + $0x80] sm:$0xff]
  %v31 = vld [vmem:[%s0 + $0x88] sm:$0xff]
  %v32 = vld [vmem:[%s1] sm:$0xff]
  %v33 = vld [vmem:[%s1 + $0x8] sm:$0xff]
  %v34 = vld [vmem:[%s1 + $0x10] sm:$0xff]
  %v35 = vld [vmem:[%s1 + $0x18] sm:$0xff]
  %v36 = vld [vmem:[%s1 + $0x20] sm:$0xff]
  %v37 = vld [vmem:[%s1 + $0x28] sm:$0xff]
  %v38 = vld [vmem:[%s1 + $0x30] sm:$0xff]
  %v39 = vld [vmem:[%s1 + $0x38] sm:$0xff]
  %v40 = vld [vmem:[%s1 + $0x40] sm:$0xff]
  %v41 = vld [vmem:[%s1 + $0x48] sm:$0xff]
  %v42 = vld [vmem:[%s1 + $0x50] sm:$0xff]
  %v43 = vld [vmem:[%s1 + $0x58] sm:$0xff]
  %v44 = vld [vmem:[%s1 + $0x60] sm:$0xff]
  %v45 = vld [vmem:[%s1 + $0x68] sm:$0xff]
  %v46 = vld [vmem:[%s1 + $0x70] sm:$0xff]
  %v47 = vld [vmem:[%s1 + $0x78] sm:$0xff]
  %v48 = vld [vmem:[%s1 + $0x80] sm:$0xff]
  %v49 = vld [vmem:[%s1 + $0x88] sm:$0xff]
  %v50 = vld [vmem:[%s1 + $0x90] sm:$0xff]
  %v51 = vld [vmem:[%s1 + $0x98] sm:$0xff]
  %v52 = vld [vmem:[%s1 + $0xa0] sm:$0xff]
  %v53 = vld [vmem:[%s1 + $0xa8] sm:$0xff]
  %v54 = vld [vmem:[%s1 + $0xb0] sm:$0xff]
  %v55 = vld [vmem:[%s1 + $0xb8] sm:$0xff]
  %v56 = vld [vmem:[%s1 + $0xc0] sm:$0xff]
  %v57 = vld [vmem:[%s1 + $0xc8] sm:$0xff]
  %v58 = vld [vmem:[%s1 + $0xd0] sm:$0xff]
  %v59 = vld [vmem:[%s1 + $0xd8] sm:$0xff]
  %v60 = vld [vmem:[%s1 + $0xe0] sm:$0xff]
  %v61 = vld [vmem:[%s1 + $0xe8] sm:$0xff]
  %v62 = vld [vmem:[%s1 + $0xf0] sm:$0xff]
  %v63 = vld [vmem:[%s1 + $0xf8] sm:$0xff]
  %v64 = vld [vmem:[%s2] sm:$0x1]
  %v66 = vlaneseq
  %v67 = vshrl.u32 %v66, 7
  %v68 = vsub.s32 0, %v67
  %v69 = vrot.slane %v64, %v68
  %71 = vmatprep.subr.mxu0 0.0
  %72 = vmatpush1.msra.mxu0 %v32
  %73 = vmatprep.subr.mxu0 0.0
  %74 = vmatpush1.msra.mxu0 %v33
  %75 = vmatprep.subr.mxu0 0.0
  %76 = vmatpush1.msra.mxu0 %v34
  %77 = vmatprep.subr.mxu0 0.0
  %78 = vmatpush1.msra.mxu0 %v35
  %79 = vmatprep.subr.mxu0 0.0
  %80 = vmatpush1.msra.mxu0 %v36
  %81 = vmatprep.subr.mxu0 0.0
  %82 = vmatpush1.msra.mxu0 %v37
  %83 = vmatprep.subr.mxu0 0.0
  %84 = vmatpush1.msra.mxu0 %v38
  %85 = vmatprep.subr.mxu0 0.0
  %86 = vmatpush1.msra.mxu0 %v39
  %87 = vmatprep.subr.mxu0 0.0
  %88 = vmatpush1.msra.mxu0 %v40
  %89 = vmatprep.subr.mxu0 0.0
  %90 = vmatpush1.msra.mxu0 %v41
  %91 = vmatprep.subr.mxu0 0.0
  %92 = vmatpush1.msra.mxu0 %v42
  %93 = vmatprep.subr.mxu0 0.0
  %94 = vmatpush1.msra.mxu0 %v43
  %95 = vmatprep.subr.mxu0 0.0
  %96 = vmatpush1.msra.mxu0 %v44
  %97 = vmatprep.subr.mxu0 0.0
  %98 = vmatpush1.msra.mxu0 %v45
  %99 = vmatprep.subr.mxu0 0.0
  %100 = vmatpush1.msra.mxu0 %v46
  %101 = vmatprep.subr.mxu0 0.0
  %102 = vmatpush1.msra.mxu0 %v47
  %103 = vmatprep.subr.mxu0 0.0
  %104 = vmatpush1.msra.mxu0 %v48
  %105 = vmatprep.subr.mxu0 0.0
  %106 = vmatpush1.msra.mxu0 %v49
  %107 = vmatprep.subr.mxu0 0.0
  %108 = vmatpush1.msra.mxu0 %v50
  %109 = vmatprep.subr.mxu0 0.0
  %110 = vmatpush1.msra.mxu0 %v51
  %111 = vmatprep.subr.mxu0 0.0
  %112 = vmatpush1.msra.mxu0 %v52
  %113 = vmatprep.subr.mxu0 0.0
  %114 = vmatpush1.msra.mxu0 %v53
  %115 = vmatprep.subr.mxu0 0.0
  %116 = vmatpush1.msra.mxu0 %v54
  %117 = vmatprep.subr.mxu0 0.0
  %118 = vmatpush1.msra.mxu0 %v55
  %119 = vmatprep.subr.mxu0 0.0
  %120 = vmatpush1.msra.mxu0 %v56
  %121 = vmatprep.subr.mxu0 0.0
  %122 = vmatpush1.msra.mxu0 %v57
  %123 = vmatprep.subr.mxu0 0.0
  %124 = vmatpush1.msra.mxu0 %v58
  %125 = vmatprep.subr.mxu0 0.0
  %126 = vmatpush1.msra.mxu0 %v59
  %127 = vmatprep.subr.mxu0 0.0
  %128 = vmatpush1.msra.mxu0 %v60
  %129 = vmatprep.subr.mxu0 0.0
  %130 = vmatpush1.msra.mxu0 %v61
  %131 = vmatprep.subr.mxu0 0.0
  %132 = vmatpush1.msra.mxu0 %v62
  %133 = vmatprep.subr.mxu0 0.0
  %134 = vmatpush1.msra.mxu0 %v63
  %135 = vmatprep.mubr.f32.mxu0 %v15
  %136 = vmatmul.mubr.f32.gmra.mrb[0].mxu0 %v14
  %v137 = vpop.f32.mrb[0].mxu0
  %v138 = vadd.f32 %v69, %v137
  %v139 = vpop.f32.mrb[0].mxu0
  %140 = vmatprep.mubr.f32.mxu0 %v17
  %141 = vmatmul.mubr.f32.gmra.mrb[0].mxu0 %v16
  %v142 = vpop.f32.mrb[0].mxu0
  %v143 = vadd.f32 %v69, %v142
  %v144 = vpop.f32.mrb[0].mxu0
  %145 = vmatprep.mubr.f32.mxu0 %v19
  %146 = vmatmul.mubr.f32.gmra.mrb[0].mxu0 %v18
  %v147 = vpop.f32.mrb[0].mxu0
  %v148 = vadd.f32 %v69, %v147
  %v149 = vpop.f32.mrb[0].mxu0
  %150 = vmatprep.mubr.f32.mxu0 %v21
  %151 = vmatmul.mubr.f32.gmra.mrb[0].mxu0 %v20
  %v152 = vpop.f32.mrb[0].mxu0
  %v153 = vadd.f32 %v69, %v152
  %v154 = vpop.f32.mrb[0].mxu0
  %155 = vmatprep.mubr.f32.mxu0 %v23
  %156 = vmatmul.mubr.f32.gmra.mrb[0].mxu0 %v22
  %v157 = vpop.f32.mrb[0].mxu0
  %v158 = vadd.f32 %v69, %v157
  %v159 = vpop.f32.mrb[0].mxu0
  %160 = vmatprep.mubr.f32.mxu0 %v25
  %161 = vmatmul.mubr.f32.gmra.mrb[0].mxu0 %v24
  %v162 = vpop.f32.mrb[0].mxu0
  %v163 = vadd.f32 %v69, %v162
  %v164 = vpop.f32.mrb[0].mxu0
  %165 = vmatprep.mubr.f32.mxu0 %v27
  %166 = vmatmul.mubr.f32.gmra.mrb[0].mxu0 %v26
  %v167 = vpop.f32.mrb[0].mxu0
  %v168 = vadd.f32 %v69, %v167
  %v169 = vpop.f32.mrb[0].mxu0
  %170 = vmatprep.mubr.f32.mxu0 %v29
  %171 = vmatmul.mubr.f32.gmra.mrb[0].mxu0 %v28
  %v172 = vpop.f32.mrb[0].mxu0
  %v173 = vadd.f32 %v69, %v172
  %v174 = vpop.f32.mrb[0].mxu0
  %175 = vmatprep.mubr.f32.mxu0 %v31
  %176 = vmatmul.mubr.f32.gmra.mrb[0].mxu0 %v30
  %v177 = vpop.f32.mrb[0].mxu0
  %v178 = vadd.f32 %v69, %v177
  %v179 = vpop.f32.mrb[0].mxu0
  %180 = vdwg.mxu0
  %vm181 = vcmp.ge.f32.partialorder %v138, 0.0
  %vm182 = vcmp.ge.f32.partialorder %v143, 0.0
  %vm183 = vcmp.ge.f32.partialorder %v148, 0.0
  %vm184 = vcmp.ge.f32.partialorder %v153, 0.0
  %vm185 = vcmp.ge.f32.partialorder %v158, 0.0
  %vm186 = vcmp.ge.f32.partialorder %v163, 0.0
  %vm187 = vcmp.ge.f32.partialorder %v168, 0.0
  %vm188 = vcmp.ge.f32.partialorder %v173, 0.0
  %vm189 = vcmp.ge.f32.partialorder %v178, 0.0
  %v190 = vmul.f32 %v138, 0.1
  %v191 = vmul.f32 %v143, 0.1
  %v192 = vmul.f32 %v148, 0.1
  %v193 = vmul.f32 %v153, 0.1
  %v194 = vmul.f32 %v158, 0.1
  %v195 = vmul.f32 %v163, 0.1
  %v196 = vmul.f32 %v168, 0.1
  %v197 = vmul.f32 %v173, 0.1
  %v198 = vmul.f32 %v178, 0.1
  %v199 = vsel %vm181, %v138, %v190
  %v200 = vsel %vm182, %v143, %v191
  %v201 = vsel %vm183, %v148, %v192
  %v202 = vsel %vm184, %v153, %v193
  %v203 = vsel %vm185, %v158, %v194
  %v204 = vsel %vm186, %v163, %v195
  %v205 = vsel %vm187, %v168, %v196
  %v206 = vsel %vm188, %v173, %v197
  %v207 = vsel %vm189, %v178, %v198
  %vm208 = vcmask 523264
  %209 = vst.msk [vmem:[%s3] sm:$0xff] %vm208, %v199
  %210 = vst.msk [vmem:[%s3 + $0x8] sm:$0xff] %vm208, %v200
  %211 = vst.msk [vmem:[%s3 + $0x10] sm:$0xff] %vm208, %v201
  %212 = vst.msk [vmem:[%s3 + $0x18] sm:$0xff] %vm208, %v202
  %213 = vst.msk [vmem:[%s3 + $0x20] sm:$0xff] %vm208, %v203
  %214 = vst.msk [vmem:[%s3 + $0x28] sm:$0xff] %vm208, %v204
  %215 = vst.msk [vmem:[%s3 + $0x30] sm:$0xff] %vm208, %v205
  %216 = vst.msk [vmem:[%s3 + $0x38] sm:$0xff] %vm208, %v206
  %217 = vst.msk [vmem:[%s3 + $0x40] sm:$0xff] %vm208, %v207
  // Predicated region
  $region14: #{gan_net_forward.19} parent=0 // pred_check
    _
  $region15: #{gan_net_forward.19} parent=0 // pred_check_branch
    %219 = sbr.rel (0) target = $region17
  $region16: #{gan_net_forward.19} parent=0 // pred_region
    _
  $region17: #{gan_net_forward.19} parent=0 // pred_fallthru
    _
  // Predicated region
  $region18: #{gan_net_forward.19} parent=0 // pred_check
    _
  $region19: #{gan_net_forward.19} parent=0 // pred_check_branch
    %221 = sbr.rel (0) target = $region21
  $region20: #{gan_net_forward.19} parent=0 // pred_region
    _
  $region21: #{gan_net_forward.19} parent=0 // pred_fallthru
    _

// kernel: gan_net_forward.26
$region0: #{gan_net_forward.26}
  #allocation0 [shape = 'u32[]', space=smem, size = 0x4, offset = 0x4, fixed_abs, tag = 'smem constant byte address 0x4 - core index']
  #allocation1 [shape = 'u32[144,128]{1,0:T(1,128)}', space=vmem, size = 0x12000, scoped, tag = 'internal scratch']
  %s0 = inlined_call_operand.vmem [shape: f32[392,256], index: 0, kind: input, shape index: {}]
  %s1 = inlined_call_operand.vmem [shape: f32[256,32], index: 1, kind: input, shape index: {}]
  %s2 = inlined_call_operand.vmem [shape: f32[1,32], index: 2, kind: input, shape index: {}]
  %s3 = inlined_call_operand.vmem [shape: f32[392,32], index: 3, kind: output, shape index: {}]
  %s4 = sld [smem:[#allocation0]]
  $region22: #{gan_net_forward.26} parent=0
    _
  %s6 = ssub.s32 1, %s4
  %s7 = scalar_select 0, %s6, %s4
  // Predicated region
  $region2: #{gan_net_forward.26} parent=0 // pred_check
    _
  $region3: #{gan_net_forward.26} parent=0 // pred_check_branch
    %9 = sbr.rel (0) target = $region5
  $region4: #{gan_net_forward.26} parent=0 // pred_region
    _
  $region5: #{gan_net_forward.26} parent=0 // pred_fallthru
    _
  // Predicated region
  $region6: #{gan_net_forward.26} parent=0 // pred_check
    _
  $region7: #{gan_net_forward.26} parent=0 // pred_check_branch
    %11 = sbr.rel (0) target = $region9
  $region8: #{gan_net_forward.26} parent=0 // pred_region
    _
  $region9: #{gan_net_forward.26} parent=0 // pred_fallthru
    _
  // Predicated region
  $region10: #{gan_net_forward.26} parent=0 // pred_check
    _
  $region11: #{gan_net_forward.26} parent=0 // pred_check_branch
    %13 = sbr.rel (0) target = $region13
  $region12: #{gan_net_forward.26} parent=0 // pred_region
    _
  $region13: #{gan_net_forward.26} parent=0 // pred_fallthru
    _
  %v14 = vld [vmem:[%s0] sm:$0xff]
  %v15 = vld [vmem:[%s0 + $0x8] sm:$0xff]
  %v16 = vld [vmem:[%s0 + $0x10] sm:$0xff]
  %v17 = vld [vmem:[%s0 + $0x18] sm:$0xff]
  %v18 = vld [vmem:[%s0 + $0x20] sm:$0xff]
  %v19 = vld [vmem:[%s0 + $0x28] sm:$0xff]
  %v20 = vld [vmem:[%s0 + $0x30] sm:$0xff]
  %v21 = vld [vmem:[%s0 + $0x38] sm:$0xff]
  %v22 = vld [vmem:[%s0 + $0x40] sm:$0xff]
  %v23 = vld [vmem:[%s0 + $0x48] sm:$0xff]
  %v24 = vld [vmem:[%s0 + $0x50] sm:$0xff]
  %v25 = vld [vmem:[%s0 + $0x58] sm:$0xff]
  %v26 = vld [vmem:[%s0 + $0x60] sm:$0xff]
  %v27 = vld [vmem:[%s0 + $0x68] sm:$0xff]
  %v28 = vld [vmem:[%s0 + $0x70] sm:$0xff]
  %v29 = vld [vmem:[%s0 + $0x78] sm:$0xff]
  %v30 = vld [vmem:[%s0 + $0x80] sm:$0xff]
  %v31 = vld [vmem:[%s0 + $0x88] sm:$0xff]
  %v32 = vld [vmem:[%s0 + $0x90] sm:$0xff]
  %v33 = vld [vmem:[%s0 + $0x98] sm:$0xff]
  %v34 = vld [vmem:[%s0 + $0xa0] sm:$0xff]
  %v35 = vld [vmem:[%s0 + $0xa8] sm:$0xff]
  %v36 = vld [vmem:[%s0 + $0xb0] sm:$0xff]
  %v37 = vld [vmem:[%s0 + $0xb8] sm:$0xff]
  %v38 = vld [vmem:[%s0 + $0xc0] sm:$0xff]
  %v39 = vld [vmem:[%s0 + $0xc8] sm:$0xff]
  %v40 = vld [vmem:[%s0 + $0xd0] sm:$0xff]
  %v41 = vld [vmem:[%s0 + $0xd8] sm:$0xff]
  %v42 = vld [vmem:[%s0 + $0xe0] sm:$0xff]
  %v43 = vld [vmem:[%s0 + $0xe8] sm:$0xff]
  %v44 = vld [vmem:[%s0 + $0xf0] sm:$0xff]
  %v45 = vld [vmem:[%s0 + $0xf8] sm:$0xff]
  %v46 = vld [vmem:[%s0 + $0x100] sm:$0xff]
  %v47 = vld [vmem:[%s0 + $0x108] sm:$0xff]
  %v48 = vld [vmem:[%s0 + $0x110] sm:$0xff]
  %v49 = vld [vmem:[%s0 + $0x118] sm:$0xff]
  %v50 = vld [vmem:[%s0 + $0x120] sm:$0xff]
  %v51 = vld [vmem:[%s0 + $0x128] sm:$0xff]
  %v52 = vld [vmem:[%s0 + $0x130] sm:$0xff]
  %v53 = vld [vmem:[%s0 + $0x138] sm:$0xff]
  %v54 = vld [vmem:[%s0 + $0x140] sm:$0xff]
  %v55 = vld [vmem:[%s0 + $0x148] sm:$0xff]
  %v56 = vld [vmem:[%s0 + $0x150] sm:$0xff]
  %v57 = vld [vmem:[%s0 + $0x158] sm:$0xff]
  %v58 = vld [vmem:[%s0 + $0x160] sm:$0xff]
  %v59 = vld [vmem:[%s0 + $0x168] sm:$0xff]
  %v60 = vld [vmem:[%s0 + $0x170] sm:$0xff]
  %v61 = vld [vmem:[%s0 + $0x178] sm:$0xff]
  %v62 = vld [vmem:[%s0 + $0x180] sm:$0xff]
  %v63 = vld [vmem:[%s0 + $0x188] sm:$0xff]
  %v64 = vld [vmem:[%s0 + $0x190] sm:$0xff]
  %v65 = vld [vmem:[%s0 + $0x198] sm:$0xff]
  %v66 = vld [vmem:[%s0 + $0x1a0] sm:$0xff]
  %v67 = vld [vmem:[%s0 + $0x1a8] sm:$0xff]
  %v68 = vld [vmem:[%s0 + $0x1b0] sm:$0xff]
  %v69 = vld [vmem:[%s0 + $0x1b8] sm:$0xff]
  %v70 = vld [vmem:[%s0 + $0x1c0] sm:$0xff]
  %v71 = vld [vmem:[%s0 + $0x1c8] sm:$0xff]
  %v72 = vld [vmem:[%s0 + $0x1d0] sm:$0xff]
  %v73 = vld [vmem:[%s0 + $0x1d8] sm:$0xff]
  %v74 = vld [vmem:[%s0 + $0x1e0] sm:$0xff]
  %v75 = vld [vmem:[%s0 + $0x1e8] sm:$0xff]
  %v76 = vld [vmem:[%s0 + $0x1f0] sm:$0xff]
  %v77 = vld [vmem:[%s0 + $0x1f8] sm:$0xff]
  %v78 = vld [vmem:[%s0 + $0x200] sm:$0xff]
  %v79 = vld [vmem:[%s0 + $0x208] sm:$0xff]
  %v80 = vld [vmem:[%s0 + $0x210] sm:$0xff]
  %v81 = vld [vmem:[%s0 + $0x218] sm:$0xff]
  %v82 = vld [vmem:[%s0 + $0x220] sm:$0xff]
  %v83 = vld [vmem:[%s0 + $0x228] sm:$0xff]
  %v84 = vld [vmem:[%s0 + $0x230] sm:$0xff]
  %v85 = vld [vmem:[%s0 + $0x238] sm:$0xff]
  %v86 = vld [vmem:[%s0 + $0x240] sm:$0xff]
  %v87 = vld [vmem:[%s0 + $0x248] sm:$0xff]
  %v88 = vld [vmem:[%s0 + $0x250] sm:$0xff]
  %v89 = vld [vmem:[%s0 + $0x258] sm:$0xff]
  %v90 = vld [vmem:[%s0 + $0x260] sm:$0xff]
  %v91 = vld [vmem:[%s0 + $0x268] sm:$0xff]
  %v92 = vld [vmem:[%s0 + $0x270] sm:$0xff]
  %v93 = vld [vmem:[%s0 + $0x278] sm:$0xff]
  %v94 = vld [vmem:[%s0 + $0x280] sm:$0xff]
  %v95 = vld [vmem:[%s0 + $0x288] sm:$0xff]
  %v96 = vld [vmem:[%s0 + $0x290] sm:$0xff]
  %v97 = vld [vmem:[%s0 + $0x298] sm:$0xff]
  %v98 = vld [vmem:[%s0 + $0x2a0] sm:$0xff]
  %v99 = vld [vmem:[%s0 + $0x2a8] sm:$0xff]
  %v100 = vld [vmem:[%s0 + $0x2b0] sm:$0xff]
  %v101 = vld [vmem:[%s0 + $0x2b8] sm:$0xff]
  %v102 = vld [vmem:[%s0 + $0x2c0] sm:$0xff]
  %v103 = vld [vmem:[%s0 + $0x2c8] sm:$0xff]
  %v104 = vld [vmem:[%s0 + $0x2d0] sm:$0xff]
  %v105 = vld [vmem:[%s0 + $0x2d8] sm:$0xff]
  %v106 = vld [vmem:[%s0 + $0x2e0] sm:$0xff]
  %v107 = vld [vmem:[%s0 + $0x2e8] sm:$0xff]
  %v108 = vld [vmem:[%s0 + $0x2f0] sm:$0xff]
  %v109 = vld [vmem:[%s0 + $0x2f8] sm:$0xff]
  %v110 = vld [vmem:[%s0 + $0x300] sm:$0xff]
  %v111 = vld [vmem:[%s0 + $0x308] sm:$0xff]
  %v112 = vld [vmem:[%s1] sm:$0xff]
  %v113 = vld [vmem:[%s1 + $0x8] sm:$0xff]
  %v114 = vld [vmem:[%s1 + $0x10] sm:$0xff]
  %v115 = vld [vmem:[%s1 + $0x18] sm:$0xff]
  %v116 = vld [vmem:[%s1 + $0x20] sm:$0xff]
  %v117 = vld [vmem:[%s1 + $0x28] sm:$0xff]
  %v118 = vld [vmem:[%s1 + $0x30] sm:$0xff]
  %v119 = vld [vmem:[%s1 + $0x38] sm:$0xff]
  %v120 = vld [vmem:[%s1 + $0x40] sm:$0xff]
  %v121 = vld [vmem:[%s1 + $0x48] sm:$0xff]
  %v122 = vld [vmem:[%s1 + $0x50] sm:$0xff]
  %v123 = vld [vmem:[%s1 + $0x58] sm:$0xff]
  %v124 = vld [vmem:[%s1 + $0x60] sm:$0xff]
  %v125 = vld [vmem:[%s1 + $0x68] sm:$0xff]
  %v126 = vld [vmem:[%s1 + $0x70] sm:$0xff]
  %v127 = vld [vmem:[%s1 + $0x78] sm:$0xff]
  %v128 = vld [vmem:[%s1 + $0x80] sm:$0xff]
  %v129 = vld [vmem:[%s1 + $0x88] sm:$0xff]
  %v130 = vld [vmem:[%s1 + $0x90] sm:$0xff]
  %v131 = vld [vmem:[%s1 + $0x98] sm:$0xff]
  %v132 = vld [vmem:[%s1 + $0xa0] sm:$0xff]
  %v133 = vld [vmem:[%s1 + $0xa8] sm:$0xff]
  %v134 = vld [vmem:[%s1 + $0xb0] sm:$0xff]
  %v135 = vld [vmem:[%s1 + $0xb8] sm:$0xff]
  %v136 = vld [vmem:[%s1 + $0xc0] sm:$0xff]
  %v137 = vld [vmem:[%s1 + $0xc8] sm:$0xff]
  %v138 = vld [vmem:[%s1 + $0xd0] sm:$0xff]
  %v139 = vld [vmem:[%s1 + $0xd8] sm:$0xff]
  %v140 = vld [vmem:[%s1 + $0xe0] sm:$0xff]
  %v141 = vld [vmem:[%s1 + $0xe8] sm:$0xff]
  %v142 = vld [vmem:[%s1 + $0xf0] sm:$0xff]
  %v143 = vld [vmem:[%s1 + $0xf8] sm:$0xff]
  %v144 = vld [vmem:[%s2] sm:$0x1]
  %v146 = vlaneseq
  %v147 = vshrl.u32 %v146, 7
  %v148 = vsub.s32 0, %v147
  %v149 = vrot.slane %v144, %v148
  %151 = vmatprep.subr.mxu0 0.0
  %152 = vmatpush1.msra.mxu0 %v112
  %153 = vmatprep.subr.mxu0 0.0
  %154 = vmatpush1.msra.mxu0 %v113
  %155 = vmatprep.subr.mxu0 0.0
  %156 = vmatpush1.msra.mxu0 %v114
  %157 = vmatprep.subr.mxu0 0.0
  %158 = vmatpush1.msra.mxu0 %v115
  %159 = vmatprep.subr.mxu0 0.0
  %160 = vmatpush1.msra.mxu0 %v116
  %161 = vmatprep.subr.mxu0 0.0
  %162 = vmatpush1.msra.mxu0 %v117
  %163 = vmatprep.subr.mxu0 0.0
  %164 = vmatpush1.msra.mxu0 %v118
  %165 = vmatprep.subr.mxu0 0.0
  %166 = vmatpush1.msra.mxu0 %v119
  %167 = vmatprep.subr.mxu0 0.0
  %168 = vmatpush1.msra.mxu0 %v120
  %169 = vmatprep.subr.mxu0 0.0
  %170 = vmatpush1.msra.mxu0 %v121
  %171 = vmatprep.subr.mxu0 0.0
  %172 = vmatpush1.msra.mxu0 %v122
  %173 = vmatprep.subr.mxu0 0.0
  %174 = vmatpush1.msra.mxu0 %v123
  %175 = vmatprep.subr.mxu0 0.0
  %176 = vmatpush1.msra.mxu0 %v124
  %177 = vmatprep.subr.mxu0 0.0
  %178 = vmatpush1.msra.mxu0 %v125
  %179 = vmatprep.subr.mxu0 0.0
  %180 = vmatpush1.msra.mxu0 %v126
  %181 = vmatprep.subr.mxu0 0.0
  %182 = vmatpush1.msra.mxu0 %v127
  %183 = vmatprep.subr.mxu0 0.0
  %184 = vmatpush1.msra.mxu0 %v128
  %185 = vmatprep.subr.mxu0 0.0
  %186 = vmatpush1.msra.mxu0 %v129
  %187 = vmatprep.subr.mxu0 0.0
  %188 = vmatpush1.msra.mxu0 %v130
  %189 = vmatprep.subr.mxu0 0.0
  %190 = vmatpush1.msra.mxu0 %v131
  %191 = vmatprep.subr.mxu0 0.0
  %192 = vmatpush1.msra.mxu0 %v132
  %193 = vmatprep.subr.mxu0 0.0
  %194 = vmatpush1.msra.mxu0 %v133
  %195 = vmatprep.subr.mxu0 0.0
  %196 = vmatpush1.msra.mxu0 %v134
  %197 = vmatprep.subr.mxu0 0.0
  %198 = vmatpush1.msra.mxu0 %v135
  %199 = vmatprep.subr.mxu0 0.0
  %200 = vmatpush1.msra.mxu0 %v136
  %201 = vmatprep.subr.mxu0 0.0
  %202 = vmatpush1.msra.mxu0 %v137
  %203 = vmatprep.subr.mxu0 0.0
  %204 = vmatpush1.msra.mxu0 %v138
  %205 = vmatprep.subr.mxu0 0.0
  %206 = vmatpush1.msra.mxu0 %v139
  %207 = vmatprep.subr.mxu0 0.0
  %208 = vmatpush1.msra.mxu0 %v140
  %209 = vmatprep.subr.mxu0 0.0
  %210 = vmatpush1.msra.mxu0 %v141
  %211 = vmatprep.subr.mxu0 0.0
  %212 = vmatpush1.msra.mxu0 %v142
  %213 = vmatprep.subr.mxu0 0.0
  %214 = vmatpush1.msra.mxu0 %v143
  %215 = vmatprep.mubr.f32.mxu0 %v15
  %216 = vmatmul.mubr.f32.gmra.mrb[0].mxu0 %v14
  %v217 = vpop.f32.mrb[0].mxu0
  %v218 = vadd.f32 %v149, %v217
  %v219 = vpop.f32.mrb[0].mxu0
  %220 = vmatprep.mubr.f32.mxu0 %v17
  %221 = vmatmul.mubr.f32.gmra.mrb[0].mxu0 %v16
  %v222 = vpop.f32.mrb[0].mxu0
  %v223 = vadd.f32 %v149, %v222
  %v224 = vpop.f32.mrb[0].mxu0
  %225 = vmatprep.mubr.f32.mxu0 %v19
  %226 = vmatmul.mubr.f32.gmra.mrb[0].mxu0 %v18
  %v227 = vpop.f32.mrb[0].mxu0
  %v228 = vadd.f32 %v149, %v227
  %v229 = vpop.f32.mrb[0].mxu0
  %230 = vmatprep.mubr.f32.mxu0 %v21
  %231 = vmatmul.mubr.f32.gmra.mrb[0].mxu0 %v20
  %v232 = vpop.f32.mrb[0].mxu0
  %v233 = vadd.f32 %v149, %v232
  %v234 = vpop.f32.mrb[0].mxu0
  %235 = vmatprep.mubr.f32.mxu0 %v23
  %236 = vmatmul.mubr.f32.gmra.mrb[0].mxu0 %v22
  %v237 = vpop.f32.mrb[0].mxu0
  %v238 = vadd.f32 %v149, %v237
  %v239 = vpop.f32.mrb[0].mxu0
  %240 = vmatprep.mubr.f32.mxu0 %v25
  %241 = vmatmul.mubr.f32.gmra.mrb[0].mxu0 %v24
  %v242 = vpop.f32.mrb[0].mxu0
  %v243 = vadd.f32 %v149, %v242
  %v244 = vpop.f32.mrb[0].mxu0
  %245 = vmatprep.mubr.f32.mxu0 %v27
  %246 = vmatmul.mubr.f32.gmra.mrb[0].mxu0 %v26
  %v247 = vpop.f32.mrb[0].mxu0
  %v248 = vadd.f32 %v149, %v247
  %v249 = vpop.f32.mrb[0].mxu0
  %250 = vmatprep.mubr.f32.mxu0 %v29
  %251 = vmatmul.mubr.f32.gmra.mrb[0].mxu0 %v28
  %v252 = vpop.f32.mrb[0].mxu0
  %v253 = vadd.f32 %v149, %v252
  %v254 = vpop.f32.mrb[0].mxu0
  %255 = vmatprep.mubr.f32.mxu0 %v31
  %256 = vmatmul.mubr.f32.gmra.mrb[0].mxu0 %v30
  %v257 = vpop.f32.mrb[0].mxu0
  %v258 = vadd.f32 %v149, %v257
  %v259 = vpop.f32.mrb[0].mxu0
  %260 = vmatprep.mubr.f32.mxu0 %v33
  %261 = vmatmul.mubr.f32.gmra.mrb[0].mxu0 %v32
  %v262 = vpop.f32.mrb[0].mxu0
  %v263 = vadd.f32 %v149, %v262
  %v264 = vpop.f32.mrb[0].mxu0
  %265 = vmatprep.mubr.f32.mxu0 %v35
  %266 = vmatmul.mubr.f32.gmra.mrb[0].mxu0 %v34
  %v267 = vpop.f32.mrb[0].mxu0
  %v268 = vadd.f32 %v149, %v267
  %v269 = vpop.f32.mrb[0].mxu0
  %270 = vmatprep.mubr.f32.mxu0 %v37
  %271 = vmatmul.mubr.f32.gmra.mrb[0].mxu0 %v36
  %v272 = vpop.f32.mrb[0].mxu0
  %v273 = vadd.f32 %v149, %v272
  %v274 = vpop.f32.mrb[0].mxu0
  %275 = vmatprep.mubr.f32.mxu0 %v39
  %276 = vmatmul.mubr.f32.gmra.mrb[0].mxu0 %v38
  %v277 = vpop.f32.mrb[0].mxu0
  %v278 = vadd.f32 %v149, %v277
  %v279 = vpop.f32.mrb[0].mxu0
  %280 = vmatprep.mubr.f32.mxu0 %v41
  %281 = vmatmul.mubr.f32.gmra.mrb[0].mxu0 %v40
  %v282 = vpop.f32.mrb[0].mxu0
  %v283 = vadd.f32 %v149, %v282
  %v284 = vpop.f32.mrb[0].mxu0
  %285 = vmatprep.mubr.f32.mxu0 %v43
  %286 = vmatmul.mubr.f32.gmra.mrb[0].mxu0 %v42
  %v287 = vpop.f32.mrb[0].mxu0
  %v288 = vadd.f32 %v149, %v287
  %v289 = vpop.f32.mrb[0].mxu0
  %290 = vmatprep.mubr.f32.mxu0 %v45
  %291 = vmatmul.mubr.f32.gmra.mrb[0].mxu0 %v44
  %v292 = vpop.f32.mrb[0].mxu0
  %v293 = vadd.f32 %v149, %v292
  %v294 = vpop.f32.mrb[0].mxu0
  %295 = vmatprep.mubr.f32.mxu0 %v47
  %296 = vmatmul.mubr.f32.gmra.mrb[0].mxu0 %v46
  %v297 = vpop.f32.mrb[0].mxu0
  %v298 = vadd.f32 %v149, %v297
  %v299 = vpop.f32.mrb[0].mxu0
  %300 = vmatprep.mubr.f32.mxu0 %v49
  %301 = vmatmul.mubr.f32.gmra.mrb[0].mxu0 %v48
  %v302 = vpop.f32.mrb[0].mxu0
  %v303 = vadd.f32 %v149, %v302
  %v304 = vpop.f32.mrb[0].mxu0
  %305 = vmatprep.mubr.f32.mxu0 %v51
  %306 = vmatmul.mubr.f32.gmra.mrb[0].mxu0 %v50
  %v307 = vpop.f32.mrb[0].mxu0
  %v308 = vadd.f32 %v149, %v307
  %v309 = vpop.f32.mrb[0].mxu0
  %310 = vmatprep.mubr.f32.mxu0 %v53
  %311 = vmatmul.mubr.f32.gmra.mrb[0].mxu0 %v52
  %v312 = vpop.f32.mrb[0].mxu0
  %v313 = vadd.f32 %v149, %v312
  %v314 = vpop.f32.mrb[0].mxu0
  %315 = vmatprep.mubr.f32.mxu0 %v55
  %316 = vmatmul.mubr.f32.gmra.mrb[0].mxu0 %v54
  %v317 = vpop.f32.mrb[0].mxu0
  %v318 = vadd.f32 %v149, %v317
  %v319 = vpop.f32.mrb[0].mxu0
  %320 = vmatprep.mubr.f32.mxu0 %v57
  %321 = vmatmul.mubr.f32.gmra.mrb[0].mxu0 %v56
  %v322 = vpop.f32.mrb[0].mxu0
  %v323 = vadd.f32 %v149, %v322
  %v324 = vpop.f32.mrb[0].mxu0
  %325 = vmatprep.mubr.f32.mxu0 %v59
  %326 = vmatmul.mubr.f32.gmra.mrb[0].mxu0 %v58
  %v327 = vpop.f32.mrb[0].mxu0
  %v328 = vadd.f32 %v149, %v327
  %v329 = vpop.f32.mrb[0].mxu0
  %330 = vmatprep.mubr.f32.mxu0 %v61
  %331 = vmatmul.mubr.f32.gmra.mrb[0].mxu0 %v60
  %v332 = vpop.f32.mrb[0].mxu0
  %v333 = vadd.f32 %v149, %v332
  %v334 = vpop.f32.mrb[0].mxu0
  %335 = vmatprep.mubr.f32.mxu0 %v63
  %336 = vmatmul.mubr.f32.gmra.mrb[0].mxu0 %v62
  %v337 = vpop.f32.mrb[0].mxu0
  %v338 = vadd.f32 %v149, %v337
  %v339 = vpop.f32.mrb[0].mxu0
  %340 = vmatprep.mubr.f32.mxu0 %v65
  %341 = vmatmul.mubr.f32.gmra.mrb[0].mxu0 %v64
  %v342 = vpop.f32.mrb[0].mxu0
  %v343 = vadd.f32 %v149, %v342
  %v344 = vpop.f32.mrb[0].mxu0
  %345 = vmatprep.mubr.f32.mxu0 %v67
  %346 = vmatmul.mubr.f32.gmra.mrb[0].mxu0 %v66
  %v347 = vpop.f32.mrb[0].mxu0
  %v348 = vadd.f32 %v149, %v347
  %v349 = vpop.f32.mrb[0].mxu0
  %350 = vmatprep.mubr.f32.mxu0 %v69
  %351 = vmatmul.mubr.f32.gmra.mrb[0].mxu0 %v68
  %v352 = vpop.f32.mrb[0].mxu0
  %v353 = vadd.f32 %v149, %v352
  %v354 = vpop.f32.mrb[0].mxu0
  %355 = vmatprep.mubr.f32.mxu0 %v71
  %356 = vmatmul.mubr.f32.gmra.mrb[0].mxu0 %v70
  %v357 = vpop.f32.mrb[0].mxu0
  %v358 = vadd.f32 %v149, %v357
  %v359 = vpop.f32.mrb[0].mxu0
  %360 = vmatprep.mubr.f32.mxu0 %v73
  %361 = vmatmul.mubr.f32.gmra.mrb[0].mxu0 %v72
  %v362 = vpop.f32.mrb[0].mxu0
  %v363 = vadd.f32 %v149, %v362
  %v364 = vpop.f32.mrb[0].mxu0
  %365 = vmatprep.mubr.f32.mxu0 %v75
  %366 = vmatmul.mubr.f32.gmra.mrb[0].mxu0 %v74
  %v367 = vpop.f32.mrb[0].mxu0
  %v368 = vadd.f32 %v149, %v367
  %v369 = vpop.f32.mrb[0].mxu0
  %370 = vmatprep.mubr.f32.mxu0 %v77
  %371 = vmatmul.mubr.f32.gmra.mrb[0].mxu0 %v76
  %v372 = vpop.f32.mrb[0].mxu0
  %v373 = vadd.f32 %v149, %v372
  %v374 = vpop.f32.mrb[0].mxu0
  %375 = vmatprep.mubr.f32.mxu0 %v79
  %376 = vmatmul.mubr.f32.gmra.mrb[0].mxu0 %v78
  %v377 = vpop.f32.mrb[0].mxu0
  %v378 = vadd.f32 %v149, %v377
  %v379 = vpop.f32.mrb[0].mxu0
  %380 = vmatprep.mubr.f32.mxu0 %v81
  %381 = vmatmul.mubr.f32.gmra.mrb[0].mxu0 %v80
  %v382 = vpop.f32.mrb[0].mxu0
  %v383 = vadd.f32 %v149, %v382
  %v384 = vpop.f32.mrb[0].mxu0
  %385 = vmatprep.mubr.f32.mxu0 %v83
  %386 = vmatmul.mubr.f32.gmra.mrb[0].mxu0 %v82
  %v387 = vpop.f32.mrb[0].mxu0
  %v388 = vadd.f32 %v149, %v387
  %v389 = vpop.f32.mrb[0].mxu0
  %390 = vmatprep.mubr.f32.mxu0 %v85
  %391 = vmatmul.mubr.f32.gmra.mrb[0].mxu0 %v84
  %v392 = vpop.f32.mrb[0].mxu0
  %v393 = vadd.f32 %v149, %v392
  %v394 = vpop.f32.mrb[0].mxu0
  %395 = vmatprep.mubr.f32.mxu0 %v87
  %396 = vmatmul.mubr.f32.gmra.mrb[0].mxu0 %v86
  %v397 = vpop.f32.mrb[0].mxu0
  %v398 = vadd.f32 %v149, %v397
  %v399 = vpop.f32.mrb[0].mxu0
  %400 = vmatprep.mubr.f32.mxu0 %v89
  %401 = vmatmul.mubr.f32.gmra.mrb[0].mxu0 %v88
  %v402 = vpop.f32.mrb[0].mxu0
  %v403 = vadd.f32 %v149, %v402
  %v404 = vpop.f32.mrb[0].mxu0
  %405 = vmatprep.mubr.f32.mxu0 %v91
  %406 = vmatmul.mubr.f32.gmra.mrb[0].mxu0 %v90
  %v407 = vpop.f32.mrb[0].mxu0
  %v408 = vadd.f32 %v149, %v407
  %v409 = vpop.f32.mrb[0].mxu0
  %410 = vmatprep.mubr.f32.mxu0 %v93
  %411 = vmatmul.mubr.f32.gmra.mrb[0].mxu0 %v92
  %v412 = vpop.f32.mrb[0].mxu0
  %v413 = vadd.f32 %v149, %v412
  %v414 = vpop.f32.mrb[0].mxu0
  %415 = vmatprep.mubr.f32.mxu0 %v95
  %416 = vmatmul.mubr.f32.gmra.mrb[0].mxu0 %v94
  %v417 = vpop.f32.mrb[0].mxu0
  %v418 = vadd.f32 %v149, %v417
  %v419 = vpop.f32.mrb[0].mxu0
  %420 = vmatprep.mubr.f32.mxu0 %v97
  %421 = vmatmul.mubr.f32.gmra.mrb[0].mxu0 %v96
  %v422 = vpop.f32.mrb[0].mxu0
  %v423 = vadd.f32 %v149, %v422
  %v424 = vpop.f32.mrb[0].mxu0
  %425 = vmatprep.mubr.f32.mxu0 %v99
  %426 = vmatmul.mubr.f32.gmra.mrb[0].mxu0 %v98
  %v427 = vpop.f32.mrb[0].mxu0
  %v428 = vadd.f32 %v149, %v427
  %v429 = vpop.f32.mrb[0].mxu0
  %430 = vmatprep.mubr.f32.mxu0 %v101
  %431 = vmatmul.mubr.f32.gmra.mrb[0].mxu0 %v100
  %v432 = vpop.f32.mrb[0].mxu0
  %v433 = vadd.f32 %v149, %v432
  %v434 = vpop.f32.mrb[0].mxu0
  %435 = vmatprep.mubr.f32.mxu0 %v103
  %436 = vmatmul.mubr.f32.gmra.mrb[0].mxu0 %v102
  %v437 = vpop.f32.mrb[0].mxu0
  %v438 = vadd.f32 %v149, %v437
  %v439 = vpop.f32.mrb[0].mxu0
  %440 = vmatprep.mubr.f32.mxu0 %v105
  %441 = vmatmul.mubr.f32.gmra.mrb[0].mxu0 %v104
  %v442 = vpop.f32.mrb[0].mxu0
  %v443 = vadd.f32 %v149, %v442
  %v444 = vpop.f32.mrb[0].mxu0
  %445 = vmatprep.mubr.f32.mxu0 %v107
  %446 = vmatmul.mubr.f32.gmra.mrb[0].mxu0 %v106
  %v447 = vpop.f32.mrb[0].mxu0
  %v448 = vadd.f32 %v149, %v447
  %v449 = vpop.f32.mrb[0].mxu0
  %450 = vmatprep.mubr.f32.mxu0 %v109
  %451 = vmatmul.mubr.f32.gmra.mrb[0].mxu0 %v108
  %v452 = vpop.f32.mrb[0].mxu0
  %v453 = vadd.f32 %v149, %v452
  %v454 = vpop.f32.mrb[0].mxu0
  %455 = vmatprep.mubr.f32.mxu0 %v111
  %456 = vmatmul.mubr.f32.gmra.mrb[0].mxu0 %v110
  %v457 = vpop.f32.mrb[0].mxu0
  %v458 = vadd.f32 %v149, %v457
  %v459 = vpop.f32.mrb[0].mxu0
  %460 = vdwg.mxu0
  %vm461 = vcmp.ge.f32.partialorder %v218, 0.0
  %vm462 = vcmp.ge.f32.partialorder %v223, 0.0
  %vm463 = vcmp.ge.f32.partialorder %v228, 0.0
  %vm464 = vcmp.ge.f32.partialorder %v233, 0.0
  %vm465 = vcmp.ge.f32.partialorder %v238, 0.0
  %vm466 = vcmp.ge.f32.partialorder %v243, 0.0
  %vm467 = vcmp.ge.f32.partialorder %v248, 0.0
  %vm468 = vcmp.ge.f32.partialorder %v253, 0.0
  %vm469 = vcmp.ge.f32.partialorder %v258, 0.0
  %vm470 = vcmp.ge.f32.partialorder %v263, 0.0
  %vm471 = vcmp.ge.f32.partialorder %v268, 0.0
  %vm472 = vcmp.ge.f32.partialorder %v273, 0.0
  %vm473 = vcmp.ge.f32.partialorder %v278, 0.0
  %vm474 = vcmp.ge.f32.partialorder %v283, 0.0
  %vm475 = vcmp.ge.f32.partialorder %v288, 0.0
  %vm476 = vcmp.ge.f32.partialorder %v293, 0.0
  %vm477 = vcmp.ge.f32.partialorder %v298, 0.0
  %vm478 = vcmp.ge.f32.partialorder %v303, 0.0
  %vm479 = vcmp.ge.f32.partialorder %v308, 0.0
  %vm480 = vcmp.ge.f32.partialorder %v313, 0.0
  %vm481 = vcmp.ge.f32.partialorder %v318, 0.0
  %vm482 = vcmp.ge.f32.partialorder %v323, 0.0
  %vm483 = vcmp.ge.f32.partialorder %v328, 0.0
  %vm484 = vcmp.ge.f32.partialorder %v333, 0.0
  %vm485 = vcmp.ge.f32.partialorder %v338, 0.0
  %vm486 = vcmp.ge.f32.partialorder %v343, 0.0
  %vm487 = vcmp.ge.f32.partialorder %v348, 0.0
  %vm488 = vcmp.ge.f32.partialorder %v353, 0.0
  %vm489 = vcmp.ge.f32.partialorder %v358, 0.0
  %vm490 = vcmp.ge.f32.partialorder %v363, 0.0
  %vm491 = vcmp.ge.f32.partialorder %v368, 0.0
  %vm492 = vcmp.ge.f32.partialorder %v373, 0.0
  %vm493 = vcmp.ge.f32.partialorder %v378, 0.0
  %vm494 = vcmp.ge.f32.partialorder %v383, 0.0
  %vm495 = vcmp.ge.f32.partialorder %v388, 0.0
  %vm496 = vcmp.ge.f32.partialorder %v393, 0.0
  %vm497 = vcmp.ge.f32.partialorder %v398, 0.0
  %vm498 = vcmp.ge.f32.partialorder %v403, 0.0
  %vm499 = vcmp.ge.f32.partialorder %v408, 0.0
  %vm500 = vcmp.ge.f32.partialorder %v413, 0.0
  %vm501 = vcmp.ge.f32.partialorder %v418, 0.0
  %vm502 = vcmp.ge.f32.partialorder %v423, 0.0
  %vm503 = vcmp.ge.f32.partialorder %v428, 0.0
  %vm504 = vcmp.ge.f32.partialorder %v433, 0.0
  %vm505 = vcmp.ge.f32.partialorder %v438, 0.0
  %vm506 = vcmp.ge.f32.partialorder %v443, 0.0
  %vm507 = vcmp.ge.f32.partialorder %v448, 0.0
  %vm508 = vcmp.ge.f32.partialorder %v453, 0.0
  %vm509 = vcmp.ge.f32.partialorder %v458, 0.0
  %v510 = vmul.f32 %v218, 0.1
  %v511 = vmul.f32 %v223, 0.1
  %v512 = vmul.f32 %v228, 0.1
  %v513 = vmul.f32 %v233, 0.1
  %v514 = vmul.f32 %v238, 0.1
  %v515 = vmul.f32 %v243, 0.1
  %v516 = vmul.f32 %v248, 0.1
  %v517 = vmul.f32 %v253, 0.1
  %v518 = vmul.f32 %v258, 0.1
  %v519 = vmul.f32 %v263, 0.1
  %v520 = vmul.f32 %v268, 0.1
  %v521 = vmul.f32 %v273, 0.1
  %v522 = vmul.f32 %v278, 0.1
  %v523 = vmul.f32 %v283, 0.1
  %v524 = vmul.f32 %v288, 0.1
  %v525 = vmul.f32 %v293, 0.1
  %v526 = vmul.f32 %v298, 0.1
  %v527 = vmul.f32 %v303, 0.1
  %v528 = vmul.f32 %v308, 0.1
  %v529 = vmul.f32 %v313, 0.1
  %v530 = vmul.f32 %v318, 0.1
  %v531 = vmul.f32 %v323, 0.1
  %v532 = vmul.f32 %v328, 0.1
  %v533 = vmul.f32 %v333, 0.1
  %v534 = vmul.f32 %v338, 0.1
  %v535 = vmul.f32 %v343, 0.1
  %v536 = vmul.f32 %v348, 0.1
  %v537 = vmul.f32 %v353, 0.1
  %v538 = vmul.f32 %v358, 0.1
  %v539 = vmul.f32 %v363, 0.1
  %v540 = vmul.f32 %v368, 0.1
  %v541 = vmul.f32 %v373, 0.1
  %v542 = vmul.f32 %v378, 0.1
  %v543 = vmul.f32 %v383, 0.1
  %v544 = vmul.f32 %v388, 0.1
  %v545 = vmul.f32 %v393, 0.1
  %v546 = vmul.f32 %v398, 0.1
  %v547 = vmul.f32 %v403, 0.1
  %v548 = vmul.f32 %v408, 0.1
  %v549 = vmul.f32 %v413, 0.1
  %v550 = vmul.f32 %v418, 0.1
  %v551 = vmul.f32 %v423, 0.1
  %v552 = vmul.f32 %v428, 0.1
  %v553 = vmul.f32 %v433, 0.1
  %v554 = vmul.f32 %v438, 0.1
  %v555 = vmul.f32 %v443, 0.1
  %v556 = vmul.f32 %v448, 0.1
  %v557 = vmul.f32 %v453, 0.1
  %v558 = vmul.f32 %v458, 0.1
  %v559 = vsel %vm461, %v218, %v510
  %v560 = vsel %vm462, %v223, %v511
  %v561 = vsel %vm463, %v228, %v512
  %v562 = vsel %vm464, %v233, %v513
  %v563 = vsel %vm465, %v238, %v514
  %v564 = vsel %vm466, %v243, %v515
  %v565 = vsel %vm467, %v248, %v516
  %v566 = vsel %vm468, %v253, %v517
  %v567 = vsel %vm469, %v258, %v518
  %v568 = vsel %vm470, %v263, %v519
  %v569 = vsel %vm471, %v268, %v520
  %v570 = vsel %vm472, %v273, %v521
  %v571 = vsel %vm473, %v278, %v522
  %v572 = vsel %vm474, %v283, %v523
  %v573 = vsel %vm475, %v288, %v524
  %v574 = vsel %vm476, %v293, %v525
  %v575 = vsel %vm477, %v298, %v526
  %v576 = vsel %vm478, %v303, %v527
  %v577 = vsel %vm479, %v308, %v528
  %v578 = vsel %vm480, %v313, %v529
  %v579 = vsel %vm481, %v318, %v530
  %v580 = vsel %vm482, %v323, %v531
  %v581 = vsel %vm483, %v328, %v532
  %v582 = vsel %vm484, %v333, %v533
  %v583 = vsel %vm485, %v338, %v534
  %v584 = vsel %vm486, %v343, %v535
  %v585 = vsel %vm487, %v348, %v536
  %v586 = vsel %vm488, %v353, %v537
  %v587 = vsel %vm489, %v358, %v538
  %v588 = vsel %vm490, %v363, %v539
  %v589 = vsel %vm491, %v368, %v540
  %v590 = vsel %vm492, %v373, %v541
  %v591 = vsel %vm493, %v378, %v542
  %v592 = vsel %vm494, %v383, %v543
  %v593 = vsel %vm495, %v388, %v544
  %v594 = vsel %vm496, %v393, %v545
  %v595 = vsel %vm497, %v398, %v546
  %v596 = vsel %vm498, %v403, %v547
  %v597 = vsel %vm499, %v408, %v548
  %v598 = vsel %vm500, %v413, %v549
  %v599 = vsel %vm501, %v418, %v550
  %v600 = vsel %vm502, %v423, %v551
  %v601 = vsel %vm503, %v428, %v552
  %v602 = vsel %vm504, %v433, %v553
  %v603 = vsel %vm505, %v438, %v554
  %v604 = vsel %vm506, %v443, %v555
  %v605 = vsel %vm507, %v448, %v556
  %v606 = vsel %vm508, %v453, %v557
  %v607 = vsel %vm509, %v458, %v558
  %vm608 = vcmask 261120
  %609 = vst.msk [vmem:[%s3] sm:$0xff] %vm608, %v559
  %610 = vst.msk [vmem:[%s3 + $0x8] sm:$0xff] %vm608, %v560
  %611 = vst.msk [vmem:[%s3 + $0x10] sm:$0xff] %vm608, %v561
  %612 = vst.msk [vmem:[%s3 + $0x18] sm:$0xff] %vm608, %v562
  %613 = vst.msk [vmem:[%s3 + $0x20] sm:$0xff] %vm608, %v563
  %614 = vst.msk [vmem:[%s3 + $0x28] sm:$0xff] %vm608, %v564
  %615 = vst.msk [vmem:[%s3 + $0x30] sm:$0xff] %vm608, %v565
  %616 = vst.msk [vmem:[%s3 + $0x38] sm:$0xff] %vm608, %v566
  %617 = vst.msk [vmem:[%s3 + $0x40] sm:$0xff] %vm608, %v567
  %618 = vst.msk [vmem:[%s3 + $0x48] sm:$0xff] %vm608, %v568
  %619 = vst.msk [vmem:[%s3 + $0x50] sm:$0xff] %vm608, %v569
  %620 = vst.msk [vmem:[%s3 + $0x58] sm:$0xff] %vm608, %v570
  %621 = vst.msk [vmem:[%s3 + $0x60] sm:$0xff] %vm608, %v571
  %622 = vst.msk [vmem:[%s3 + $0x68] sm:$0xff] %vm608, %v572
  %623 = vst.msk [vmem:[%s3 + $0x70] sm:$0xff] %vm608, %v573
  %624 = vst.msk [vmem:[%s3 + $0x78] sm:$0xff] %vm608, %v574
  %625 = vst.msk [vmem:[%s3 + $0x80] sm:$0xff] %vm608, %v575
  %626 = vst.msk [vmem:[%s3 + $0x88] sm:$0xff] %vm608, %v576
  %627 = vst.msk [vmem:[%s3 + $0x90] sm:$0xff] %vm608, %v577
  %628 = vst.msk [vmem:[%s3 + $0x98] sm:$0xff] %vm608, %v578
  %629 = vst.msk [vmem:[%s3 + $0xa0] sm:$0xff] %vm608, %v579
  %630 = vst.msk [vmem:[%s3 + $0xa8] sm:$0xff] %vm608, %v580
  %631 = vst.msk [vmem:[%s3 + $0xb0] sm:$0xff] %vm608, %v581
  %632 = vst.msk [vmem:[%s3 + $0xb8] sm:$0xff] %vm608, %v582
  %633 = vst.msk [vmem:[%s3 + $0xc0] sm:$0xff] %vm608, %v583
  %634 = vst.msk [vmem:[%s3 + $0xc8] sm:$0xff] %vm608, %v584
  %635 = vst.msk [vmem:[%s3 + $0xd0] sm:$0xff] %vm608, %v585
  %636 = vst.msk [vmem:[%s3 + $0xd8] sm:$0xff] %vm608, %v586
  %637 = vst.msk [vmem:[%s3 + $0xe0] sm:$0xff] %vm608, %v587
  %638 = vst.msk [vmem:[%s3 + $0xe8] sm:$0xff] %vm608, %v588
  %639 = vst.msk [vmem:[%s3 + $0xf0] sm:$0xff] %vm608, %v589
  %640 = vst.msk [vmem:[%s3 + $0xf8] sm:$0xff] %vm608, %v590
  %641 = vst.msk [vmem:[%s3 + $0x100] sm:$0xff] %vm608, %v591
  %642 = vst.msk [vmem:[%s3 + $0x108] sm:$0xff] %vm608, %v592
  %643 = vst.msk [vmem:[%s3 + $0x110] sm:$0xff] %vm608, %v593
  %644 = vst.msk [vmem:[%s3 + $0x118] sm:$0xff] %vm608, %v594
  %645 = vst.msk [vmem:[%s3 + $0x120] sm:$0xff] %vm608, %v595
  %646 = vst.msk [vmem:[%s3 + $0x128] sm:$0xff] %vm608, %v596
  %647 = vst.msk [vmem:[%s3 + $0x130] sm:$0xff] %vm608, %v597
  %648 = vst.msk [vmem:[%s3 + $0x138] sm:$0xff] %vm608, %v598
  %649 = vst.msk [vmem:[%s3 + $0x140] sm:$0xff] %vm608, %v599
  %650 = vst.msk [vmem:[%s3 + $0x148] sm:$0xff] %vm608, %v600
  %651 = vst.msk [vmem:[%s3 + $0x150] sm:$0xff] %vm608, %v601
  %652 = vst.msk [vmem:[%s3 + $0x158] sm:$0xff] %vm608, %v602
  %653 = vst.msk [vmem:[%s3 + $0x160] sm:$0xff] %vm608, %v603
  %654 = vst.msk [vmem:[%s3 + $0x168] sm:$0xff] %vm608, %v604
  %655 = vst.msk [vmem:[%s3 + $0x170] sm:$0xff] %vm608, %v605
  %656 = vst.msk [vmem:[%s3 + $0x178] sm:$0xff] %vm608, %v606
  %657 = vst.msk [vmem:[%s3 + $0x180] sm:$0xff] %vm608, %v607
  // Predicated region
  $region14: #{gan_net_forward.26} parent=0 // pred_check
    _
  $region15: #{gan_net_forward.26} parent=0 // pred_check_branch
    %659 = sbr.rel (0) target = $region17
  $region16: #{gan_net_forward.26} parent=0 // pred_region
    _
  $region17: #{gan_net_forward.26} parent=0 // pred_fallthru
    _
  // Predicated region
  $region18: #{gan_net_forward.26} parent=0 // pred_check
    _
  $region19: #{gan_net_forward.26} parent=0 // pred_check_branch
    %661 = sbr.rel (0) target = $region21
  $region20: #{gan_net_forward.26} parent=0 // pred_region
    _
  $region21: #{gan_net_forward.26} parent=0 // pred_fallthru
    _

// kernel: gan_net_forward.27
$region0: #{gan_net_forward.27}
  #allocation0 [shape = 'u32[]', space=smem, size = 0x4, offset = 0x4, fixed_abs, tag = 'smem constant byte address 0x4 - core index']
  #allocation1 [shape = 'u32[144,128]{1,0:T(1,128)}', space=vmem, size = 0x12000, scoped, tag = 'internal scratch']
  %s0 = inlined_call_operand.vmem [shape: f32[1568,288], index: 0, kind: input, shape index: {}]
  %s1 = inlined_call_operand.vmem [shape: f32[288,128], index: 1, kind: input, shape index: {}]
  %s2 = inlined_call_operand.vmem [shape: f32[1,128], index: 2, kind: input, shape index: {}]
  %s3 = inlined_call_operand.vmem [shape: f32[1568,128], index: 3, kind: output, shape index: {}]
  %s4 = sld [smem:[#allocation0]]
  $region45: #{gan_net_forward.27} parent=0
    _
  %s6 = ssub.s32 1, %s4
  %s7 = scalar_select 0, %s6, %s4
  loop: start=0, step=1, limit=6
  $region2: #{gan_net_forward.27} parent=0 // loop_pre_header
    _
  $region3: #{gan_net_forward.27} parent=0 // loop_header
    %s9 = sphi 0, %s13
    %p10 = scmp.ge.s32.totalorder %s9, 6
    %s19 = sphi 0, %s21
    %s22 = sphi 0, %s19
    %s23 = sphi 0, %s22
    %s39 = sphi 0, %s23
    %s43 = sphi 0, %s43
    %s45 = sphi 0, %s43
    %s46 = sphi 0, %s45
    %s60 = sphi 0, %s46
    %s64 = sphi 0, %s64
    %s66 = sphi 0, %s64
    %s67 = sphi 0, %s66
    %s81 = sphi 0, %s67
    %s87 = sphi 0, %s89
    %s90 = sphi 0, %s87
    %s91 = sphi 0, %s90
    %s107 = sphi 0, %s91
  $region4: #{gan_net_forward.27} parent=0 // loop_header_branch
    %12 = sbr.rel (%p10) target = $region8
  $region5: #{gan_net_forward.27} parent=0 // loop_body
    %s14 = ssub.s32 %s9, 1
    %s15 = ssub.s32 %s9, 2
    %s16 = sadd.s32 %s9, 1
    %s17 = ssub.s32 %s9, %s16
    %p18 = scmp.eq.s32.totalorder %s17, 0
    %s20 = sadd.s32 %s19, 1
    %s21 = scalar_select %p18, %s19, %s20
    %p24 = pneg %p18
    %p25 = scmp.eq.s32.totalorder %s9, 3
    %p26 = por %p24, %p25
    %p27 = scmp.ne.s32.totalorder %s19, %s22
    %p28 = scmp.eq.s32.totalorder %s9, 0
    %p29 = por %p27, %p28
    %p30 = scmp.ne.s32.totalorder %s19, %s22
    %p31 = scmp.eq.s32.totalorder %s14, 3
    %p32 = por %p30, %p31
    %p33 = scmp.ne.s32.totalorder %s22, %s23
    %p34 = scmp.eq.s32.totalorder %s14, 0
    %p35 = por %p33, %p34
    %p36 = scmp.ne.s32.totalorder %s22, %s23
    %p37 = scmp.eq.s32.totalorder %s15, 3
    %p38 = por %p36, %p37
    %p40 = scmp.ne.s32.totalorder %s23, %s39
    %p41 = scmp.eq.s32.totalorder %s15, 0
    %p42 = por %p40, %p41
    %s44 = sadd.s32 %s43, 1
    %p47 = scmp.eq.s32.totalorder %s9, 3
    %p48 = scmp.ne.s32.totalorder %s43, %s45
    %p49 = scmp.eq.s32.totalorder %s9, 0
    %p50 = por %p48, %p49
    %p51 = scmp.ne.s32.totalorder %s43, %s45
    %p52 = scmp.eq.s32.totalorder %s14, 3
    %p53 = por %p51, %p52
    %p54 = scmp.ne.s32.totalorder %s45, %s46
    %p55 = scmp.eq.s32.totalorder %s14, 0
    %p56 = por %p54, %p55
    %p57 = scmp.ne.s32.totalorder %s45, %s46
    %p58 = scmp.eq.s32.totalorder %s15, 3
    %p59 = por %p57, %p58
    %p61 = scmp.ne.s32.totalorder %s46, %s60
    %p62 = scmp.eq.s32.totalorder %s15, 0
    %p63 = por %p61, %p62
    %s65 = sadd.s32 %s64, 1
    %p68 = scmp.eq.s32.totalorder %s9, 3
    %p69 = scmp.ne.s32.totalorder %s64, %s66
    %p70 = scmp.eq.s32.totalorder %s9, 0
    %p71 = por %p69, %p70
    %p72 = scmp.ne.s32.totalorder %s64, %s66
    %p73 = scmp.eq.s32.totalorder %s14, 3
    %p74 = por %p72, %p73
    %p75 = scmp.ne.s32.totalorder %s66, %s67
    %p76 = scmp.eq.s32.totalorder %s14, 0
    %p77 = por %p75, %p76
    %p78 = scmp.ne.s32.totalorder %s66, %s67
    %p79 = scmp.eq.s32.totalorder %s15, 3
    %p80 = por %p78, %p79
    %p82 = scmp.ne.s32.totalorder %s67, %s81
    %p83 = scmp.eq.s32.totalorder %s15, 0
    %p84 = por %p82, %p83
    %s85 = ssub.s32 %s9, %s16
    %p86 = scmp.eq.s32.totalorder %s85, 0
    %s88 = sadd.s32 %s87, 1
    %s89 = scalar_select %p86, %s87, %s88
    %p92 = pneg %p86
    %p93 = scmp.eq.s32.totalorder %s9, 3
    %p94 = por %p92, %p93
    %p95 = scmp.ne.s32.totalorder %s87, %s90
    %p96 = scmp.eq.s32.totalorder %s9, 0
    %p97 = por %p95, %p96
    %p98 = scmp.ne.s32.totalorder %s87, %s90
    %p99 = scmp.eq.s32.totalorder %s14, 3
    %p100 = por %p98, %p99
    %p101 = scmp.ne.s32.totalorder %s90, %s91
    %p102 = scmp.eq.s32.totalorder %s14, 0
    %p103 = por %p101, %p102
    %p104 = scmp.ne.s32.totalorder %s90, %s91
    %p105 = scmp.eq.s32.totalorder %s15, 3
    %p106 = por %p104, %p105
    %p108 = scmp.ne.s32.totalorder %s91, %s107
    %p109 = scmp.eq.s32.totalorder %s15, 0
    %p110 = por %p108, %p109
    %p111 = scmp.le.s32.totalorder 1, %s9
    %p112 = scmp.lt.s32.totalorder %s9, 5
    %p113 = pnand %p111, %p112
    %p114 = pneg %p113
    // Predicated region
    $region9: #{gan_net_forward.27} parent=5 // pred_check
      _
    $region10: #{gan_net_forward.27} parent=5 // pred_check_branch
      %116 = sbr.rel (%p113) target = $region12
    $region11: #{gan_net_forward.27} parent=5 // pred_region
      %s117 = ssub.s32 %s9, 1
      // Predicated region
      $region13: #{gan_net_forward.27} parent=11 // pred_check
        %p118 = pneg %p56
      $region14: #{gan_net_forward.27} parent=11 // pred_check_branch
        %120 = sbr.rel (%p118) target = $region16
      $region15: #{gan_net_forward.27} parent=11 // pred_region
        _
      $region16: #{gan_net_forward.27} parent=11 // pred_fallthru
        _
      // Predicated region
      $region17: #{gan_net_forward.27} parent=11 // pred_check
        %p121 = pneg %p77
      $region18: #{gan_net_forward.27} parent=11 // pred_check_branch
        %123 = sbr.rel (%p121) target = $region20
      $region19: #{gan_net_forward.27} parent=11 // pred_region
        _
      $region20: #{gan_net_forward.27} parent=11 // pred_fallthru
        _
    $region12: #{gan_net_forward.27} parent=5 // pred_fallthru
      _
    %p124 = scmp.lt.s32.totalorder %s9, 4
    // Predicated region
    $region21: #{gan_net_forward.27} parent=5 // pred_check
      %p125 = pneg %p124
    $region22: #{gan_net_forward.27} parent=5 // pred_check_branch
      %127 = sbr.rel (%p125) target = $region24
    $region23: #{gan_net_forward.27} parent=5 // pred_region
      // Predicated region
      $region25: #{gan_net_forward.27} parent=23 // pred_check
        %p128 = pneg %p29
      $region26: #{gan_net_forward.27} parent=23 // pred_check_branch
        %130 = sbr.rel (%p128) target = $region28
      $region27: #{gan_net_forward.27} parent=23 // pred_region
        %s131 = smul.u32 49, %s9
        %p132 = scmp.lt.s32.totalorder %s131, 195
        %s133 = scalar_select %p132, %s131, 195
        %s134 = smul.addr %s133, 3
        %s135 = smul.addr %s134, 8
        %s136 = scalar_lea.vmem %s0, %s135
        %s137 = smul.u32 49, %s9
      $region28: #{gan_net_forward.27} parent=23 // pred_fallthru
        _
    $region24: #{gan_net_forward.27} parent=5 // pred_fallthru
      _
    %p138 = scmp.le.s32.totalorder 1, %s9
    %p139 = scmp.lt.s32.totalorder %s9, 5
    %p140 = pnand %p138, %p139
    %p141 = pneg %p140
    // Predicated region
    $region29: #{gan_net_forward.27} parent=5 // pred_check
      _
    $region30: #{gan_net_forward.27} parent=5 // pred_check_branch
      %143 = sbr.rel (%p140) target = $region32
    $region31: #{gan_net_forward.27} parent=5 // pred_region
      %s144 = ssub.s32 %s9, 1
      %s145 = smul.u32 49, %s14
      %p146 = scmp.lt.s32.totalorder %s145, 195
      %s147 = scalar_select %p146, %s145, 195
      %s148 = smul.addr %s147, 3
      %s149 = smul.addr %s148, 8
      %s150 = scalar_lea.vmem %s0, %s149
      %p151 = pneg %p35
      %p152 = pneg %p32
      %p153 = pneg %p56
      %p154 = pneg %p53
      %p155 = pneg %p77
      %p156 = pneg %p74
      %p157 = pneg %p103
      %p158 = pneg %p100
      %s159 = smul.u32 49, %s14
      %p160 = scmp.lt.s32.totalorder %s159, 195
      %s161 = scalar_select %p160, %s159, 195
      %s162 = smul.addr %s161, 8
      %s163 = scalar_lea.vmem %s3, %s162
      %s164 = smul.u32 49, %s14
      %p165 = scmp.lt.s32.totalorder %s164, 195
      %s166 = scalar_select %p165, %s164, 195
      %s167 = smul.addr %s166, 3
      %s168 = smul.addr %s167, 8
      %s169 = scalar_lea.vmem %s0, %s168
      %s170 = smul.u32 49, %s14
      %s171 = smul.u32 49, %s14
      %p172 = scmp.lt.s32.totalorder %s171, 195
      %s173 = scalar_select %p172, %s171, 195
      %s174 = smul.addr %s173, 8
      %s175 = scalar_lea.vmem %s3, %s174
      %s176 = smul.u32 49, %s14
      %v177 = vld [vmem:[%s169] sm:$0xff]
      %v178 = vld [vmem:[%s169 + $0x8] sm:$0xff]
      %v179 = vld [vmem:[%s169 + $0x10] sm:$0xff]
      %v180 = vld [vmem:[%s169 + $0x18] sm:$0xff]
      %v181 = vld [vmem:[%s169 + $0x20] sm:$0xff]
      %v182 = vld [vmem:[%s169 + $0x28] sm:$0xff]
      %v183 = vld [vmem:[%s169 + $0x30] sm:$0xff]
      %v184 = vld [vmem:[%s169 + $0x38] sm:$0xff]
      %v185 = vld [vmem:[%s169 + $0x40] sm:$0xff]
      %v186 = vld [vmem:[%s169 + $0x48] sm:$0xff]
      %v187 = vld [vmem:[%s169 + $0x50] sm:$0xff]
      %v188 = vld [vmem:[%s169 + $0x58] sm:$0xff]
      %v189 = vld [vmem:[%s169 + $0x60] sm:$0xff]
      %v190 = vld [vmem:[%s169 + $0x68] sm:$0xff]
      %v191 = vld [vmem:[%s169 + $0x70] sm:$0xff]
      %v192 = vld [vmem:[%s169 + $0x78] sm:$0xff]
      %v193 = vld [vmem:[%s169 + $0x80] sm:$0xff]
      %v194 = vld [vmem:[%s169 + $0x88] sm:$0xff]
      %v195 = vld [vmem:[%s169 + $0x90] sm:$0xff]
      %v196 = vld [vmem:[%s169 + $0x98] sm:$0xff]
      %v197 = vld [vmem:[%s169 + $0xa0] sm:$0xff]
      %v198 = vld [vmem:[%s169 + $0xa8] sm:$0xff]
      %v199 = vld [vmem:[%s169 + $0xb0] sm:$0xff]
      %v200 = vld [vmem:[%s169 + $0xb8] sm:$0xff]
      %v201 = vld [vmem:[%s169 + $0xc0] sm:$0xff]
      %v202 = vld [vmem:[%s169 + $0xc8] sm:$0xff]
      %v203 = vld [vmem:[%s169 + $0xd0] sm:$0xff]
      %v204 = vld [vmem:[%s169 + $0xd8] sm:$0xff]
      %v205 = vld [vmem:[%s169 + $0xe0] sm:$0xff]
      %v206 = vld [vmem:[%s169 + $0xe8] sm:$0xff]
      %v207 = vld [vmem:[%s169 + $0xf0] sm:$0xff]
      %v208 = vld [vmem:[%s169 + $0xf8] sm:$0xff]
      %v209 = vld [vmem:[%s169 + $0x100] sm:$0xff]
      %v210 = vld [vmem:[%s169 + $0x108] sm:$0xff]
      %v211 = vld [vmem:[%s169 + $0x110] sm:$0xff]
      %v212 = vld [vmem:[%s169 + $0x118] sm:$0xff]
      %v213 = vld [vmem:[%s169 + $0x120] sm:$0xff]
      %v214 = vld [vmem:[%s169 + $0x128] sm:$0xff]
      %v215 = vld [vmem:[%s169 + $0x130] sm:$0xff]
      %v216 = vld [vmem:[%s169 + $0x138] sm:$0xff]
      %v217 = vld [vmem:[%s169 + $0x140] sm:$0xff]
      %v218 = vld [vmem:[%s169 + $0x148] sm:$0xff]
      %v219 = vld [vmem:[%s169 + $0x150] sm:$0xff]
      %v220 = vld [vmem:[%s169 + $0x158] sm:$0xff]
      %v221 = vld [vmem:[%s169 + $0x160] sm:$0xff]
      %v222 = vld [vmem:[%s169 + $0x168] sm:$0xff]
      %v223 = vld [vmem:[%s169 + $0x170] sm:$0xff]
      %v224 = vld [vmem:[%s169 + $0x178] sm:$0xff]
      %v225 = vld [vmem:[%s169 + $0x180] sm:$0xff]
      %v226 = vld [vmem:[%s169 + $0x188] sm:$0xff]
      %v227 = vld [vmem:[%s169 + $0x190] sm:$0xff]
      %v228 = vld [vmem:[%s169 + $0x198] sm:$0xff]
      %v229 = vld [vmem:[%s169 + $0x1a0] sm:$0xff]
      %v230 = vld [vmem:[%s169 + $0x1a8] sm:$0xff]
      %v231 = vld [vmem:[%s169 + $0x1b0] sm:$0xff]
      %v232 = vld [vmem:[%s169 + $0x1b8] sm:$0xff]
      %v233 = vld [vmem:[%s169 + $0x1c0] sm:$0xff]
      %v234 = vld [vmem:[%s169 + $0x1c8] sm:$0xff]
      %v235 = vld [vmem:[%s169 + $0x1d0] sm:$0xff]
      %v236 = vld [vmem:[%s169 + $0x1d8] sm:$0xff]
      %v237 = vld [vmem:[%s169 + $0x1e0] sm:$0xff]
      %v238 = vld [vmem:[%s169 + $0x1e8] sm:$0xff]
      %v239 = vld [vmem:[%s169 + $0x1f0] sm:$0xff]
      %v240 = vld [vmem:[%s169 + $0x1f8] sm:$0xff]
      %v241 = vld [vmem:[%s169 + $0x200] sm:$0xff]
      %v242 = vld [vmem:[%s169 + $0x208] sm:$0xff]
      %v243 = vld [vmem:[%s169 + $0x210] sm:$0xff]
      %v244 = vld [vmem:[%s169 + $0x218] sm:$0xff]
      %v245 = vld [vmem:[%s169 + $0x220] sm:$0xff]
      %v246 = vld [vmem:[%s169 + $0x228] sm:$0xff]
      %v247 = vld [vmem:[%s169 + $0x230] sm:$0xff]
      %v248 = vld [vmem:[%s169 + $0x238] sm:$0xff]
      %v249 = vld [vmem:[%s169 + $0x240] sm:$0xff]
      %v250 = vld [vmem:[%s169 + $0x248] sm:$0xff]
      %v251 = vld [vmem:[%s169 + $0x250] sm:$0xff]
      %v252 = vld [vmem:[%s169 + $0x258] sm:$0xff]
      %v253 = vld [vmem:[%s169 + $0x260] sm:$0xff]
      %v254 = vld [vmem:[%s169 + $0x268] sm:$0xff]
      %v255 = vld [vmem:[%s169 + $0x270] sm:$0xff]
      %v256 = vld [vmem:[%s169 + $0x278] sm:$0xff]
      %v257 = vld [vmem:[%s169 + $0x280] sm:$0xff]
      %v258 = vld [vmem:[%s169 + $0x288] sm:$0xff]
      %v259 = vld [vmem:[%s169 + $0x290] sm:$0xff]
      %v260 = vld [vmem:[%s169 + $0x298] sm:$0xff]
      %v261 = vld [vmem:[%s169 + $0x2a0] sm:$0xff]
      %v262 = vld [vmem:[%s169 + $0x2a8] sm:$0xff]
      %v263 = vld [vmem:[%s169 + $0x2b0] sm:$0xff]
      %v264 = vld [vmem:[%s169 + $0x2b8] sm:$0xff]
      %v265 = vld [vmem:[%s169 + $0x2c0] sm:$0xff]
      %v266 = vld [vmem:[%s169 + $0x2c8] sm:$0xff]
      %v267 = vld [vmem:[%s169 + $0x2d0] sm:$0xff]
      %v268 = vld [vmem:[%s169 + $0x2d8] sm:$0xff]
      %v269 = vld [vmem:[%s169 + $0x2e0] sm:$0xff]
      %v270 = vld [vmem:[%s169 + $0x2e8] sm:$0xff]
      %v271 = vld [vmem:[%s169 + $0x2f0] sm:$0xff]
      %v272 = vld [vmem:[%s169 + $0x2f8] sm:$0xff]
      %v273 = vld [vmem:[%s169 + $0x300] sm:$0xff]
      %v274 = vld [vmem:[%s169 + $0x308] sm:$0xff]
      %v275 = vld [vmem:[%s169 + $0x310] sm:$0xff]
      %v276 = vld [vmem:[%s169 + $0x318] sm:$0xff]
      %v277 = vld [vmem:[%s169 + $0x320] sm:$0xff]
      %v278 = vld [vmem:[%s169 + $0x328] sm:$0xff]
      %v279 = vld [vmem:[%s169 + $0x330] sm:$0xff]
      %v280 = vld [vmem:[%s169 + $0x338] sm:$0xff]
      %v281 = vld [vmem:[%s169 + $0x340] sm:$0xff]
      %v282 = vld [vmem:[%s169 + $0x348] sm:$0xff]
      %v283 = vld [vmem:[%s169 + $0x350] sm:$0xff]
      %v284 = vld [vmem:[%s169 + $0x358] sm:$0xff]
      %v285 = vld [vmem:[%s169 + $0x360] sm:$0xff]
      %v286 = vld [vmem:[%s169 + $0x368] sm:$0xff]
      %v287 = vld [vmem:[%s169 + $0x370] sm:$0xff]
      %v288 = vld [vmem:[%s169 + $0x378] sm:$0xff]
      %v289 = vld [vmem:[%s169 + $0x380] sm:$0xff]
      %v290 = vld [vmem:[%s169 + $0x388] sm:$0xff]
      %v291 = vld [vmem:[%s169 + $0x390] sm:$0xff]
      %v292 = vld [vmem:[%s169 + $0x398] sm:$0xff]
      %v293 = vld [vmem:[%s169 + $0x3a0] sm:$0xff]
      %v294 = vld [vmem:[%s169 + $0x3a8] sm:$0xff]
      %v295 = vld [vmem:[%s169 + $0x3b0] sm:$0xff]
      %v296 = vld [vmem:[%s169 + $0x3b8] sm:$0xff]
      %v297 = vld [vmem:[%s169 + $0x3c0] sm:$0xff]
      %v298 = vld [vmem:[%s169 + $0x3c8] sm:$0xff]
      %v299 = vld [vmem:[%s169 + $0x3d0] sm:$0xff]
      %v300 = vld [vmem:[%s169 + $0x3d8] sm:$0xff]
      %v301 = vld [vmem:[%s169 + $0x3e0] sm:$0xff]
      %v302 = vld [vmem:[%s169 + $0x3e8] sm:$0xff]
      %v303 = vld [vmem:[%s169 + $0x3f0] sm:$0xff]
      %v304 = vld [vmem:[%s169 + $0x3f8] sm:$0xff]
      %v305 = vld [vmem:[%s169 + $0x400] sm:$0xff]
      %v306 = vld [vmem:[%s169 + $0x408] sm:$0xff]
      %v307 = vld [vmem:[%s169 + $0x410] sm:$0xff]
      %v308 = vld [vmem:[%s169 + $0x418] sm:$0xff]
      %v309 = vld [vmem:[%s169 + $0x420] sm:$0xff]
      %v310 = vld [vmem:[%s169 + $0x428] sm:$0xff]
      %v311 = vld [vmem:[%s169 + $0x430] sm:$0xff]
      %v312 = vld [vmem:[%s169 + $0x438] sm:$0xff]
      %v313 = vld [vmem:[%s169 + $0x440] sm:$0xff]
      %v314 = vld [vmem:[%s169 + $0x448] sm:$0xff]
      %v315 = vld [vmem:[%s169 + $0x450] sm:$0xff]
      %v316 = vld [vmem:[%s169 + $0x458] sm:$0xff]
      %v317 = vld [vmem:[%s169 + $0x460] sm:$0xff]
      %v318 = vld [vmem:[%s169 + $0x468] sm:$0xff]
      %v319 = vld [vmem:[%s169 + $0x470] sm:$0xff]
      %v320 = vld [vmem:[%s169 + $0x478] sm:$0xff]
      %v321 = vld [vmem:[%s169 + $0x480] sm:$0xff]
      %v322 = vld [vmem:[%s169 + $0x488] sm:$0xff]
      %v323 = vld [vmem:[%s169 + $0x490] sm:$0xff]
      %v324 = vld [vmem:[%s1] sm:$0xff]
      %v325 = vld [vmem:[%s1 + $0x8] sm:$0xff]
      %v326 = vld [vmem:[%s1 + $0x10] sm:$0xff]
      %v327 = vld [vmem:[%s1 + $0x18] sm:$0xff]
      %v328 = vld [vmem:[%s1 + $0x20] sm:$0xff]
      %v329 = vld [vmem:[%s1 + $0x28] sm:$0xff]
      %v330 = vld [vmem:[%s1 + $0x30] sm:$0xff]
      %v331 = vld [vmem:[%s1 + $0x38] sm:$0xff]
      %v332 = vld [vmem:[%s1 + $0x40] sm:$0xff]
      %v333 = vld [vmem:[%s1 + $0x48] sm:$0xff]
      %v334 = vld [vmem:[%s1 + $0x50] sm:$0xff]
      %v335 = vld [vmem:[%s1 + $0x58] sm:$0xff]
      %v336 = vld [vmem:[%s1 + $0x60] sm:$0xff]
      %v337 = vld [vmem:[%s1 + $0x68] sm:$0xff]
      %v338 = vld [vmem:[%s1 + $0x70] sm:$0xff]
      %v339 = vld [vmem:[%s1 + $0x78] sm:$0xff]
      %v340 = vld [vmem:[%s1 + $0x80] sm:$0xff]
      %v341 = vld [vmem:[%s1 + $0x88] sm:$0xff]
      %v342 = vld [vmem:[%s1 + $0x90] sm:$0xff]
      %v343 = vld [vmem:[%s1 + $0x98] sm:$0xff]
      %v344 = vld [vmem:[%s1 + $0xa0] sm:$0xff]
      %v345 = vld [vmem:[%s1 + $0xa8] sm:$0xff]
      %v346 = vld [vmem:[%s1 + $0xb0] sm:$0xff]
      %v347 = vld [vmem:[%s1 + $0xb8] sm:$0xff]
      %v348 = vld [vmem:[%s1 + $0xc0] sm:$0xff]
      %v349 = vld [vmem:[%s1 + $0xc8] sm:$0xff]
      %v350 = vld [vmem:[%s1 + $0xd0] sm:$0xff]
      %v351 = vld [vmem:[%s1 + $0xd8] sm:$0xff]
      %v352 = vld [vmem:[%s1 + $0xe0] sm:$0xff]
      %v353 = vld [vmem:[%s1 + $0xe8] sm:$0xff]
      %v354 = vld [vmem:[%s1 + $0xf0] sm:$0xff]
      %v355 = vld [vmem:[%s1 + $0xf8] sm:$0xff]
      %v356 = vld [vmem:[%s1 + $0x100] sm:$0xff]
      %v357 = vld [vmem:[%s1 + $0x108] sm:$0xff]
      %v358 = vld [vmem:[%s1 + $0x110] sm:$0xff]
      %v359 = vld [vmem:[%s1 + $0x118] sm:$0xff]
      %v360 = vld [vmem:[%s2] sm:$0x1]
      %v362 = vlaneseq
      %v363 = vshrl.u32 %v362, 7
      %v364 = vsub.s32 0, %v363
      %v365 = vrot.slane %v360, %v364
      %vm367 = vcmask 261120
      %v369 = vsel %vm367, %v179, 0
      %v372 = vsel %vm367, %v182, 0
      %v375 = vsel %vm367, %v185, 0
      %v378 = vsel %vm367, %v188, 0
      %v381 = vsel %vm367, %v191, 0
      %v384 = vsel %vm367, %v194, 0
      %v387 = vsel %vm367, %v197, 0
      %v390 = vsel %vm367, %v200, 0
      %v393 = vsel %vm367, %v203, 0
      %v396 = vsel %vm367, %v206, 0
      %v399 = vsel %vm367, %v209, 0
      %v402 = vsel %vm367, %v212, 0
      %v405 = vsel %vm367, %v215, 0
      %v408 = vsel %vm367, %v218, 0
      %v411 = vsel %vm367, %v221, 0
      %v414 = vsel %vm367, %v224, 0
      %v417 = vsel %vm367, %v227, 0
      %v420 = vsel %vm367, %v230, 0
      %v423 = vsel %vm367, %v233, 0
      %v426 = vsel %vm367, %v236, 0
      %v429 = vsel %vm367, %v239, 0
      %v432 = vsel %vm367, %v242, 0
      %v435 = vsel %vm367, %v245, 0
      %v438 = vsel %vm367, %v248, 0
      %v441 = vsel %vm367, %v251, 0
      %v444 = vsel %vm367, %v254, 0
      %v447 = vsel %vm367, %v257, 0
      %v450 = vsel %vm367, %v260, 0
      %v453 = vsel %vm367, %v263, 0
      %v456 = vsel %vm367, %v266, 0
      %v459 = vsel %vm367, %v269, 0
      %v462 = vsel %vm367, %v272, 0
      %v465 = vsel %vm367, %v275, 0
      %v468 = vsel %vm367, %v278, 0
      %v471 = vsel %vm367, %v281, 0
      %v474 = vsel %vm367, %v284, 0
      %v477 = vsel %vm367, %v287, 0
      %v480 = vsel %vm367, %v290, 0
      %v483 = vsel %vm367, %v293, 0
      %v486 = vsel %vm367, %v296, 0
      %v489 = vsel %vm367, %v299, 0
      %v492 = vsel %vm367, %v302, 0
      %v495 = vsel %vm367, %v305, 0
      %v498 = vsel %vm367, %v308, 0
      %v501 = vsel %vm367, %v311, 0
      %v504 = vsel %vm367, %v314, 0
      %v507 = vsel %vm367, %v317, 0
      %v510 = vsel %vm367, %v320, 0
      %v513 = vsel %vm367, %v323, 0
      %515 = vmatprep.subr.mxu0 0.0
      %516 = vmatpush1.msra.mxu0 %v324
      %517 = vmatprep.subr.mxu0 0.0
      %518 = vmatpush1.msra.mxu0 %v325
      %519 = vmatprep.subr.mxu0 0.0
      %520 = vmatpush1.msra.mxu0 %v326
      %521 = vmatprep.subr.mxu0 0.0
      %522 = vmatpush1.msra.mxu0 %v327
      %523 = vmatprep.subr.mxu0 0.0
      %524 = vmatpush1.msra.mxu0 %v328
      %525 = vmatprep.subr.mxu0 0.0
      %526 = vmatpush1.msra.mxu0 %v329
      %527 = vmatprep.subr.mxu0 0.0
      %528 = vmatpush1.msra.mxu0 %v330
      %529 = vmatprep.subr.mxu0 0.0
      %530 = vmatpush1.msra.mxu0 %v331
      %531 = vmatprep.subr.mxu0 0.0
      %532 = vmatpush1.msra.mxu0 %v332
      %533 = vmatprep.subr.mxu0 0.0
      %534 = vmatpush1.msra.mxu0 %v333
      %535 = vmatprep.subr.mxu0 0.0
      %536 = vmatpush1.msra.mxu0 %v334
      %537 = vmatprep.subr.mxu0 0.0
      %538 = vmatpush1.msra.mxu0 %v335
      %539 = vmatprep.subr.mxu0 0.0
      %540 = vmatpush1.msra.mxu0 %v336
      %541 = vmatprep.subr.mxu0 0.0
      %542 = vmatpush1.msra.mxu0 %v337
      %543 = vmatprep.subr.mxu0 0.0
      %544 = vmatpush1.msra.mxu0 %v338
      %545 = vmatprep.subr.mxu0 0.0
      %546 = vmatpush1.msra.mxu0 %v339
      %547 = vmatprep.subr.mxu0 0.0
      %548 = vmatpush1.msra.mxu0 %v340
      %549 = vmatprep.subr.mxu0 0.0
      %550 = vmatpush1.msra.mxu0 %v341
      %551 = vmatprep.subr.mxu0 0.0
      %552 = vmatpush1.msra.mxu0 %v342
      %553 = vmatprep.subr.mxu0 0.0
      %554 = vmatpush1.msra.mxu0 %v343
      %555 = vmatprep.subr.mxu0 0.0
      %556 = vmatpush1.msra.mxu0 %v344
      %557 = vmatprep.subr.mxu0 0.0
      %558 = vmatpush1.msra.mxu0 %v345
      %559 = vmatprep.subr.mxu0 0.0
      %560 = vmatpush1.msra.mxu0 %v346
      %561 = vmatprep.subr.mxu0 0.0
      %562 = vmatpush1.msra.mxu0 %v347
      %563 = vmatprep.subr.mxu0 0.0
      %564 = vmatpush1.msra.mxu0 %v348
      %565 = vmatprep.subr.mxu0 0.0
      %566 = vmatpush1.msra.mxu0 %v349
      %567 = vmatprep.subr.mxu0 0.0
      %568 = vmatpush1.msra.mxu0 %v350
      %569 = vmatprep.subr.mxu0 0.0
      %570 = vmatpush1.msra.mxu0 %v351
      %571 = vmatprep.subr.mxu0 0.0
      %572 = vmatpush1.msra.mxu0 %v352
      %573 = vmatprep.subr.mxu0 0.0
      %574 = vmatpush1.msra.mxu0 %v353
      %575 = vmatprep.subr.mxu0 0.0
      %576 = vmatpush1.msra.mxu0 %v354
      %577 = vmatprep.subr.mxu0 0.0
      %578 = vmatpush1.msra.mxu0 %v355
      %579 = vmatprep.mubr.f32.mxu0 %v178
      %580 = vmatmul.mubr.f32.gmra.mrb[0].mxu0 %v177
      %v581 = vpop.f32.mrb[0].mxu0
      %v582 = vadd.f32 %v365, %v581
      %v583 = vpop.f32.mrb[0].mxu0
      %584 = vmatprep.mubr.f32.mxu0 %v181
      %585 = vmatmul.mubr.f32.gmra.mrb[0].mxu0 %v180
      %v586 = vpop.f32.mrb[0].mxu0
      %v587 = vadd.f32 %v365, %v586
      %v588 = vpop.f32.mrb[0].mxu0
      %589 = vmatprep.mubr.f32.mxu0 %v184
      %590 = vmatmul.mubr.f32.gmra.mrb[0].mxu0 %v183
      %v591 = vpop.f32.mrb[0].mxu0
      %v592 = vadd.f32 %v365, %v591
      %v593 = vpop.f32.mrb[0].mxu0
      %594 = vmatprep.mubr.f32.mxu0 %v187
      %595 = vmatmul.mubr.f32.gmra.mrb[0].mxu0 %v186
      %v596 = vpop.f32.mrb[0].mxu0
      %v597 = vadd.f32 %v365, %v596
      %v598 = vpop.f32.mrb[0].mxu0
      %599 = vmatprep.mubr.f32.mxu0 %v190
      %600 = vmatmul.mubr.f32.gmra.mrb[0].mxu0 %v189
      %v601 = vpop.f32.mrb[0].mxu0
      %v602 = vadd.f32 %v365, %v601
      %v603 = vpop.f32.mrb[0].mxu0
      %604 = vmatprep.mubr.f32.mxu0 %v193
      %605 = vmatmul.mubr.f32.gmra.mrb[0].mxu0 %v192
      %v606 = vpop.f32.mrb[0].mxu0
      %v607 = vadd.f32 %v365, %v606
      %v608 = vpop.f32.mrb[0].mxu0
      %609 = vmatprep.mubr.f32.mxu0 %v196
      %610 = vmatmul.mubr.f32.gmra.mrb[0].mxu0 %v195
      %v611 = vpop.f32.mrb[0].mxu0
      %v612 = vadd.f32 %v365, %v611
      %v613 = vpop.f32.mrb[0].mxu0
      %614 = vmatprep.mubr.f32.mxu0 %v199
      %615 = vmatmul.mubr.f32.gmra.mrb[0].mxu0 %v198
      %v616 = vpop.f32.mrb[0].mxu0
      %v617 = vadd.f32 %v365, %v616
      %v618 = vpop.f32.mrb[0].mxu0
      %619 = vmatprep.mubr.f32.mxu0 %v202
      %620 = vmatmul.mubr.f32.gmra.mrb[0].mxu0 %v201
      %v621 = vpop.f32.mrb[0].mxu0
      %v622 = vadd.f32 %v365, %v621
      %v623 = vpop.f32.mrb[0].mxu0
      %624 = vmatprep.mubr.f32.mxu0 %v205
      %625 = vmatmul.mubr.f32.gmra.mrb[0].mxu0 %v204
      %v626 = vpop.f32.mrb[0].mxu0
      %v627 = vadd.f32 %v365, %v626
      %v628 = vpop.f32.mrb[0].mxu0
      %629 = vmatprep.mubr.f32.mxu0 %v208
      %630 = vmatmul.mubr.f32.gmra.mrb[0].mxu0 %v207
      %v631 = vpop.f32.mrb[0].mxu0
      %v632 = vadd.f32 %v365, %v631
      %v633 = vpop.f32.mrb[0].mxu0
      %634 = vmatprep.mubr.f32.mxu0 %v211
      %635 = vmatmul.mubr.f32.gmra.mrb[0].mxu0 %v210
      %v636 = vpop.f32.mrb[0].mxu0
      %v637 = vadd.f32 %v365, %v636
      %v638 = vpop.f32.mrb[0].mxu0
      %639 = vmatprep.mubr.f32.mxu0 %v214
      %640 = vmatmul.mubr.f32.gmra.mrb[0].mxu0 %v213
      %v641 = vpop.f32.mrb[0].mxu0
      %v642 = vadd.f32 %v365, %v641
      %v643 = vpop.f32.mrb[0].mxu0
      %644 = vmatprep.mubr.f32.mxu0 %v217
      %645 = vmatmul.mubr.f32.gmra.mrb[0].mxu0 %v216
      %v646 = vpop.f32.mrb[0].mxu0
      %v647 = vadd.f32 %v365, %v646
      %v648 = vpop.f32.mrb[0].mxu0
      %649 = vmatprep.mubr.f32.mxu0 %v220
      %650 = vmatmul.mubr.f32.gmra.mrb[0].mxu0 %v219
      %v651 = vpop.f32.mrb[0].mxu0
      %v652 = vadd.f32 %v365, %v651
      %v653 = vpop.f32.mrb[0].mxu0
      %654 = vmatprep.mubr.f32.mxu0 %v223
      %655 = vmatmul.mubr.f32.gmra.mrb[0].mxu0 %v222
      %v656 = vpop.f32.mrb[0].mxu0
      %v657 = vadd.f32 %v365, %v656
      %v658 = vpop.f32.mrb[0].mxu0
      %659 = vmatprep.mubr.f32.mxu0 %v226
      %660 = vmatmul.mubr.f32.gmra.mrb[0].mxu0 %v225
      %v661 = vpop.f32.mrb[0].mxu0
      %v662 = vadd.f32 %v365, %v661
      %v663 = vpop.f32.mrb[0].mxu0
      %664 = vmatprep.mubr.f32.mxu0 %v229
      %665 = vmatmul.mubr.f32.gmra.mrb[0].mxu0 %v228
      %v666 = vpop.f32.mrb[0].mxu0
      %v667 = vadd.f32 %v365, %v666
      %v668 = vpop.f32.mrb[0].mxu0
      %669 = vmatprep.mubr.f32.mxu0 %v232
      %670 = vmatmul.mubr.f32.gmra.mrb[0].mxu0 %v231
      %v671 = vpop.f32.mrb[0].mxu0
      %v672 = vadd.f32 %v365, %v671
      %v673 = vpop.f32.mrb[0].mxu0
      %674 = vmatprep.mubr.f32.mxu0 %v235
      %675 = vmatmul.mubr.f32.gmra.mrb[0].mxu0 %v234
      %v676 = vpop.f32.mrb[0].mxu0
      %v677 = vadd.f32 %v365, %v676
      %v678 = vpop.f32.mrb[0].mxu0
      %679 = vmatprep.mubr.f32.mxu0 %v238
      %680 = vmatmul.mubr.f32.gmra.mrb[0].mxu0 %v237
      %v681 = vpop.f32.mrb[0].mxu0
      %v682 = vadd.f32 %v365, %v681
      %v683 = vpop.f32.mrb[0].mxu0
      %684 = vmatprep.mubr.f32.mxu0 %v241
      %685 = vmatmul.mubr.f32.gmra.mrb[0].mxu0 %v240
      %v686 = vpop.f32.mrb[0].mxu0
      %v687 = vadd.f32 %v365, %v686
      %v688 = vpop.f32.mrb[0].mxu0
      %689 = vmatprep.mubr.f32.mxu0 %v244
      %690 = vmatmul.mubr.f32.gmra.mrb[0].mxu0 %v243
      %v691 = vpop.f32.mrb[0].mxu0
      %v692 = vadd.f32 %v365, %v691
      %v693 = vpop.f32.mrb[0].mxu0
      %694 = vmatprep.mubr.f32.mxu0 %v247
      %695 = vmatmul.mubr.f32.gmra.mrb[0].mxu0 %v246
      %v696 = vpop.f32.mrb[0].mxu0
      %v697 = vadd.f32 %v365, %v696
      %v698 = vpop.f32.mrb[0].mxu0
      %699 = vmatprep.mubr.f32.mxu0 %v250
      %700 = vmatmul.mubr.f32.gmra.mrb[0].mxu0 %v249
      %v701 = vpop.f32.mrb[0].mxu0
      %v702 = vadd.f32 %v365, %v701
      %v703 = vpop.f32.mrb[0].mxu0
      %704 = vmatprep.mubr.f32.mxu0 %v253
      %705 = vmatmul.mubr.f32.gmra.mrb[0].mxu0 %v252
      %v706 = vpop.f32.mrb[0].mxu0
      %v707 = vadd.f32 %v365, %v706
      %v708 = vpop.f32.mrb[0].mxu0
      %709 = vmatprep.mubr.f32.mxu0 %v256
      %710 = vmatmul.mubr.f32.gmra.mrb[0].mxu0 %v255
      %v711 = vpop.f32.mrb[0].mxu0
      %v712 = vadd.f32 %v365, %v711
      %v713 = vpop.f32.mrb[0].mxu0
      %714 = vmatprep.mubr.f32.mxu0 %v259
      %715 = vmatmul.mubr.f32.gmra.mrb[0].mxu0 %v258
      %v716 = vpop.f32.mrb[0].mxu0
      %v717 = vadd.f32 %v365, %v716
      %v718 = vpop.f32.mrb[0].mxu0
      %719 = vmatprep.mubr.f32.mxu0 %v262
      %720 = vmatmul.mubr.f32.gmra.mrb[0].mxu0 %v261
      %v721 = vpop.f32.mrb[0].mxu0
      %v722 = vadd.f32 %v365, %v721
      %v723 = vpop.f32.mrb[0].mxu0
      %724 = vmatprep.mubr.f32.mxu0 %v265
      %725 = vmatmul.mubr.f32.gmra.mrb[0].mxu0 %v264
      %v726 = vpop.f32.mrb[0].mxu0
      %v727 = vadd.f32 %v365, %v726
      %v728 = vpop.f32.mrb[0].mxu0
      %729 = vmatprep.mubr.f32.mxu0 %v268
      %730 = vmatmul.mubr.f32.gmra.mrb[0].mxu0 %v267
      %v731 = vpop.f32.mrb[0].mxu0
      %v732 = vadd.f32 %v365, %v731
      %v733 = vpop.f32.mrb[0].mxu0
      %734 = vmatprep.mubr.f32.mxu0 %v271
      %735 = vmatmul.mubr.f32.gmra.mrb[0].mxu0 %v270
      %v736 = vpop.f32.mrb[0].mxu0
      %v737 = vadd.f32 %v365, %v736
      %v738 = vpop.f32.mrb[0].mxu0
      %739 = vmatprep.mubr.f32.mxu0 %v274
      %740 = vmatmul.mubr.f32.gmra.mrb[0].mxu0 %v273
      %v741 = vpop.f32.mrb[0].mxu0
      %v742 = vadd.f32 %v365, %v741
      %v743 = vpop.f32.mrb[0].mxu0
      %744 = vmatprep.mubr.f32.mxu0 %v277
      %745 = vmatmul.mubr.f32.gmra.mrb[0].mxu0 %v276
      %v746 = vpop.f32.mrb[0].mxu0
      %v747 = vadd.f32 %v365, %v746
      %v748 = vpop.f32.mrb[0].mxu0
      %749 = vmatprep.mubr.f32.mxu0 %v280
      %750 = vmatmul.mubr.f32.gmra.mrb[0].mxu0 %v279
      %v751 = vpop.f32.mrb[0].mxu0
      %v752 = vadd.f32 %v365, %v751
      %v753 = vpop.f32.mrb[0].mxu0
      %754 = vmatprep.mubr.f32.mxu0 %v283
      %755 = vmatmul.mubr.f32.gmra.mrb[0].mxu0 %v282
      %v756 = vpop.f32.mrb[0].mxu0
      %v757 = vadd.f32 %v365, %v756
      %v758 = vpop.f32.mrb[0].mxu0
      %759 = vmatprep.mubr.f32.mxu0 %v286
      %760 = vmatmul.mubr.f32.gmra.mrb[0].mxu0 %v285
      %v761 = vpop.f32.mrb[0].mxu0
      %v762 = vadd.f32 %v365, %v761
      %v763 = vpop.f32.mrb[0].mxu0
      %764 = vmatprep.mubr.f32.mxu0 %v289
      %765 = vmatmul.mubr.f32.gmra.mrb[0].mxu0 %v288
      %v766 = vpop.f32.mrb[0].mxu0
      %v767 = vadd.f32 %v365, %v766
      %v768 = vpop.f32.mrb[0].mxu0
      %769 = vmatprep.mubr.f32.mxu0 %v292
      %770 = vmatmul.mubr.f32.gmra.mrb[0].mxu0 %v291
      %v771 = vpop.f32.mrb[0].mxu0
      %v772 = vadd.f32 %v365, %v771
      %v773 = vpop.f32.mrb[0].mxu0
      %774 = vmatprep.mubr.f32.mxu0 %v295
      %775 = vmatmul.mubr.f32.gmra.mrb[0].mxu0 %v294
      %v776 = vpop.f32.mrb[0].mxu0
      %v777 = vadd.f32 %v365, %v776
      %v778 = vpop.f32.mrb[0].mxu0
      %779 = vmatprep.mubr.f32.mxu0 %v298
      %780 = vmatmul.mubr.f32.gmra.mrb[0].mxu0 %v297
      %v781 = vpop.f32.mrb[0].mxu0
      %v782 = vadd.f32 %v365, %v781
      %v783 = vpop.f32.mrb[0].mxu0
      %784 = vmatprep.mubr.f32.mxu0 %v301
      %785 = vmatmul.mubr.f32.gmra.mrb[0].mxu0 %v300
      %v786 = vpop.f32.mrb[0].mxu0
      %v787 = vadd.f32 %v365, %v786
      %v788 = vpop.f32.mrb[0].mxu0
      %789 = vmatprep.mubr.f32.mxu0 %v304
      %790 = vmatmul.mubr.f32.gmra.mrb[0].mxu0 %v303
      %v791 = vpop.f32.mrb[0].mxu0
      %v792 = vadd.f32 %v365, %v791
      %v793 = vpop.f32.mrb[0].mxu0
      %794 = vmatprep.mubr.f32.mxu0 %v307
      %795 = vmatmul.mubr.f32.gmra.mrb[0].mxu0 %v306
      %v796 = vpop.f32.mrb[0].mxu0
      %v797 = vadd.f32 %v365, %v796
      %v798 = vpop.f32.mrb[0].mxu0
      %799 = vmatprep.mubr.f32.mxu0 %v310
      %800 = vmatmul.mubr.f32.gmra.mrb[0].mxu0 %v309
      %v801 = vpop.f32.mrb[0].mxu0
      %v802 = vadd.f32 %v365, %v801
      %v803 = vpop.f32.mrb[0].mxu0
      %804 = vmatprep.mubr.f32.mxu0 %v313
      %805 = vmatmul.mubr.f32.gmra.mrb[0].mxu0 %v312
      %v806 = vpop.f32.mrb[0].mxu0
      %v807 = vadd.f32 %v365, %v806
      %v808 = vpop.f32.mrb[0].mxu0
      %809 = vmatprep.mubr.f32.mxu0 %v316
      %810 = vmatmul.mubr.f32.gmra.mrb[0].mxu0 %v315
      %v811 = vpop.f32.mrb[0].mxu0
      %v812 = vadd.f32 %v365, %v811
      %v813 = vpop.f32.mrb[0].mxu0
      %814 = vmatprep.mubr.f32.mxu0 %v319
      %815 = vmatmul.mubr.f32.gmra.mrb[0].mxu0 %v318
      %v816 = vpop.f32.mrb[0].mxu0
      %v817 = vadd.f32 %v365, %v816
      %v818 = vpop.f32.mrb[0].mxu0
      %819 = vmatprep.mubr.f32.mxu0 %v322
      %820 = vmatmul.mubr.f32.gmra.mrb[0].mxu0 %v321
      %v821 = vpop.f32.mrb[0].mxu0
      %v822 = vadd.f32 %v365, %v821
      %v823 = vpop.f32.mrb[0].mxu0
      %824 = vdwg.mxu0
      %825 = vmatprep.subr.mxu0 0.0
      %826 = vmatpush1.msra.mxu0 %v356
      %827 = vmatprep.subr.mxu0 0.0
      %828 = vmatpush1.msra.mxu0 %v357
      %829 = vmatprep.subr.mxu0 0.0
      %830 = vmatpush1.msra.mxu0 %v358
      %831 = vmatprep.subr.mxu0 0.0
      %832 = vmatpush1.msra.mxu0 %v359
      %833 = vmatprep.subr.mxu0 0.0
      %834 = vmatpush1.msra.mxu0 0.0
      %835 = vmatprep.subr.mxu0 0.0
      %836 = vmatpush1.msra.mxu0 0.0
      %837 = vmatprep.subr.mxu0 0.0
      %838 = vmatpush1.msra.mxu0 0.0
      %839 = vmatprep.subr.mxu0 0.0
      %840 = vmatpush1.msra.mxu0 0.0
      %841 = vmatprep.subr.mxu0 0.0
      %842 = vmatpush1.msra.mxu0 0.0
      %843 = vmatprep.subr.mxu0 0.0
      %844 = vmatpush1.msra.mxu0 0.0
      %845 = vmatprep.subr.mxu0 0.0
      %846 = vmatpush1.msra.mxu0 0.0
      %847 = vmatprep.subr.mxu0 0.0
      %848 = vmatpush1.msra.mxu0 0.0
      %849 = vmatprep.subr.mxu0 0.0
      %850 = vmatpush1.msra.mxu0 0.0
      %851 = vmatprep.subr.mxu0 0.0
      %852 = vmatpush1.msra.mxu0 0.0
      %853 = vmatprep.subr.mxu0 0.0
      %854 = vmatpush1.msra.mxu0 0.0
      %855 = vmatprep.subr.mxu0 0.0
      %856 = vmatpush1.msra.mxu0 0.0
      %857 = vmatprep.subr.mxu0 0.0
      %858 = vmatpush1.msra.mxu0 0.0
      %859 = vmatprep.subr.mxu0 0.0
      %860 = vmatpush1.msra.mxu0 0.0
      %861 = vmatprep.subr.mxu0 0.0
      %862 = vmatpush1.msra.mxu0 0.0
      %863 = vmatprep.subr.mxu0 0.0
      %864 = vmatpush1.msra.mxu0 0.0
      %865 = vmatprep.subr.mxu0 0.0
      %866 = vmatpush1.msra.mxu0 0.0
      %867 = vmatprep.subr.mxu0 0.0
      %868 = vmatpush1.msra.mxu0 0.0
      %869 = vmatprep.subr.mxu0 0.0
      %870 = vmatpush1.msra.mxu0 0.0
      %871 = vmatprep.subr.mxu0 0.0
      %872 = vmatpush1.msra.mxu0 0.0
      %873 = vmatprep.subr.mxu0 0.0
      %874 = vmatpush1.msra.mxu0 0.0
      %875 = vmatprep.subr.mxu0 0.0
      %876 = vmatpush1.msra.mxu0 0.0
      %877 = vmatprep.subr.mxu0 0.0
      %878 = vmatpush1.msra.mxu0 0.0
      %879 = vmatprep.subr.mxu0 0.0
      %880 = vmatpush1.msra.mxu0 0.0
      %881 = vmatprep.subr.mxu0 0.0
      %882 = vmatpush1.msra.mxu0 0.0
      %883 = vmatprep.subr.mxu0 0.0
      %884 = vmatpush1.msra.mxu0 0.0
      %885 = vmatprep.subr.mxu0 0.0
      %886 = vmatpush1.msra.mxu0 0.0
      %887 = vmatprep.subr.mxu0 0.0
      %888 = vmatpush1.msra.mxu0 0.0
      %889 = vmatprep.mubr.f32.mxu0 0.0
      %890 = vmatmul.mubr.f32.gmra.mrb[0].mxu0 %v369
      %v891 = vpop.f32.mrb[0].mxu0
      %v892 = vadd.f32 %v582, %v891
      %v893 = vpop.f32.mrb[0].mxu0
      %894 = vmatprep.mubr.f32.mxu0 0.0
      %895 = vmatmul.mubr.f32.gmra.mrb[0].mxu0 %v372
      %v896 = vpop.f32.mrb[0].mxu0
      %v897 = vadd.f32 %v587, %v896
      %v898 = vpop.f32.mrb[0].mxu0
      %899 = vmatprep.mubr.f32.mxu0 0.0
      %900 = vmatmul.mubr.f32.gmra.mrb[0].mxu0 %v375
      %v901 = vpop.f32.mrb[0].mxu0
      %v902 = vadd.f32 %v592, %v901
      %v903 = vpop.f32.mrb[0].mxu0
      %904 = vmatprep.mubr.f32.mxu0 0.0
      %905 = vmatmul.mubr.f32.gmra.mrb[0].mxu0 %v378
      %v906 = vpop.f32.mrb[0].mxu0
      %v907 = vadd.f32 %v597, %v906
      %v908 = vpop.f32.mrb[0].mxu0
      %909 = vmatprep.mubr.f32.mxu0 0.0
      %910 = vmatmul.mubr.f32.gmra.mrb[0].mxu0 %v381
      %v911 = vpop.f32.mrb[0].mxu0
      %v912 = vadd.f32 %v602, %v911
      %v913 = vpop.f32.mrb[0].mxu0
      %914 = vmatprep.mubr.f32.mxu0 0.0
      %915 = vmatmul.mubr.f32.gmra.mrb[0].mxu0 %v384
      %v916 = vpop.f32.mrb[0].mxu0
      %v917 = vadd.f32 %v607, %v916
      %v918 = vpop.f32.mrb[0].mxu0
      %919 = vmatprep.mubr.f32.mxu0 0.0
      %920 = vmatmul.mubr.f32.gmra.mrb[0].mxu0 %v387
      %v921 = vpop.f32.mrb[0].mxu0
      %v922 = vadd.f32 %v612, %v921
      %v923 = vpop.f32.mrb[0].mxu0
      %924 = vmatprep.mubr.f32.mxu0 0.0
      %925 = vmatmul.mubr.f32.gmra.mrb[0].mxu0 %v390
      %v926 = vpop.f32.mrb[0].mxu0
      %v927 = vadd.f32 %v617, %v926
      %v928 = vpop.f32.mrb[0].mxu0
      %929 = vmatprep.mubr.f32.mxu0 0.0
      %930 = vmatmul.mubr.f32.gmra.mrb[0].mxu0 %v393
      %v931 = vpop.f32.mrb[0].mxu0
      %v932 = vadd.f32 %v622, %v931
      %v933 = vpop.f32.mrb[0].mxu0
      %934 = vmatprep.mubr.f32.mxu0 0.0
      %935 = vmatmul.mubr.f32.gmra.mrb[0].mxu0 %v396
      %v936 = vpop.f32.mrb[0].mxu0
      %v937 = vadd.f32 %v627, %v936
      %v938 = vpop.f32.mrb[0].mxu0
      %939 = vmatprep.mubr.f32.mxu0 0.0
      %940 = vmatmul.mubr.f32.gmra.mrb[0].mxu0 %v399
      %v941 = vpop.f32.mrb[0].mxu0
      %v942 = vadd.f32 %v632, %v941
      %v943 = vpop.f32.mrb[0].mxu0
      %944 = vmatprep.mubr.f32.mxu0 0.0
      %945 = vmatmul.mubr.f32.gmra.mrb[0].mxu0 %v402
      %v946 = vpop.f32.mrb[0].mxu0
      %v947 = vadd.f32 %v637, %v946
      %v948 = vpop.f32.mrb[0].mxu0
      %949 = vmatprep.mubr.f32.mxu0 0.0
      %950 = vmatmul.mubr.f32.gmra.mrb[0].mxu0 %v405
      %v951 = vpop.f32.mrb[0].mxu0
      %v952 = vadd.f32 %v642, %v951
      %v953 = vpop.f32.mrb[0].mxu0
      %954 = vmatprep.mubr.f32.mxu0 0.0
      %955 = vmatmul.mubr.f32.gmra.mrb[0].mxu0 %v408
      %v956 = vpop.f32.mrb[0].mxu0
      %v957 = vadd.f32 %v647, %v956
      %v958 = vpop.f32.mrb[0].mxu0
      %959 = vmatprep.mubr.f32.mxu0 0.0
      %960 = vmatmul.mubr.f32.gmra.mrb[0].mxu0 %v411
      %v961 = vpop.f32.mrb[0].mxu0
      %v962 = vadd.f32 %v652, %v961
      %v963 = vpop.f32.mrb[0].mxu0
      %964 = vmatprep.mubr.f32.mxu0 0.0
      %965 = vmatmul.mubr.f32.gmra.mrb[0].mxu0 %v414
      %v966 = vpop.f32.mrb[0].mxu0
      %v967 = vadd.f32 %v657, %v966
      %v968 = vpop.f32.mrb[0].mxu0
      %969 = vmatprep.mubr.f32.mxu0 0.0
      %970 = vmatmul.mubr.f32.gmra.mrb[0].mxu0 %v417
      %v971 = vpop.f32.mrb[0].mxu0
      %v972 = vadd.f32 %v662, %v971
      %v973 = vpop.f32.mrb[0].mxu0
      %974 = vmatprep.mubr.f32.mxu0 0.0
      %975 = vmatmul.mubr.f32.gmra.mrb[0].mxu0 %v420
      %v976 = vpop.f32.mrb[0].mxu0
      %v977 = vadd.f32 %v667, %v976
      %v978 = vpop.f32.mrb[0].mxu0
      %979 = vmatprep.mubr.f32.mxu0 0.0
      %980 = vmatmul.mubr.f32.gmra.mrb[0].mxu0 %v423
      %v981 = vpop.f32.mrb[0].mxu0
      %v982 = vadd.f32 %v672, %v981
      %v983 = vpop.f32.mrb[0].mxu0
      %984 = vmatprep.mubr.f32.mxu0 0.0
      %985 = vmatmul.mubr.f32.gmra.mrb[0].mxu0 %v426
      %v986 = vpop.f32.mrb[0].mxu0
      %v987 = vadd.f32 %v677, %v986
      %v988 = vpop.f32.mrb[0].mxu0
      %989 = vmatprep.mubr.f32.mxu0 0.0
      %990 = vmatmul.mubr.f32.gmra.mrb[0].mxu0 %v429
      %v991 = vpop.f32.mrb[0].mxu0
      %v992 = vadd.f32 %v682, %v991
      %v993 = vpop.f32.mrb[0].mxu0
      %994 = vmatprep.mubr.f32.mxu0 0.0
      %995 = vmatmul.mubr.f32.gmra.mrb[0].mxu0 %v432
      %v996 = vpop.f32.mrb[0].mxu0
      %v997 = vadd.f32 %v687, %v996
      %v998 = vpop.f32.mrb[0].mxu0
      %999 = vmatprep.mubr.f32.mxu0 0.0
      %1000 = vmatmul.mubr.f32.gmra.mrb[0].mxu0 %v435
      %v1001 = vpop.f32.mrb[0].mxu0
      %v1002 = vadd.f32 %v692, %v1001
      %v1003 = vpop.f32.mrb[0].mxu0
      %1004 = vmatprep.mubr.f32.mxu0 0.0
      %1005 = vmatmul.mubr.f32.gmra.mrb[0].mxu0 %v438
      %v1006 = vpop.f32.mrb[0].mxu0
      %v1007 = vadd.f32 %v697, %v1006
      %v1008 = vpop.f32.mrb[0].mxu0
      %1009 = vmatprep.mubr.f32.mxu0 0.0
      %1010 = vmatmul.mubr.f32.gmra.mrb[0].mxu0 %v441
      %v1011 = vpop.f32.mrb[0].mxu0
      %v1012 = vadd.f32 %v702, %v1011
      %v1013 = vpop.f32.mrb[0].mxu0
      %1014 = vmatprep.mubr.f32.mxu0 0.0
      %1015 = vmatmul.mubr.f32.gmra.mrb[0].mxu0 %v444
      %v1016 = vpop.f32.mrb[0].mxu0
      %v1017 = vadd.f32 %v707, %v1016
      %v1018 = vpop.f32.mrb[0].mxu0
      %1019 = vmatprep.mubr.f32.mxu0 0.0
      %1020 = vmatmul.mubr.f32.gmra.mrb[0].mxu0 %v447
      %v1021 = vpop.f32.mrb[0].mxu0
      %v1022 = vadd.f32 %v712, %v1021
      %v1023 = vpop.f32.mrb[0].mxu0
      %1024 = vmatprep.mubr.f32.mxu0 0.0
      %1025 = vmatmul.mubr.f32.gmra.mrb[0].mxu0 %v450
      %v1026 = vpop.f32.mrb[0].mxu0
      %v1027 = vadd.f32 %v717, %v1026
      %v1028 = vpop.f32.mrb[0].mxu0
      %1029 = vmatprep.mubr.f32.mxu0 0.0
      %1030 = vmatmul.mubr.f32.gmra.mrb[0].mxu0 %v453
      %v1031 = vpop.f32.mrb[0].mxu0
      %v1032 = vadd.f32 %v722, %v1031
      %v1033 = vpop.f32.mrb[0].mxu0
      %1034 = vmatprep.mubr.f32.mxu0 0.0
      %1035 = vmatmul.mubr.f32.gmra.mrb[0].mxu0 %v456
      %v1036 = vpop.f32.mrb[0].mxu0
      %v1037 = vadd.f32 %v727, %v1036
      %v1038 = vpop.f32.mrb[0].mxu0
      %1039 = vmatprep.mubr.f32.mxu0 0.0
      %1040 = vmatmul.mubr.f32.gmra.mrb[0].mxu0 %v459
      %v1041 = vpop.f32.mrb[0].mxu0
      %v1042 = vadd.f32 %v732, %v1041
      %v1043 = vpop.f32.mrb[0].mxu0
      %1044 = vmatprep.mubr.f32.mxu0 0.0
      %1045 = vmatmul.mubr.f32.gmra.mrb[0].mxu0 %v462
      %v1046 = vpop.f32.mrb[0].mxu0
      %v1047 = vadd.f32 %v737, %v1046
      %v1048 = vpop.f32.mrb[0].mxu0
      %1049 = vmatprep.mubr.f32.mxu0 0.0
      %1050 = vmatmul.mubr.f32.gmra.mrb[0].mxu0 %v465
      %v1051 = vpop.f32.mrb[0].mxu0
      %v1052 = vadd.f32 %v742, %v1051
      %v1053 = vpop.f32.mrb[0].mxu0
      %1054 = vmatprep.mubr.f32.mxu0 0.0
      %1055 = vmatmul.mubr.f32.gmra.mrb[0].mxu0 %v468
      %v1056 = vpop.f32.mrb[0].mxu0
      %v1057 = vadd.f32 %v747, %v1056
      %v1058 = vpop.f32.mrb[0].mxu0
      %1059 = vmatprep.mubr.f32.mxu0 0.0
      %1060 = vmatmul.mubr.f32.gmra.mrb[0].mxu0 %v471
      %v1061 = vpop.f32.mrb[0].mxu0
      %v1062 = vadd.f32 %v752, %v1061
      %v1063 = vpop.f32.mrb[0].mxu0
      %1064 = vmatprep.mubr.f32.mxu0 0.0
      %1065 = vmatmul.mubr.f32.gmra.mrb[0].mxu0 %v474
      %v1066 = vpop.f32.mrb[0].mxu0
      %v1067 = vadd.f32 %v757, %v1066
      %v1068 = vpop.f32.mrb[0].mxu0
      %1069 = vmatprep.mubr.f32.mxu0 0.0
      %1070 = vmatmul.mubr.f32.gmra.mrb[0].mxu0 %v477
      %v1071 = vpop.f32.mrb[0].mxu0
      %v1072 = vadd.f32 %v762, %v1071
      %v1073 = vpop.f32.mrb[0].mxu0
      %1074 = vmatprep.mubr.f32.mxu0 0.0
      %1075 = vmatmul.mubr.f32.gmra.mrb[0].mxu0 %v480
      %v1076 = vpop.f32.mrb[0].mxu0
      %v1077 = vadd.f32 %v767, %v1076
      %v1078 = vpop.f32.mrb[0].mxu0
      %1079 = vmatprep.mubr.f32.mxu0 0.0
      %1080 = vmatmul.mubr.f32.gmra.mrb[0].mxu0 %v483
      %v1081 = vpop.f32.mrb[0].mxu0
      %v1082 = vadd.f32 %v772, %v1081
      %v1083 = vpop.f32.mrb[0].mxu0
      %1084 = vmatprep.mubr.f32.mxu0 0.0
      %1085 = vmatmul.mubr.f32.gmra.mrb[0].mxu0 %v486
      %v1086 = vpop.f32.mrb[0].mxu0
      %v1087 = vadd.f32 %v777, %v1086
      %v1088 = vpop.f32.mrb[0].mxu0
      %1089 = vmatprep.mubr.f32.mxu0 0.0
      %1090 = vmatmul.mubr.f32.gmra.mrb[0].mxu0 %v489
      %v1091 = vpop.f32.mrb[0].mxu0
      %v1092 = vadd.f32 %v782, %v1091
      %v1093 = vpop.f32.mrb[0].mxu0
      %1094 = vmatprep.mubr.f32.mxu0 0.0
      %1095 = vmatmul.mubr.f32.gmra.mrb[0].mxu0 %v492
      %v1096 = vpop.f32.mrb[0].mxu0
      %v1097 = vadd.f32 %v787, %v1096
      %v1098 = vpop.f32.mrb[0].mxu0
      %1099 = vmatprep.mubr.f32.mxu0 0.0
      %1100 = vmatmul.mubr.f32.gmra.mrb[0].mxu0 %v495
      %v1101 = vpop.f32.mrb[0].mxu0
      %v1102 = vadd.f32 %v792, %v1101
      %v1103 = vpop.f32.mrb[0].mxu0
      %1104 = vmatprep.mubr.f32.mxu0 0.0
      %1105 = vmatmul.mubr.f32.gmra.mrb[0].mxu0 %v498
      %v1106 = vpop.f32.mrb[0].mxu0
      %v1107 = vadd.f32 %v797, %v1106
      %v1108 = vpop.f32.mrb[0].mxu0
      %1109 = vmatprep.mubr.f32.mxu0 0.0
      %1110 = vmatmul.mubr.f32.gmra.mrb[0].mxu0 %v501
      %v1111 = vpop.f32.mrb[0].mxu0
      %v1112 = vadd.f32 %v802, %v1111
      %v1113 = vpop.f32.mrb[0].mxu0
      %1114 = vmatprep.mubr.f32.mxu0 0.0
      %1115 = vmatmul.mubr.f32.gmra.mrb[0].mxu0 %v504
      %v1116 = vpop.f32.mrb[0].mxu0
      %v1117 = vadd.f32 %v807, %v1116
      %v1118 = vpop.f32.mrb[0].mxu0
      %1119 = vmatprep.mubr.f32.mxu0 0.0
      %1120 = vmatmul.mubr.f32.gmra.mrb[0].mxu0 %v507
      %v1121 = vpop.f32.mrb[0].mxu0
      %v1122 = vadd.f32 %v812, %v1121
      %v1123 = vpop.f32.mrb[0].mxu0
      %1124 = vmatprep.mubr.f32.mxu0 0.0
      %1125 = vmatmul.mubr.f32.gmra.mrb[0].mxu0 %v510
      %v1126 = vpop.f32.mrb[0].mxu0
      %v1127 = vadd.f32 %v817, %v1126
      %v1128 = vpop.f32.mrb[0].mxu0
      %1129 = vmatprep.mubr.f32.mxu0 0.0
      %1130 = vmatmul.mubr.f32.gmra.mrb[0].mxu0 %v513
      %v1131 = vpop.f32.mrb[0].mxu0
      %v1132 = vadd.f32 %v822, %v1131
      %v1133 = vpop.f32.mrb[0].mxu0
      %1134 = vdwg.mxu0
      %1135 = vst [vmem:[%s175] sm:$0xff] %v892
      %1136 = vst [vmem:[%s175 + $0x8] sm:$0xff] %v897
      %1137 = vst [vmem:[%s175 + $0x10] sm:$0xff] %v902
      %1138 = vst [vmem:[%s175 + $0x18] sm:$0xff] %v907
      %1139 = vst [vmem:[%s175 + $0x20] sm:$0xff] %v912
      %1140 = vst [vmem:[%s175 + $0x28] sm:$0xff] %v917
      %1141 = vst [vmem:[%s175 + $0x30] sm:$0xff] %v922
      %1142 = vst [vmem:[%s175 + $0x38] sm:$0xff] %v927
      %1143 = vst [vmem:[%s175 + $0x40] sm:$0xff] %v932
      %1144 = vst [vmem:[%s175 + $0x48] sm:$0xff] %v937
      %1145 = vst [vmem:[%s175 + $0x50] sm:$0xff] %v942
      %1146 = vst [vmem:[%s175 + $0x58] sm:$0xff] %v947
      %1147 = vst [vmem:[%s175 + $0x60] sm:$0xff] %v952
      %1148 = vst [vmem:[%s175 + $0x68] sm:$0xff] %v957
      %1149 = vst [vmem:[%s175 + $0x70] sm:$0xff] %v962
      %1150 = vst [vmem:[%s175 + $0x78] sm:$0xff] %v967
      %1151 = vst [vmem:[%s175 + $0x80] sm:$0xff] %v972
      %1152 = vst [vmem:[%s175 + $0x88] sm:$0xff] %v977
      %1153 = vst [vmem:[%s175 + $0x90] sm:$0xff] %v982
      %1154 = vst [vmem:[%s175 + $0x98] sm:$0xff] %v987
      %1155 = vst [vmem:[%s175 + $0xa0] sm:$0xff] %v992
      %1156 = vst [vmem:[%s175 + $0xa8] sm:$0xff] %v997
      %1157 = vst [vmem:[%s175 + $0xb0] sm:$0xff] %v1002
      %1158 = vst [vmem:[%s175 + $0xb8] sm:$0xff] %v1007
      %1159 = vst [vmem:[%s175 + $0xc0] sm:$0xff] %v1012
      %1160 = vst [vmem:[%s175 + $0xc8] sm:$0xff] %v1017
      %1161 = vst [vmem:[%s175 + $0xd0] sm:$0xff] %v1022
      %1162 = vst [vmem:[%s175 + $0xd8] sm:$0xff] %v1027
      %1163 = vst [vmem:[%s175 + $0xe0] sm:$0xff] %v1032
      %1164 = vst [vmem:[%s175 + $0xe8] sm:$0xff] %v1037
      %1165 = vst [vmem:[%s175 + $0xf0] sm:$0xff] %v1042
      %1166 = vst [vmem:[%s175 + $0xf8] sm:$0xff] %v1047
      %1167 = vst [vmem:[%s175 + $0x100] sm:$0xff] %v1052
      %1168 = vst [vmem:[%s175 + $0x108] sm:$0xff] %v1057
      %1169 = vst [vmem:[%s175 + $0x110] sm:$0xff] %v1062
      %1170 = vst [vmem:[%s175 + $0x118] sm:$0xff] %v1067
      %1171 = vst [vmem:[%s175 + $0x120] sm:$0xff] %v1072
      %1172 = vst [vmem:[%s175 + $0x128] sm:$0xff] %v1077
      %1173 = vst [vmem:[%s175 + $0x130] sm:$0xff] %v1082
      %1174 = vst [vmem:[%s175 + $0x138] sm:$0xff] %v1087
      %1175 = vst [vmem:[%s175 + $0x140] sm:$0xff] %v1092
      %1176 = vst [vmem:[%s175 + $0x148] sm:$0xff] %v1097
      %1177 = vst [vmem:[%s175 + $0x150] sm:$0xff] %v1102
      %1178 = vst [vmem:[%s175 + $0x158] sm:$0xff] %v1107
      %1179 = vst [vmem:[%s175 + $0x160] sm:$0xff] %v1112
      %1180 = vst [vmem:[%s175 + $0x168] sm:$0xff] %v1117
      %1181 = vst [vmem:[%s175 + $0x170] sm:$0xff] %v1122
      %1182 = vst [vmem:[%s175 + $0x178] sm:$0xff] %v1127
      %1183 = vst [vmem:[%s175 + $0x180] sm:$0xff] %v1132
      %s1184 = smul.u32 49, %s14
      %p1185 = scmp.lt.s32.totalorder %s1184, 195
      %s1186 = scalar_select %p1185, %s1184, 195
      %s1187 = smul.addr %s1186, 8
      %s1188 = scalar_lea.vmem %s3, %s1187
      // Predicated region
      $region33: #{gan_net_forward.27} parent=31 // pred_check
        %p1189 = pneg %p100
      $region34: #{gan_net_forward.27} parent=31 // pred_check_branch
        %1191 = sbr.rel (%p1189) target = $region36
      $region35: #{gan_net_forward.27} parent=31 // pred_region
        %s1192 = smul.u32 49, %s14
      $region36: #{gan_net_forward.27} parent=31 // pred_fallthru
        _
    $region32: #{gan_net_forward.27} parent=5 // pred_fallthru
      _
    %p1193 = scmp.le.s32.totalorder 2, %s9
    // Predicated region
    $region37: #{gan_net_forward.27} parent=5 // pred_check
      %p1194 = pneg %p1193
    $region38: #{gan_net_forward.27} parent=5 // pred_check_branch
      %1196 = sbr.rel (%p1194) target = $region40
    $region39: #{gan_net_forward.27} parent=5 // pred_region
      %s1197 = ssub.s32 %s9, 2
      // Predicated region
      $region41: #{gan_net_forward.27} parent=39 // pred_check
        %p1198 = pneg %p106
      $region42: #{gan_net_forward.27} parent=39 // pred_check_branch
        %1200 = sbr.rel (%p1198) target = $region44
      $region43: #{gan_net_forward.27} parent=39 // pred_region
        %s1201 = smul.u32 49, %s15
        %p1202 = scmp.lt.s32.totalorder %s1201, 195
        %s1203 = scalar_select %p1202, %s1201, 195
        %s1204 = smul.addr %s1203, 8
        %s1205 = scalar_lea.vmem %s3, %s1204
      $region44: #{gan_net_forward.27} parent=39 // pred_fallthru
        _
    $region40: #{gan_net_forward.27} parent=5 // pred_fallthru
      _
  $region6: #{gan_net_forward.27} parent=0 // loop_footer
    %s13 = sadd.s32 1, %s9
  $region7: #{gan_net_forward.27} parent=0 // loop_footer_branch
    %8 = sbr.rel target = $region3
  $region8: #{gan_net_forward.27} parent=0 // loop_exit
    _

</llo_original>
